<compile_context>
chip_gen: v7x
topology: tpu7x:2x2x1
jax: 0.10.0
libtpu: 0.0.40
codegen_flags: <defaults>
</compile_context>

<pallas_src>
import math

import jax
import jax.numpy as jnp
from jax.experimental import pallas as pl
from jax.experimental.pallas import tpu as pltpu

# ----------------------------- config ---------------------------------------
B, S, H = 2, 8, 32          # batch, seq, hidden
NH, HD = 4, 8               # heads, head_dim (NH * HD == H)
FF = 64                     # intermediate (FFN) size
L = 2                       # number of encoder layers (synthetic)
V = 100                     # vocab size
MAXPOS = 64                 # max position embeddings
EPS = 1e-12                 # layer_norm_eps from the config
NEG_INF = -1e30


def _ln(x, g, b):
    """LayerNorm over the last axis in f32 (matches nn.LayerNorm, eps=1e-12)."""
    mu = jnp.mean(x, axis=-1, keepdims=True)
    var = jnp.mean(jnp.square(x - mu), axis=-1, keepdims=True)
    return (x - mu) * jax.lax.rsqrt(var + EPS) * g + b


# -------------------------- fused encoder kernel -----------------------------
def encoder_kernel(
    emb_ref, bias_ref, eg_ref, eb_ref,
    wqkv_ref, bqkv_ref, wo_ref, bo_ref, ln1_g_ref, ln1_b_ref,
    w1_ref, fb1_ref, w2_ref, fb2_ref, ln2_g_ref, ln2_b_ref,
    o_ref,
    hid_ref, ctx_ref, q3_ref, k3_ref, v3_ref,
):
    l = pl.program_id(1)
    last = pl.num_programs(1) - 1

    # Layer 0 of each batch: embedding LayerNorm into the resident hidden state.
    @pl.when(l == 0)
    def _():
        hid_ref[...] = _ln(emb_ref[0].astype(jnp.float32), eg_ref[...], eb_ref[...])

    x = hid_ref[...]                                   # (S, H) f32
    x_bf = x.astype(jnp.bfloat16)

    # --- fused QKV projection: one wide, K=H-deep bf16 MXU matmul -------------
    wqkv = wqkv_ref[0]                                 # (H, 3H) bf16
    qkv = jnp.dot(x_bf, wqkv, preferred_element_type=jnp.float32) + bqkv_ref[0]

    # --- stage Q/K/V head-major into VMEM scratch (static stores) -------------
    for h in range(NH):                                # static unrolled
        q3_ref[h] = qkv[:, h * HD:(h + 1) * HD].astype(jnp.bfloat16)
        k3_ref[h] = qkv[:, H + h * HD: H + (h + 1) * HD].astype(jnp.bfloat16)
        v3_ref[h] = qkv[:, 2 * H + h * HD: 2 * H + (h + 1) * HD].astype(jnp.bfloat16)

    bias = bias_ref[0]                                 # (1, S) additive key mask
    wo = wo_ref[0]                                     # (H, H) bf16
    scale = 1.0 / math.sqrt(HD)

    def layer_out(rows):
        """MHA (first `rows` query rows vs all S keys) + add&LN1 + FFN + add&LN2.
        `rows` is a static Python int (S for inner layers, 1 for the CLS-only
        last layer). Returns the (rows, H) f32 layer output."""
        xq = x[0:rows, :]                              # residual stream (rows, H)

        # head-batched contraction over all heads at once
        q3 = q3_ref[:, 0:rows, :]                      # (NH, rows, HD) bf16
        k3 = k3_ref[...]                               # (NH, S, HD)    bf16
        v3 = v3_ref[...]                               # (NH, S, HD)    bf16

        s = jnp.einsum('hqd,hkd->hqk', q3, k3,
                       preferred_element_type=jnp.float32) * scale + bias
        s = s - jnp.max(s, axis=-1, keepdims=True)
        e = jnp.exp(s)
        # approx reciprocal (EUP); tiny deviation vs exact softmax normalization.
        p = e * pl.reciprocal(jnp.sum(e, axis=-1, keepdims=True), approx=True)
        ctx3 = jnp.einsum('hqk,hkd->hqd', p.astype(jnp.bfloat16), v3,
                          preferred_element_type=jnp.float32)   # (NH, rows, HD)

        # fold heads into one (rows, H) context slab, then a single K=H Wo matmul
        for h in range(NH):
            ctx_ref[0:rows, h * HD:(h + 1) * HD] = ctx3[h].astype(jnp.bfloat16)
        attn = jnp.dot(ctx_ref[0:rows, :], wo,
                       preferred_element_type=jnp.float32) + bo_ref[0]

        h1 = _ln(xq + attn, ln1_g_ref[0], ln1_b_ref[0])          # (rows, H) f32

        ff = jnp.dot(h1.astype(jnp.bfloat16), w1_ref[0],
                     preferred_element_type=jnp.float32) + fb1_ref[0]
        ff = jax.nn.gelu(ff, approximate=True)          # tanh gelu -> EUP slot
        ff = jnp.dot(ff.astype(jnp.bfloat16), w2_ref[0],
                     preferred_element_type=jnp.float32) + fb2_ref[0]
        return _ln(h1 + ff, ln2_g_ref[0], ln2_b_ref[0])

    # Inner layers: full-sequence layer, hidden state stays resident in VMEM.
    @pl.when(l != last)
    def _():
        hid_ref[...] = layer_out(S)

    # Last layer: only the CLS query row is needed (module returns [:, 0, :]).
    @pl.when(l == last)
    def _():
        o_ref[0] = layer_out(1).astype(o_ref.dtype)    # (1, H)


# --------------------------- Pallas wrapper ----------------------------------
def encoder_fused_pallas(emb, bias, p):
    """emb: (B,S,H) f32 pre-LN embeddings; bias: (B,1,S) f32 additive key mask."""
    glob2 = lambda shape: pl.BlockSpec(shape, lambda b, l: (0, 0))
    per_batch = lambda shape: pl.BlockSpec((1,) + shape, lambda b, l: (b, 0, 0))
    per_layer = lambda shape: pl.BlockSpec((1,) + shape, lambda b, l: (l, 0, 0))

    in_specs = [
        per_batch((S, H)),                   # embeddings (fetched once per batch)
        per_batch((1, S)),                   # additive key-mask bias
        glob2((1, H)), glob2((1, H)),        # embedding LN gamma/beta
        per_layer((H, 3 * H)), per_layer((1, 3 * H)),   # Wqkv, bqkv
        per_layer((H, H)), per_layer((1, H)),           # Wo, bo
        per_layer((1, H)), per_layer((1, H)),           # LN1 gamma, beta
        per_layer((H, FF)), per_layer((1, FF)),         # W1, b1
        per_layer((FF, H)), per_layer((1, H)),          # W2, b2
        per_layer((1, H)), per_layer((1, H)),           # LN2 gamma, beta
    ]
    # Output is (B, 1, H) so the per-batch block is (1, 1, H) (lane-dense last
    # dim, last-two dims equal the full array dims); squeezed to (B, H) outside.
    out = pl.pallas_call(
        encoder_kernel,
        out_shape=jax.ShapeDtypeStruct((B, 1, H), jnp.float32),
        grid_spec=pltpu.PrefetchScalarGridSpec(
            num_scalar_prefetch=0,
            grid=(B, L),                      # batch parallel, layers sequential
            in_specs=in_specs,
            out_specs=pl.BlockSpec((1, 1, H), lambda b, l: (b, 0, 0)),
            scratch_shapes=[
                pltpu.VMEM((S, H), jnp.float32),        # resident hidden state
                pltpu.VMEM((S, H), jnp.bfloat16),       # per-head context slab
                pltpu.VMEM((NH, S, HD), jnp.bfloat16),  # Q head-major staging
                pltpu.VMEM((NH, S, HD), jnp.bfloat16),  # K head-major staging
                pltpu.VMEM((NH, S, HD), jnp.bfloat16),  # V head-major staging
            ],
        ),
        compiler_params=pltpu.CompilerParams(
            dimension_semantics=("parallel", "arbitrary"),
            # raise the (v5e 16 MiB) default scoped VMEM limit; at real model
            # size also tile the FFN weights to stay inside v7x's 64 MiB VMEM.
            vmem_limit_bytes=32 * 1024 * 1024,
        ),
    )(
        emb, bias, p["emb_ln_g"], p["emb_ln_b"],
        p["wqkv"], p["bqkv"], p["wo"], p["bo"], p["ln1_g"], p["ln1_b"],
        p["w1"], p["fb1"], p["w2"], p["fb2"], p["ln2_g"], p["ln2_b"],
    )
    return out.reshape(B, H)


# ----------------------- parameter initialization ---------------------------
def init_params(key):
    """Deterministic synthetic weights (initializer_range=0.02). No checkpoint.
    Matmul weights stored in bf16 (halves DMA bytes / VMEM); norms & biases f32."""
    std = 0.02
    ks = jax.random.split(key, 6)

    def dense(k, shape):
        return jax.random.normal(k, shape, jnp.float32) * std

    return {
        "word_emb": dense(ks[0], (V, H)),
        "pos_emb": dense(ks[1], (MAXPOS, H)),
        "emb_ln_g": jnp.ones((1, H), jnp.float32),
        "emb_ln_b": jnp.zeros((1, H), jnp.float32),
        "wqkv": dense(ks[2], (L, H, 3 * H)).astype(jnp.bfloat16),
        "bqkv": jnp.zeros((L, 1, 3 * H), jnp.float32),
        "wo": dense(ks[3], (L, H, H)).astype(jnp.bfloat16),
        "bo": jnp.zeros((L, 1, H), jnp.float32),
        "ln1_g": jnp.ones((L, 1, H), jnp.float32),
        "ln1_b": jnp.zeros((L, 1, H), jnp.float32),
        "w1": dense(ks[4], (L, H, FF)).astype(jnp.bfloat16),
        "fb1": jnp.zeros((L, 1, FF), jnp.float32),
        "w2": dense(ks[5], (L, FF, H)).astype(jnp.bfloat16),
        "fb2": jnp.zeros((L, 1, H), jnp.float32),
        "ln2_g": jnp.ones((L, 1, H), jnp.float32),
        "ln2_b": jnp.zeros((L, 1, H), jnp.float32),
    }


# ------------------------------- forward ------------------------------------
def imdb_forward(params, ids, attention_mask, token_type_ids):
    # token_type_ids is accepted but unused — the PyTorch module never passes it
    # to the foundation model.
    del token_type_ids

    # Embedding gather (plain-JAX glue); LayerNorm happens inside the fused kernel.
    positions = jnp.arange(S, dtype=jnp.int32)
    emb = jnp.take(params["word_emb"], ids, axis=0) + params["pos_emb"][positions][None]
    emb = emb.astype(jnp.float32)                                     # (B, S, H)

    # Per-batch additive key-mask bias: 0 for valid keys, -1e30 for padded keys.
    # NOTE: only key-side masking is applied (padded query rows are computed but
    # never read — only the CLS row is returned), matching HF behaviour.
    bias = jnp.where(attention_mask > 0, 0.0, NEG_INF).astype(jnp.float32)
    bias = bias.reshape(B, 1, S)

    # Fused encoder: embedding LN + L layers + CLS-only last layer, one pallas_call.
    # self._dropout(last_hidden_state) is identity at inference (p=0.2 off).
    return encoder_fused_pallas(emb, bias, params)       # (B, H) == logits[:, 0, :]


# --------------------------------- main --------------------------------------
if __name__ == "__main__":
    key = jax.random.PRNGKey(0)
    k_param, k_ids = jax.random.split(key)

    params = init_params(k_param)

    ids = jax.random.randint(k_ids, (B, S), 0, V, dtype=jnp.int32)
    attention_mask = jnp.ones((B, S), jnp.int32).at[1, 6:].set(0)  # pad tail of row 1
    token_type_ids = jnp.zeros((B, S), jnp.int32)

    out = imdb_forward(params, ids, attention_mask, token_type_ids)
    out = jax.block_until_ready(out)
    assert out.shape == (B, H) and out.dtype == jnp.float32
    assert bool(jnp.all(jnp.isfinite(out)))
    print("KERNEL_OK")
</pallas_src>

<mosaic_0001>
module attributes {stable_mosaic.version = 11 : i64} {
  func.func @encoder_kernel(%arg0: i32, %arg1: i32, %arg2: memref<1x8x32xf32, #tpu.memory_space<vmem>>, %arg3: memref<1x1x8xf32, #tpu.memory_space<vmem>>, %arg4: memref<1x32xf32, #tpu.memory_space<vmem>>, %arg5: memref<1x32xf32, #tpu.memory_space<vmem>>, %arg6: memref<1x32x96xbf16, #tpu.memory_space<vmem>>, %arg7: memref<1x1x96xf32, #tpu.memory_space<vmem>>, %arg8: memref<1x32x32xbf16, #tpu.memory_space<vmem>>, %arg9: memref<1x1x32xf32, #tpu.memory_space<vmem>>, %arg10: memref<1x1x32xf32, #tpu.memory_space<vmem>>, %arg11: memref<1x1x32xf32, #tpu.memory_space<vmem>>, %arg12: memref<1x32x64xbf16, #tpu.memory_space<vmem>>, %arg13: memref<1x1x64xf32, #tpu.memory_space<vmem>>, %arg14: memref<1x64x32xbf16, #tpu.memory_space<vmem>>, %arg15: memref<1x1x32xf32, #tpu.memory_space<vmem>>, %arg16: memref<1x1x32xf32, #tpu.memory_space<vmem>>, %arg17: memref<1x1x32xf32, #tpu.memory_space<vmem>>, %arg18: memref<1x1x32xf32, #tpu.memory_space<vmem>>, %arg19: memref<8x32xf32, #tpu.memory_space<vmem>>, %arg20: memref<8x32xbf16, #tpu.memory_space<vmem>>, %arg21: memref<4x8x8xbf16, #tpu.memory_space<vmem>>, %arg22: memref<4x8x8xbf16, #tpu.memory_space<vmem>>, %arg23: memref<4x8x8xbf16, #tpu.memory_space<vmem>>) attributes {dimension_semantics = [#tpu.dimension_semantics<parallel>, #tpu.dimension_semantics<arbitrary>], iteration_bounds = array<i64: 2, 2>, scalar_prefetch = 0 : i64, scratch_operands = 5 : i64, tpu.core_type = #tpu.core_type<tc>, window_params = [{transform_indices = @transform_0, window_bounds = array<i64: 1, 8, 32>}, {transform_indices = @transform_1, window_bounds = array<i64: 1, 1, 8>}, {pipeline_mode = #tpu.pipeline_mode<synchronous>, transform_indices = @transform_2, window_bounds = array<i64: 1, 32>}, {pipeline_mode = #tpu.pipeline_mode<synchronous>, transform_indices = @transform_3, window_bounds = array<i64: 1, 32>}, {transform_indices = @transform_4, window_bounds = array<i64: 1, 32, 96>}, {transform_indices = @transform_5, window_bounds = array<i64: 1, 1, 96>}, {transform_indices = @transform_6, window_bounds = array<i64: 1, 32, 32>}, {transform_indices = @transform_7, window_bounds = array<i64: 1, 1, 32>}, {transform_indices = @transform_8, window_bounds = array<i64: 1, 1, 32>}, {transform_indices = @transform_9, window_bounds = array<i64: 1, 1, 32>}, {transform_indices = @transform_10, window_bounds = array<i64: 1, 32, 64>}, {transform_indices = @transform_11, window_bounds = array<i64: 1, 1, 64>}, {transform_indices = @transform_12, window_bounds = array<i64: 1, 64, 32>}, {transform_indices = @transform_13, window_bounds = array<i64: 1, 1, 32>}, {transform_indices = @transform_14, window_bounds = array<i64: 1, 1, 32>}, {transform_indices = @transform_15, window_bounds = array<i64: 1, 1, 32>}, {transform_indices = @transform_16, window_bounds = array<i64: 1, 1, 32>}]} {
    %c0_i32 = arith.constant 0 : i32
    %0 = arith.cmpi eq, %arg1, %c0_i32 : i32
    %1 = arith.extui %0 : i1 to i32
    %c0_i32_0 = arith.constant 0 : i32
    %2 = arith.cmpi ne, %1, %c0_i32_0 : i32
    scf.if %2 {
      %c0_50 = arith.constant 0 : index
      %c0_51 = arith.constant 0 : index
      %c0_52 = arith.constant 0 : index
      %82 = vector.load %arg2[%c0_50, %c0_51, %c0_52] : memref<1x8x32xf32, #tpu.memory_space<vmem>>, vector<1x8x32xf32>
      %83 = vector.shape_cast %82 : vector<1x8x32xf32> to vector<8x32xf32>
      %c0_53 = arith.constant 0 : index
      %c0_54 = arith.constant 0 : index
      %84 = vector.load %arg4[%c0_53, %c0_54] : memref<1x32xf32, #tpu.memory_space<vmem>>, vector<1x32xf32>
      %c0_55 = arith.constant 0 : index
      %c0_56 = arith.constant 0 : index
      %85 = vector.load %arg5[%c0_55, %c0_56] : memref<1x32xf32, #tpu.memory_space<vmem>>, vector<1x32xf32>
      %cst_57 = arith.constant dense<0.000000e+00> : vector<8xf32>
      %86 = vector.multi_reduction <add>, %83, %cst_57 [1] : vector<8x32xf32> to vector<8xf32>
      %87 = vector.shape_cast %86 : vector<8xf32> to vector<8x1xf32>
      %cst_58 = arith.constant 3.200000e+01 : f32
      %88 = vector.broadcast %cst_58 : f32 to vector<8x1xf32>
      %89 = arith.divf %87, %88 : vector<8x1xf32>
      %90 = vector.broadcast %89 : vector<8x1xf32> to vector<8x32xf32>
      %91 = arith.subf %83, %90 : vector<8x32xf32>
      %92 = arith.mulf %91, %91 : vector<8x32xf32>
      %cst_59 = arith.constant dense<0.000000e+00> : vector<8xf32>
      %93 = vector.multi_reduction <add>, %92, %cst_59 [1] : vector<8x32xf32> to vector<8xf32>
      %94 = vector.shape_cast %93 : vector<8xf32> to vector<8x1xf32>
      %cst_60 = arith.constant 3.200000e+01 : f32
      %95 = vector.broadcast %cst_60 : f32 to vector<8x1xf32>
      %96 = arith.divf %94, %95 : vector<8x1xf32>
      %97 = vector.broadcast %89 : vector<8x1xf32> to vector<8x32xf32>
      %98 = arith.subf %83, %97 : vector<8x32xf32>
      %cst_61 = arith.constant 9.99999996E-13 : f32
      %99 = vector.broadcast %cst_61 : f32 to vector<8x1xf32>
      %100 = arith.addf %96, %99 : vector<8x1xf32>
      %101 = math.rsqrt %100 : vector<8x1xf32>
      %102 = vector.broadcast %101 : vector<8x1xf32> to vector<8x32xf32>
      %103 = arith.mulf %98, %102 : vector<8x32xf32>
      %104 = vector.broadcast %84 : vector<1x32xf32> to vector<8x32xf32>
      %105 = arith.mulf %103, %104 : vector<8x32xf32>
      %106 = vector.broadcast %85 : vector<1x32xf32> to vector<8x32xf32>
      %107 = arith.addf %105, %106 : vector<8x32xf32>
      %c0_62 = arith.constant 0 : index
      %c0_63 = arith.constant 0 : index
      %108 = vector.load %arg19[%c0_62, %c0_63] : memref<8x32xf32, #tpu.memory_space<vmem>>, vector<8x32xf32>
      tpu.vector_store %arg19[%c0_62, %c0_63], %107 {strides = array<i32>} : memref<8x32xf32, #tpu.memory_space<vmem>>, vector<8x32xf32>,
    } else {
    }
    %c0 = arith.constant 0 : index
    %c0_1 = arith.constant 0 : index
    %3 = vector.load %arg19[%c0, %c0_1] : memref<8x32xf32, #tpu.memory_space<vmem>>, vector<8x32xf32>
    %4 = arith.truncf %3 : vector<8x32xf32> to vector<8x32xbf16>
    %c0_2 = arith.constant 0 : index
    %c0_3 = arith.constant 0 : index
    %c0_4 = arith.constant 0 : index
    %5 = vector.load %arg6[%c0_2, %c0_3, %c0_4] : memref<1x32x96xbf16, #tpu.memory_space<vmem>>, vector<1x32x96xbf16>
    %6 = vector.shape_cast %5 : vector<1x32x96xbf16> to vector<32x96xbf16>
    %cst = arith.constant dense<0.000000e+00> : vector<8x96xf32>
    %7 = tpu.matmul %4, %6, %cst {dimension_numbers = #tpu.dot_dimension_numbers<[1], [0], [0], [1], [0, 0, 1, 1], [], []>} : vector<8x32xbf16>, vector<32x96xbf16>, vector<8x96xf32> -> vector<8x96xf32>
    %c0_5 = arith.constant 0 : index
    %c0_6 = arith.constant 0 : index
    %c0_7 = arith.constant 0 : index
    %8 = vector.load %arg7[%c0_5, %c0_6, %c0_7] : memref<1x1x96xf32, #tpu.memory_space<vmem>>, vector<1x1x96xf32>
    %9 = vector.shape_cast %8 : vector<1x1x96xf32> to vector<1x96xf32>
    %10 = vector.broadcast %9 : vector<1x96xf32> to vector<8x96xf32>
    %11 = arith.addf %7, %10 : vector<8x96xf32>
    %12 = vector.extract_strided_slice %11 {offsets = [0, 0], sizes = [8, 8], strides = [1, 1]} : vector<8x96xf32> to vector<8x8xf32>
    %13 = arith.truncf %12 : vector<8x8xf32> to vector<8x8xbf16>
    %c0_8 = arith.constant 0 : index
    %c0_9 = arith.constant 0 : index
    %c0_10 = arith.constant 0 : index
    %14 = vector.load %arg21[%c0_8, %c0_9, %c0_10] : memref<4x8x8xbf16, #tpu.memory_space<vmem>>, vector<1x8x8xbf16>
    %15 = vector.shape_cast %14 : vector<1x8x8xbf16> to vector<8x8xbf16>
    %16 = vector.shape_cast %13 : vector<8x8xbf16> to vector<1x8x8xbf16>
    tpu.vector_store %arg21[%c0_8, %c0_9, %c0_10], %16 {strides = array<i32>} : memref<4x8x8xbf16, #tpu.memory_space<vmem>>, vector<1x8x8xbf16>,
    %17 = vector.extract_strided_slice %11 {offsets = [0, 32], sizes = [8, 8], strides = [1, 1]} : vector<8x96xf32> to vector<8x8xf32>
    %18 = arith.truncf %17 : vector<8x8xf32> to vector<8x8xbf16>
    %c0_11 = arith.constant 0 : index
    %c0_12 = arith.constant 0 : index
    %c0_13 = arith.constant 0 : index
    %19 = vector.load %arg22[%c0_11, %c0_12, %c0_13] : memref<4x8x8xbf16, #tpu.memory_space<vmem>>, vector<1x8x8xbf16>
    %20 = vector.shape_cast %19 : vector<1x8x8xbf16> to vector<8x8xbf16>
    %21 = vector.shape_cast %18 : vector<8x8xbf16> to vector<1x8x8xbf16>
    tpu.vector_store %arg22[%c0_11, %c0_12, %c0_13], %21 {strides = array<i32>} : memref<4x8x8xbf16, #tpu.memory_space<vmem>>, vector<1x8x8xbf16>,
    %22 = vector.extract_strided_slice %11 {offsets = [0, 64], sizes = [8, 8], strides = [1, 1]} : vector<8x96xf32> to vector<8x8xf32>
    %23 = arith.truncf %22 : vector<8x8xf32> to vector<8x8xbf16>
    %c0_14 = arith.constant 0 : index
    %c0_15 = arith.constant 0 : index
    %c0_16 = arith.constant 0 : index
    %24 = vector.load %arg23[%c0_14, %c0_15, %c0_16] : memref<4x8x8xbf16, #tpu.memory_space<vmem>>, vector<1x8x8xbf16>
    %25 = vector.shape_cast %24 : vector<1x8x8xbf16> to vector<8x8xbf16>
    %26 = vector.shape_cast %23 : vector<8x8xbf16> to vector<1x8x8xbf16>
    tpu.vector_store %arg23[%c0_14, %c0_15, %c0_16], %26 {strides = array<i32>} : memref<4x8x8xbf16, #tpu.memory_space<vmem>>, vector<1x8x8xbf16>,
    %27 = vector.extract_strided_slice %11 {offsets = [0, 8], sizes = [8, 8], strides = [1, 1]} : vector<8x96xf32> to vector<8x8xf32>
    %28 = arith.truncf %27 : vector<8x8xf32> to vector<8x8xbf16>
    %c1 = arith.constant 1 : index
    %c0_17 = arith.constant 0 : index
    %c0_18 = arith.constant 0 : index
    %29 = vector.load %arg21[%c1, %c0_17, %c0_18] : memref<4x8x8xbf16, #tpu.memory_space<vmem>>, vector<1x8x8xbf16>
    %30 = vector.shape_cast %29 : vector<1x8x8xbf16> to vector<8x8xbf16>
    %31 = vector.shape_cast %28 : vector<8x8xbf16> to vector<1x8x8xbf16>
    tpu.vector_store %arg21[%c1, %c0_17, %c0_18], %31 {strides = array<i32>} : memref<4x8x8xbf16, #tpu.memory_space<vmem>>, vector<1x8x8xbf16>,
    %32 = vector.extract_strided_slice %11 {offsets = [0, 40], sizes = [8, 8], strides = [1, 1]} : vector<8x96xf32> to vector<8x8xf32>
    %33 = arith.truncf %32 : vector<8x8xf32> to vector<8x8xbf16>
    %c1_19 = arith.constant 1 : index
    %c0_20 = arith.constant 0 : index
    %c0_21 = arith.constant 0 : index
    %34 = vector.load %arg22[%c1_19, %c0_20, %c0_21] : memref<4x8x8xbf16, #tpu.memory_space<vmem>>, vector<1x8x8xbf16>
    %35 = vector.shape_cast %34 : vector<1x8x8xbf16> to vector<8x8xbf16>
    %36 = vector.shape_cast %33 : vector<8x8xbf16> to vector<1x8x8xbf16>
    tpu.vector_store %arg22[%c1_19, %c0_20, %c0_21], %36 {strides = array<i32>} : memref<4x8x8xbf16, #tpu.memory_space<vmem>>, vector<1x8x8xbf16>,
    %37 = vector.extract_strided_slice %11 {offsets = [0, 72], sizes = [8, 8], strides = [1, 1]} : vector<8x96xf32> to vector<8x8xf32>
    %38 = arith.truncf %37 : vector<8x8xf32> to vector<8x8xbf16>
    %c1_22 = arith.constant 1 : index
    %c0_23 = arith.constant 0 : index
    %c0_24 = arith.constant 0 : index
    %39 = vector.load %arg23[%c1_22, %c0_23, %c0_24] : memref<4x8x8xbf16, #tpu.memory_space<vmem>>, vector<1x8x8xbf16>
    %40 = vector.shape_cast %39 : vector<1x8x8xbf16> to vector<8x8xbf16>
    %41 = vector.shape_cast %38 : vector<8x8xbf16> to vector<1x8x8xbf16>
    tpu.vector_store %arg23[%c1_22, %c0_23, %c0_24], %41 {strides = array<i32>} : memref<4x8x8xbf16, #tpu.memory_space<vmem>>, vector<1x8x8xbf16>,
    %42 = vector.extract_strided_slice %11 {offsets = [0, 16], sizes = [8, 8], strides = [1, 1]} : vector<8x96xf32> to vector<8x8xf32>
    %43 = arith.truncf %42 : vector<8x8xf32> to vector<8x8xbf16>
    %c2 = arith.constant 2 : index
    %c0_25 = arith.constant 0 : index
    %c0_26 = arith.constant 0 : index
    %44 = vector.load %arg21[%c2, %c0_25, %c0_26] : memref<4x8x8xbf16, #tpu.memory_space<vmem>>, vector<1x8x8xbf16>
    %45 = vector.shape_cast %44 : vector<1x8x8xbf16> to vector<8x8xbf16>
    %46 = vector.shape_cast %43 : vector<8x8xbf16> to vector<1x8x8xbf16>
    tpu.vector_store %arg21[%c2, %c0_25, %c0_26], %46 {strides = array<i32>} : memref<4x8x8xbf16, #tpu.memory_space<vmem>>, vector<1x8x8xbf16>,
    %47 = vector.extract_strided_slice %11 {offsets = [0, 48], sizes = [8, 8], strides = [1, 1]} : vector<8x96xf32> to vector<8x8xf32>
    %48 = arith.truncf %47 : vector<8x8xf32> to vector<8x8xbf16>
    %c2_27 = arith.constant 2 : index
    %c0_28 = arith.constant 0 : index
    %c0_29 = arith.constant 0 : index
    %49 = vector.load %arg22[%c2_27, %c0_28, %c0_29] : memref<4x8x8xbf16, #tpu.memory_space<vmem>>, vector<1x8x8xbf16>
    %50 = vector.shape_cast %49 : vector<1x8x8xbf16> to vector<8x8xbf16>
    %51 = vector.shape_cast %48 : vector<8x8xbf16> to vector<1x8x8xbf16>
    tpu.vector_store %arg22[%c2_27, %c0_28, %c0_29], %51 {strides = array<i32>} : memref<4x8x8xbf16, #tpu.memory_space<vmem>>, vector<1x8x8xbf16>,
    %52 = vector.extract_strided_slice %11 {offsets = [0, 80], sizes = [8, 8], strides = [1, 1]} : vector<8x96xf32> to vector<8x8xf32>
    %53 = arith.truncf %52 : vector<8x8xf32> to vector<8x8xbf16>
    %c2_30 = arith.constant 2 : index
    %c0_31 = arith.constant 0 : index
    %c0_32 = arith.constant 0 : index
    %54 = vector.load %arg23[%c2_30, %c0_31, %c0_32] : memref<4x8x8xbf16, #tpu.memory_space<vmem>>, vector<1x8x8xbf16>
    %55 = vector.shape_cast %54 : vector<1x8x8xbf16> to vector<8x8xbf16>
    %56 = vector.shape_cast %53 : vector<8x8xbf16> to vector<1x8x8xbf16>
    tpu.vector_store %arg23[%c2_30, %c0_31, %c0_32], %56 {strides = array<i32>} : memref<4x8x8xbf16, #tpu.memory_space<vmem>>, vector<1x8x8xbf16>,
    %57 = vector.extract_strided_slice %11 {offsets = [0, 24], sizes = [8, 8], strides = [1, 1]} : vector<8x96xf32> to vector<8x8xf32>
    %58 = arith.truncf %57 : vector<8x8xf32> to vector<8x8xbf16>
    %c3 = arith.constant 3 : index
    %c0_33 = arith.constant 0 : index
    %c0_34 = arith.constant 0 : index
    %59 = vector.load %arg21[%c3, %c0_33, %c0_34] : memref<4x8x8xbf16, #tpu.memory_space<vmem>>, vector<1x8x8xbf16>
    %60 = vector.shape_cast %59 : vector<1x8x8xbf16> to vector<8x8xbf16>
    %61 = vector.shape_cast %58 : vector<8x8xbf16> to vector<1x8x8xbf16>
    tpu.vector_store %arg21[%c3, %c0_33, %c0_34], %61 {strides = array<i32>} : memref<4x8x8xbf16, #tpu.memory_space<vmem>>, vector<1x8x8xbf16>,
    %62 = vector.extract_strided_slice %11 {offsets = [0, 56], sizes = [8, 8], strides = [1, 1]} : vector<8x96xf32> to vector<8x8xf32>
    %63 = arith.truncf %62 : vector<8x8xf32> to vector<8x8xbf16>
    %c3_35 = arith.constant 3 : index
    %c0_36 = arith.constant 0 : index
    %c0_37 = arith.constant 0 : index
    %64 = vector.load %arg22[%c3_35, %c0_36, %c0_37] : memref<4x8x8xbf16, #tpu.memory_space<vmem>>, vector<1x8x8xbf16>
    %65 = vector.shape_cast %64 : vector<1x8x8xbf16> to vector<8x8xbf16>
    %66 = vector.shape_cast %63 : vector<8x8xbf16> to vector<1x8x8xbf16>
    tpu.vector_store %arg22[%c3_35, %c0_36, %c0_37], %66 {strides = array<i32>} : memref<4x8x8xbf16, #tpu.memory_space<vmem>>, vector<1x8x8xbf16>,
    %67 = vector.extract_strided_slice %11 {offsets = [0, 88], sizes = [8, 8], strides = [1, 1]} : vector<8x96xf32> to vector<8x8xf32>
    %68 = arith.truncf %67 : vector<8x8xf32> to vector<8x8xbf16>
    %c3_38 = arith.constant 3 : index
    %c0_39 = arith.constant 0 : index
    %c0_40 = arith.constant 0 : index
    %69 = vector.load %arg23[%c3_38, %c0_39, %c0_40] : memref<4x8x8xbf16, #tpu.memory_space<vmem>>, vector<1x8x8xbf16>
    %70 = vector.shape_cast %69 : vector<1x8x8xbf16> to vector<8x8xbf16>
    %71 = vector.shape_cast %68 : vector<8x8xbf16> to vector<1x8x8xbf16>
    tpu.vector_store %arg23[%c3_38, %c0_39, %c0_40], %71 {strides = array<i32>} : memref<4x8x8xbf16, #tpu.memory_space<vmem>>, vector<1x8x8xbf16>,
    %c0_41 = arith.constant 0 : index
    %c0_42 = arith.constant 0 : index
    %c0_43 = arith.constant 0 : index
    %72 = vector.load %arg3[%c0_41, %c0_42, %c0_43] : memref<1x1x8xf32, #tpu.memory_space<vmem>>, vector<1x1x8xf32>
    %73 = vector.shape_cast %72 : vector<1x1x8xf32> to vector<1x8xf32>
    %c0_44 = arith.constant 0 : index
    %c0_45 = arith.constant 0 : index
    %c0_46 = arith.constant 0 : index
    %74 = vector.load %arg8[%c0_44, %c0_45, %c0_46] : memref<1x32x32xbf16, #tpu.memory_space<vmem>>, vector<1x32x32xbf16>
    %75 = vector.shape_cast %74 : vector<1x32x32xbf16> to vector<32x32xbf16>
    %c1_i32 = arith.constant 1 : i32
    %76 = arith.cmpi ne, %arg1, %c1_i32 : i32
    %77 = arith.extui %76 : i1 to i32
    %c0_i32_47 = arith.constant 0 : i32
    %78 = arith.cmpi ne, %77, %c0_i32_47 : i32
    scf.if %78 {
      %c0_50 = arith.constant 0 : index
      %c0_51 = arith.constant 0 : index
      %c0_52 = arith.constant 0 : index
      %82 = vector.load %arg21[%c0_50, %c0_51, %c0_52] : memref<4x8x8xbf16, #tpu.memory_space<vmem>>, vector<4x8x8xbf16>
      %c0_53 = arith.constant 0 : index
      %c0_54 = arith.constant 0 : index
      %c0_55 = arith.constant 0 : index
      %83 = vector.load %arg22[%c0_53, %c0_54, %c0_55] : memref<4x8x8xbf16, #tpu.memory_space<vmem>>, vector<4x8x8xbf16>
      %c0_56 = arith.constant 0 : index
      %c0_57 = arith.constant 0 : index
      %c0_58 = arith.constant 0 : index
      %84 = vector.load %arg23[%c0_56, %c0_57, %c0_58] : memref<4x8x8xbf16, #tpu.memory_space<vmem>>, vector<4x8x8xbf16>
      "tpu.trace_start"() <{level = 10 : i32, message = "hqd,hkd->hqk"}> : () -> ()
      %cst_59 = arith.constant dense<0.000000e+00> : vector<4x8x8xf32>
      %85 = tpu.matmul %82, %83, %cst_59 {dimension_numbers = #tpu.dot_dimension_numbers<[2], [2], [1], [1], [0, 0, 0, 1, 1, 1], [0], [0]>} : vector<4x8x8xbf16>, vector<4x8x8xbf16>, vector<4x8x8xf32> -> vector<4x8x8xf32>
      "tpu.trace_stop"() : () -> ()
      %cst_60 = arith.constant 0.353553385 : f32
      %86 = vector.broadcast %cst_60 : f32 to vector<4x8x8xf32>
      %87 = arith.mulf %85, %86 : vector<4x8x8xf32>
      %88 = vector.shape_cast %73 : vector<1x8xf32> to vector<1x1x8xf32>
      %89 = vector.broadcast %88 : vector<1x1x8xf32> to vector<4x8x8xf32>
      %90 = arith.addf %87, %89 : vector<4x8x8xf32>
      %cst_61 = arith.constant dense<0xFF800000> : vector<4x8xf32>
      %91 = vector.multi_reduction <maximumf>, %90, %cst_61 [2] : vector<4x8x8xf32> to vector<4x8xf32>
      %92 = vector.shape_cast %91 : vector<4x8xf32> to vector<4x8x1xf32>
      %93 = vector.broadcast %92 : vector<4x8x1xf32> to vector<4x8x8xf32>
      %94 = arith.subf %90, %93 : vector<4x8x8xf32>
      %95 = math.exp %94 : vector<4x8x8xf32>
      %cst_62 = arith.constant dense<0.000000e+00> : vector<4x8xf32>
      %96 = vector.multi_reduction <add>, %95, %cst_62 [2] : vector<4x8x8xf32> to vector<4x8xf32>
      %97 = vector.shape_cast %96 : vector<4x8xf32> to vector<4x8x1xf32>
      %98 = tpu.reciprocal %97 {approx = true} : vector<4x8x1xf32> -> vector<4x8x1xf32>
      %99 = vector.broadcast %98 : vector<4x8x1xf32> to vector<4x8x8xf32>
      %100 = arith.mulf %95, %99 : vector<4x8x8xf32>
      %101 = arith.truncf %100 : vector<4x8x8xf32> to vector<4x8x8xbf16>
      "tpu.trace_start"() <{level = 10 : i32, message = "hqk,hkd->hqd"}> : () -> ()
      %cst_63 = arith.constant dense<0.000000e+00> : vector<4x8x8xf32>
      %102 = tpu.matmul %101, %84, %cst_63 {dimension_numbers = #tpu.dot_dimension_numbers<[2], [1], [1], [2], [0, 0, 0, 1, 1, 2], [0], [0]>} : vector<4x8x8xbf16>, vector<4x8x8xbf16>, vector<4x8x8xf32> -> vector<4x8x8xf32>
      "tpu.trace_stop"() : () -> ()
      %103 = vector.extract_strided_slice %102 {offsets = [0, 0, 0], sizes = [1, 8, 8], strides = [1, 1, 1]} : vector<4x8x8xf32> to vector<1x8x8xf32>
      %104 = vector.shape_cast %103 : vector<1x8x8xf32> to vector<8x8xf32>
      %105 = arith.truncf %104 : vector<8x8xf32> to vector<8x8xbf16>
      %c0_64 = arith.constant 0 : index
      %c0_65 = arith.constant 0 : index
      %106 = vector.load %arg20[%c0_64, %c0_65] : memref<8x32xbf16, #tpu.memory_space<vmem>>, vector<8x8xbf16>
      tpu.vector_store %arg20[%c0_64, %c0_65], %105 {strides = array<i32>} : memref<8x32xbf16, #tpu.memory_space<vmem>>, vector<8x8xbf16>,
      %107 = vector.extract_strided_slice %102 {offsets = [1, 0, 0], sizes = [1, 8, 8], strides = [1, 1, 1]} : vector<4x8x8xf32> to vector<1x8x8xf32>
      %108 = vector.shape_cast %107 : vector<1x8x8xf32> to vector<8x8xf32>
      %109 = arith.truncf %108 : vector<8x8xf32> to vector<8x8xbf16>
      %c0_66 = arith.constant 0 : index
      %c8 = arith.constant 8 : index
      %110 = vector.load %arg20[%c0_66, %c8] : memref<8x32xbf16, #tpu.memory_space<vmem>>, vector<8x8xbf16>
      tpu.vector_store %arg20[%c0_66, %c8], %109 {strides = array<i32>} : memref<8x32xbf16, #tpu.memory_space<vmem>>, vector<8x8xbf16>,
      %111 = vector.extract_strided_slice %102 {offsets = [2, 0, 0], sizes = [1, 8, 8], strides = [1, 1, 1]} : vector<4x8x8xf32> to vector<1x8x8xf32>
      %112 = vector.shape_cast %111 : vector<1x8x8xf32> to vector<8x8xf32>
      %113 = arith.truncf %112 : vector<8x8xf32> to vector<8x8xbf16>
      %c0_67 = arith.constant 0 : index
      %c16 = arith.constant 16 : index
      %114 = vector.load %arg20[%c0_67, %c16] : memref<8x32xbf16, #tpu.memory_space<vmem>>, vector<8x8xbf16>
      tpu.vector_store %arg20[%c0_67, %c16], %113 {strides = array<i32>} : memref<8x32xbf16, #tpu.memory_space<vmem>>, vector<8x8xbf16>,
      %115 = vector.extract_strided_slice %102 {offsets = [3, 0, 0], sizes = [1, 8, 8], strides = [1, 1, 1]} : vector<4x8x8xf32> to vector<1x8x8xf32>
      %116 = vector.shape_cast %115 : vector<1x8x8xf32> to vector<8x8xf32>
      %117 = arith.truncf %116 : vector<8x8xf32> to vector<8x8xbf16>
      %c0_68 = arith.constant 0 : index
      %c24 = arith.constant 24 : index
      %118 = vector.load %arg20[%c0_68, %c24] : memref<8x32xbf16, #tpu.memory_space<vmem>>, vector<8x8xbf16>
      tpu.vector_store %arg20[%c0_68, %c24], %117 {strides = array<i32>} : memref<8x32xbf16, #tpu.memory_space<vmem>>, vector<8x8xbf16>,
      %c0_69 = arith.constant 0 : index
      %c0_70 = arith.constant 0 : index
      %119 = vector.load %arg20[%c0_69, %c0_70] : memref<8x32xbf16, #tpu.memory_space<vmem>>, vector<8x32xbf16>
      %cst_71 = arith.constant dense<0.000000e+00> : vector<8x32xf32>
      %120 = tpu.matmul %119, %75, %cst_71 {dimension_numbers = #tpu.dot_dimension_numbers<[1], [0], [0], [1], [0, 0, 1, 1], [], []>} : vector<8x32xbf16>, vector<32x32xbf16>, vector<8x32xf32> -> vector<8x32xf32>
      %c0_72 = arith.constant 0 : index
      %c0_73 = arith.constant 0 : index
      %c0_74 = arith.constant 0 : index
      %121 = vector.load %arg9[%c0_72, %c0_73, %c0_74] : memref<1x1x32xf32, #tpu.memory_space<vmem>>, vector<1x1x32xf32>
      %122 = vector.shape_cast %121 : vector<1x1x32xf32> to vector<1x32xf32>
      %123 = vector.broadcast %122 : vector<1x32xf32> to vector<8x32xf32>
      %124 = arith.addf %120, %123 : vector<8x32xf32>
      %125 = arith.addf %3, %124 : vector<8x32xf32>
      %c0_75 = arith.constant 0 : index
      %c0_76 = arith.constant 0 : index
      %c0_77 = arith.constant 0 : index
      %126 = vector.load %arg10[%c0_75, %c0_76, %c0_77] : memref<1x1x32xf32, #tpu.memory_space<vmem>>, vector<1x1x32xf32>
      %127 = vector.shape_cast %126 : vector<1x1x32xf32> to vector<1x32xf32>
      %c0_78 = arith.constant 0 : index
      %c0_79 = arith.constant 0 : index
      %c0_80 = arith.constant 0 : index
      %128 = vector.load %arg11[%c0_78, %c0_79, %c0_80] : memref<1x1x32xf32, #tpu.memory_space<vmem>>, vector<1x1x32xf32>
      %129 = vector.shape_cast %128 : vector<1x1x32xf32> to vector<1x32xf32>
      %cst_81 = arith.constant dense<0.000000e+00> : vector<8xf32>
      %130 = vector.multi_reduction <add>, %125, %cst_81 [1] : vector<8x32xf32> to vector<8xf32>
      %131 = vector.shape_cast %130 : vector<8xf32> to vector<8x1xf32>
      %cst_82 = arith.constant 3.200000e+01 : f32
      %132 = vector.broadcast %cst_82 : f32 to vector<8x1xf32>
      %133 = arith.divf %131, %132 : vector<8x1xf32>
      %134 = vector.broadcast %133 : vector<8x1xf32> to vector<8x32xf32>
      %135 = arith.subf %125, %134 : vector<8x32xf32>
      %136 = arith.mulf %135, %135 : vector<8x32xf32>
      %cst_83 = arith.constant dense<0.000000e+00> : vector<8xf32>
      %137 = vector.multi_reduction <add>, %136, %cst_83 [1] : vector<8x32xf32> to vector<8xf32>
      %138 = vector.shape_cast %137 : vector<8xf32> to vector<8x1xf32>
      %cst_84 = arith.constant 3.200000e+01 : f32
      %139 = vector.broadcast %cst_84 : f32 to vector<8x1xf32>
      %140 = arith.divf %138, %139 : vector<8x1xf32>
      %141 = vector.broadcast %133 : vector<8x1xf32> to vector<8x32xf32>
      %142 = arith.subf %125, %141 : vector<8x32xf32>
      %cst_85 = arith.constant 9.99999996E-13 : f32
      %143 = vector.broadcast %cst_85 : f32 to vector<8x1xf32>
      %144 = arith.addf %140, %143 : vector<8x1xf32>
      %145 = math.rsqrt %144 : vector<8x1xf32>
      %146 = vector.broadcast %145 : vector<8x1xf32> to vector<8x32xf32>
      %147 = arith.mulf %142, %146 : vector<8x32xf32>
      %148 = vector.broadcast %127 : vector<1x32xf32> to vector<8x32xf32>
      %149 = arith.mulf %147, %148 : vector<8x32xf32>
      %150 = vector.broadcast %129 : vector<1x32xf32> to vector<8x32xf32>
      %151 = arith.addf %149, %150 : vector<8x32xf32>
      %152 = arith.truncf %151 : vector<8x32xf32> to vector<8x32xbf16>
      %c0_86 = arith.constant 0 : index
      %c0_87 = arith.constant 0 : index
      %c0_88 = arith.constant 0 : index
      %153 = vector.load %arg12[%c0_86, %c0_87, %c0_88] : memref<1x32x64xbf16, #tpu.memory_space<vmem>>, vector<1x32x64xbf16>
      %154 = vector.shape_cast %153 : vector<1x32x64xbf16> to vector<32x64xbf16>
      %cst_89 = arith.constant dense<0.000000e+00> : vector<8x64xf32>
      %155 = tpu.matmul %152, %154, %cst_89 {dimension_numbers = #tpu.dot_dimension_numbers<[1], [0], [0], [1], [0, 0, 1, 1], [], []>} : vector<8x32xbf16>, vector<32x64xbf16>, vector<8x64xf32> -> vector<8x64xf32>
      %c0_90 = arith.constant 0 : index
      %c0_91 = arith.constant 0 : index
      %c0_92 = arith.constant 0 : index
      %156 = vector.load %arg13[%c0_90, %c0_91, %c0_92] : memref<1x1x64xf32, #tpu.memory_space<vmem>>, vector<1x1x64xf32>
      %157 = vector.shape_cast %156 : vector<1x1x64xf32> to vector<1x64xf32>
      %158 = vector.broadcast %157 : vector<1x64xf32> to vector<8x64xf32>
      %159 = arith.addf %155, %158 : vector<8x64xf32>
      %160 = arith.mulf %159, %159 : vector<8x64xf32>
      %161 = arith.mulf %159, %160 : vector<8x64xf32>
      %cst_93 = arith.constant 4.471500e-02 : f32
      %162 = vector.broadcast %cst_93 : f32 to vector<8x64xf32>
      %163 = arith.mulf %162, %161 : vector<8x64xf32>
      %164 = arith.addf %159, %163 : vector<8x64xf32>
      %cst_94 = arith.constant 0.797884583 : f32
      %165 = vector.broadcast %cst_94 : f32 to vector<8x64xf32>
      %166 = arith.mulf %165, %164 : vector<8x64xf32>
      %167 = math.tanh %166 : vector<8x64xf32>
      %cst_95 = arith.constant 1.000000e+00 : f32
      %168 = vector.broadcast %cst_95 : f32 to vector<8x64xf32>
      %169 = arith.addf %168, %167 : vector<8x64xf32>
      %cst_96 = arith.constant 5.000000e-01 : f32
      %170 = vector.broadcast %cst_96 : f32 to vector<8x64xf32>
      %171 = arith.mulf %170, %169 : vector<8x64xf32>
      %172 = arith.mulf %159, %171 : vector<8x64xf32>
      %173 = arith.truncf %172 : vector<8x64xf32> to vector<8x64xbf16>
      %c0_97 = arith.constant 0 : index
      %c0_98 = arith.constant 0 : index
      %c0_99 = arith.constant 0 : index
      %174 = vector.load %arg14[%c0_97, %c0_98, %c0_99] : memref<1x64x32xbf16, #tpu.memory_space<vmem>>, vector<1x64x32xbf16>
      %175 = vector.shape_cast %174 : vector<1x64x32xbf16> to vector<64x32xbf16>
      %cst_100 = arith.constant dense<0.000000e+00> : vector<8x32xf32>
      %176 = tpu.matmul %173, %175, %cst_100 {dimension_numbers = #tpu.dot_dimension_numbers<[1], [0], [0], [1], [0, 0, 1, 1], [], []>} : vector<8x64xbf16>, vector<64x32xbf16>, vector<8x32xf32> -> vector<8x32xf32>
      %c0_101 = arith.constant 0 : index
      %c0_102 = arith.constant 0 : index
      %c0_103 = arith.constant 0 : index
      %177 = vector.load %arg15[%c0_101, %c0_102, %c0_103] : memref<1x1x32xf32, #tpu.memory_space<vmem>>, vector<1x1x32xf32>
      %178 = vector.shape_cast %177 : vector<1x1x32xf32> to vector<1x32xf32>
      %179 = vector.broadcast %178 : vector<1x32xf32> to vector<8x32xf32>
      %180 = arith.addf %176, %179 : vector<8x32xf32>
      %181 = arith.addf %151, %180 : vector<8x32xf32>
      %c0_104 = arith.constant 0 : index
      %c0_105 = arith.constant 0 : index
      %c0_106 = arith.constant 0 : index
      %182 = vector.load %arg16[%c0_104, %c0_105, %c0_106] : memref<1x1x32xf32, #tpu.memory_space<vmem>>, vector<1x1x32xf32>
      %183 = vector.shape_cast %182 : vector<1x1x32xf32> to vector<1x32xf32>
      %c0_107 = arith.constant 0 : index
      %c0_108 = arith.constant 0 : index
      %c0_109 = arith.constant 0 : index
      %184 = vector.load %arg17[%c0_107, %c0_108, %c0_109] : memref<1x1x32xf32, #tpu.memory_space<vmem>>, vector<1x1x32xf32>
      %185 = vector.shape_cast %184 : vector<1x1x32xf32> to vector<1x32xf32>
      %cst_110 = arith.constant dense<0.000000e+00> : vector<8xf32>
      %186 = vector.multi_reduction <add>, %181, %cst_110 [1] : vector<8x32xf32> to vector<8xf32>
      %187 = vector.shape_cast %186 : vector<8xf32> to vector<8x1xf32>
      %cst_111 = arith.constant 3.200000e+01 : f32
      %188 = vector.broadcast %cst_111 : f32 to vector<8x1xf32>
      %189 = arith.divf %187, %188 : vector<8x1xf32>
      %190 = vector.broadcast %189 : vector<8x1xf32> to vector<8x32xf32>
      %191 = arith.subf %181, %190 : vector<8x32xf32>
      %192 = arith.mulf %191, %191 : vector<8x32xf32>
      %cst_112 = arith.constant dense<0.000000e+00> : vector<8xf32>
      %193 = vector.multi_reduction <add>, %192, %cst_112 [1] : vector<8x32xf32> to vector<8xf32>
      %194 = vector.shape_cast %193 : vector<8xf32> to vector<8x1xf32>
      %cst_113 = arith.constant 3.200000e+01 : f32
      %195 = vector.broadcast %cst_113 : f32 to vector<8x1xf32>
      %196 = arith.divf %194, %195 : vector<8x1xf32>
      %197 = vector.broadcast %189 : vector<8x1xf32> to vector<8x32xf32>
      %198 = arith.subf %181, %197 : vector<8x32xf32>
      %cst_114 = arith.constant 9.99999996E-13 : f32
      %199 = vector.broadcast %cst_114 : f32 to vector<8x1xf32>
      %200 = arith.addf %196, %199 : vector<8x1xf32>
      %201 = math.rsqrt %200 : vector<8x1xf32>
      %202 = vector.broadcast %201 : vector<8x1xf32> to vector<8x32xf32>
      %203 = arith.mulf %198, %202 : vector<8x32xf32>
      %204 = vector.broadcast %183 : vector<1x32xf32> to vector<8x32xf32>
      %205 = arith.mulf %203, %204 : vector<8x32xf32>
      %206 = vector.broadcast %185 : vector<1x32xf32> to vector<8x32xf32>
      %207 = arith.addf %205, %206 : vector<8x32xf32>
      %c0_115 = arith.constant 0 : index
      %c0_116 = arith.constant 0 : index
      %208 = vector.load %arg19[%c0_115, %c0_116] : memref<8x32xf32, #tpu.memory_space<vmem>>, vector<8x32xf32>
      tpu.vector_store %arg19[%c0_115, %c0_116], %207 {strides = array<i32>} : memref<8x32xf32, #tpu.memory_space<vmem>>, vector<8x32xf32>,
    } else {
    }
    %c1_i32_48 = arith.constant 1 : i32
    %79 = arith.cmpi eq, %arg1, %c1_i32_48 : i32
    %80 = arith.extui %79 : i1 to i32
    %c0_i32_49 = arith.constant 0 : i32
    %81 = arith.cmpi ne, %80, %c0_i32_49 : i32
    scf.if %81 {
      %82 = vector.extract_strided_slice %3 {offsets = [0, 0], sizes = [1, 32], strides = [1, 1]} : vector<8x32xf32> to vector<1x32xf32>
      %c0_50 = arith.constant 0 : index
      %c0_51 = arith.constant 0 : index
      %c0_52 = arith.constant 0 : index
      %83 = vector.load %arg21[%c0_50, %c0_51, %c0_52] : memref<4x8x8xbf16, #tpu.memory_space<vmem>>, vector<4x1x8xbf16>
      %c0_53 = arith.constant 0 : index
      %c0_54 = arith.constant 0 : index
      %c0_55 = arith.constant 0 : index
      %84 = vector.load %arg22[%c0_53, %c0_54, %c0_55] : memref<4x8x8xbf16, #tpu.memory_space<vmem>>, vector<4x8x8xbf16>
      %c0_56 = arith.constant 0 : index
      %c0_57 = arith.constant 0 : index
      %c0_58 = arith.constant 0 : index
      %85 = vector.load %arg23[%c0_56, %c0_57, %c0_58] : memref<4x8x8xbf16, #tpu.memory_space<vmem>>, vector<4x8x8xbf16>
      "tpu.trace_start"() <{level = 10 : i32, message = "hqd,hkd->hqk"}> : () -> ()
      %cst_59 = arith.constant dense<0.000000e+00> : vector<4x1x8xf32>
      %86 = tpu.matmul %83, %84, %cst_59 {dimension_numbers = #tpu.dot_dimension_numbers<[2], [2], [1], [1], [0, 0, 0, 1, 1, 1], [0], [0]>} : vector<4x1x8xbf16>, vector<4x8x8xbf16>, vector<4x1x8xf32> -> vector<4x1x8xf32>
      "tpu.trace_stop"() : () -> ()
      %cst_60 = arith.constant 0.353553385 : f32
      %87 = vector.broadcast %cst_60 : f32 to vector<4x1x8xf32>
      %88 = arith.mulf %86, %87 : vector<4x1x8xf32>
      %89 = vector.shape_cast %73 : vector<1x8xf32> to vector<1x1x8xf32>
      %90 = vector.broadcast %89 : vector<1x1x8xf32> to vector<4x1x8xf32>
      %91 = arith.addf %88, %90 : vector<4x1x8xf32>
      %cst_61 = arith.constant dense<0xFF800000> : vector<4x1xf32>
      %92 = vector.multi_reduction <maximumf>, %91, %cst_61 [2] : vector<4x1x8xf32> to vector<4x1xf32>
      %93 = vector.shape_cast %92 : vector<4x1xf32> to vector<4x1x1xf32>
      %94 = vector.broadcast %93 : vector<4x1x1xf32> to vector<4x1x8xf32>
      %95 = arith.subf %91, %94 : vector<4x1x8xf32>
      %96 = math.exp %95 : vector<4x1x8xf32>
      %cst_62 = arith.constant dense<0.000000e+00> : vector<4x1xf32>
      %97 = vector.multi_reduction <add>, %96, %cst_62 [2] : vector<4x1x8xf32> to vector<4x1xf32>
      %98 = vector.shape_cast %97 : vector<4x1xf32> to vector<4x1x1xf32>
      %99 = tpu.reciprocal %98 {approx = true} : vector<4x1x1xf32> -> vector<4x1x1xf32>
      %100 = vector.broadcast %99 : vector<4x1x1xf32> to vector<4x1x8xf32>
      %101 = arith.mulf %96, %100 : vector<4x1x8xf32>
      %102 = arith.truncf %101 : vector<4x1x8xf32> to vector<4x1x8xbf16>
      "tpu.trace_start"() <{level = 10 : i32, message = "hqk,hkd->hqd"}> : () -> ()
      %cst_63 = arith.constant dense<0.000000e+00> : vector<4x1x8xf32>
      %103 = tpu.matmul %102, %85, %cst_63 {dimension_numbers = #tpu.dot_dimension_numbers<[2], [1], [1], [2], [0, 0, 0, 1, 1, 2], [0], [0]>} : vector<4x1x8xbf16>, vector<4x8x8xbf16>, vector<4x1x8xf32> -> vector<4x1x8xf32>
      "tpu.trace_stop"() : () -> ()
      %104 = vector.extract_strided_slice %103 {offsets = [0, 0, 0], sizes = [1, 1, 8], strides = [1, 1, 1]} : vector<4x1x8xf32> to vector<1x1x8xf32>
      %105 = vector.shape_cast %104 : vector<1x1x8xf32> to vector<1x8xf32>
      %106 = arith.truncf %105 : vector<1x8xf32> to vector<1x8xbf16>
      %c0_64 = arith.constant 0 : index
      %c0_65 = arith.constant 0 : index
      %107 = vector.load %arg20[%c0_64, %c0_65] : memref<8x32xbf16, #tpu.memory_space<vmem>>, vector<1x8xbf16>
      tpu.vector_store %arg20[%c0_64, %c0_65], %106 {strides = array<i32>} : memref<8x32xbf16, #tpu.memory_space<vmem>>, vector<1x8xbf16>,
      %108 = vector.extract_strided_slice %103 {offsets = [1, 0, 0], sizes = [1, 1, 8], strides = [1, 1, 1]} : vector<4x1x8xf32> to vector<1x1x8xf32>
      %109 = vector.shape_cast %108 : vector<1x1x8xf32> to vector<1x8xf32>
      %110 = arith.truncf %109 : vector<1x8xf32> to vector<1x8xbf16>
      %c0_66 = arith.constant 0 : index
      %c8 = arith.constant 8 : index
      %111 = vector.load %arg20[%c0_66, %c8] : memref<8x32xbf16, #tpu.memory_space<vmem>>, vector<1x8xbf16>
      tpu.vector_store %arg20[%c0_66, %c8], %110 {strides = array<i32>} : memref<8x32xbf16, #tpu.memory_space<vmem>>, vector<1x8xbf16>,
      %112 = vector.extract_strided_slice %103 {offsets = [2, 0, 0], sizes = [1, 1, 8], strides = [1, 1, 1]} : vector<4x1x8xf32> to vector<1x1x8xf32>
      %113 = vector.shape_cast %112 : vector<1x1x8xf32> to vector<1x8xf32>
      %114 = arith.truncf %113 : vector<1x8xf32> to vector<1x8xbf16>
      %c0_67 = arith.constant 0 : index
      %c16 = arith.constant 16 : index
      %115 = vector.load %arg20[%c0_67, %c16] : memref<8x32xbf16, #tpu.memory_space<vmem>>, vector<1x8xbf16>
      tpu.vector_store %arg20[%c0_67, %c16], %114 {strides = array<i32>} : memref<8x32xbf16, #tpu.memory_space<vmem>>, vector<1x8xbf16>,
      %116 = vector.extract_strided_slice %103 {offsets = [3, 0, 0], sizes = [1, 1, 8], strides = [1, 1, 1]} : vector<4x1x8xf32> to vector<1x1x8xf32>
      %117 = vector.shape_cast %116 : vector<1x1x8xf32> to vector<1x8xf32>
      %118 = arith.truncf %117 : vector<1x8xf32> to vector<1x8xbf16>
      %c0_68 = arith.constant 0 : index
      %c24 = arith.constant 24 : index
      %119 = vector.load %arg20[%c0_68, %c24] : memref<8x32xbf16, #tpu.memory_space<vmem>>, vector<1x8xbf16>
      tpu.vector_store %arg20[%c0_68, %c24], %118 {strides = array<i32>} : memref<8x32xbf16, #tpu.memory_space<vmem>>, vector<1x8xbf16>,
      %c0_69 = arith.constant 0 : index
      %c0_70 = arith.constant 0 : index
      %120 = vector.load %arg20[%c0_69, %c0_70] : memref<8x32xbf16, #tpu.memory_space<vmem>>, vector<1x32xbf16>
      %cst_71 = arith.constant dense<0.000000e+00> : vector<1x32xf32>
      %121 = tpu.matmul %120, %75, %cst_71 {dimension_numbers = #tpu.dot_dimension_numbers<[1], [0], [0], [1], [0, 0, 1, 1], [], []>} : vector<1x32xbf16>, vector<32x32xbf16>, vector<1x32xf32> -> vector<1x32xf32>
      %c0_72 = arith.constant 0 : index
      %c0_73 = arith.constant 0 : index
      %c0_74 = arith.constant 0 : index
      %122 = vector.load %arg9[%c0_72, %c0_73, %c0_74] : memref<1x1x32xf32, #tpu.memory_space<vmem>>, vector<1x1x32xf32>
      %123 = vector.shape_cast %122 : vector<1x1x32xf32> to vector<1x32xf32>
      %124 = arith.addf %121, %123 : vector<1x32xf32>
      %125 = arith.addf %82, %124 : vector<1x32xf32>
      %c0_75 = arith.constant 0 : index
      %c0_76 = arith.constant 0 : index
      %c0_77 = arith.constant 0 : index
      %126 = vector.load %arg10[%c0_75, %c0_76, %c0_77] : memref<1x1x32xf32, #tpu.memory_space<vmem>>, vector<1x1x32xf32>
      %127 = vector.shape_cast %126 : vector<1x1x32xf32> to vector<1x32xf32>
      %c0_78 = arith.constant 0 : index
      %c0_79 = arith.constant 0 : index
      %c0_80 = arith.constant 0 : index
      %128 = vector.load %arg11[%c0_78, %c0_79, %c0_80] : memref<1x1x32xf32, #tpu.memory_space<vmem>>, vector<1x1x32xf32>
      %129 = vector.shape_cast %128 : vector<1x1x32xf32> to vector<1x32xf32>
      %cst_81 = arith.constant dense<0.000000e+00> : vector<1xf32>
      %130 = vector.multi_reduction <add>, %125, %cst_81 [1] : vector<1x32xf32> to vector<1xf32>
      %131 = vector.shape_cast %130 : vector<1xf32> to vector<1x1xf32>
      %cst_82 = arith.constant 3.200000e+01 : f32
      %132 = vector.broadcast %cst_82 : f32 to vector<1x1xf32>
      %133 = arith.divf %131, %132 : vector<1x1xf32>
      %134 = vector.broadcast %133 : vector<1x1xf32> to vector<1x32xf32>
      %135 = arith.subf %125, %134 : vector<1x32xf32>
      %136 = arith.mulf %135, %135 : vector<1x32xf32>
      %cst_83 = arith.constant dense<0.000000e+00> : vector<1xf32>
      %137 = vector.multi_reduction <add>, %136, %cst_83 [1] : vector<1x32xf32> to vector<1xf32>
      %138 = vector.shape_cast %137 : vector<1xf32> to vector<1x1xf32>
      %cst_84 = arith.constant 3.200000e+01 : f32
      %139 = vector.broadcast %cst_84 : f32 to vector<1x1xf32>
      %140 = arith.divf %138, %139 : vector<1x1xf32>
      %141 = vector.broadcast %133 : vector<1x1xf32> to vector<1x32xf32>
      %142 = arith.subf %125, %141 : vector<1x32xf32>
      %cst_85 = arith.constant 9.99999996E-13 : f32
      %143 = vector.broadcast %cst_85 : f32 to vector<1x1xf32>
      %144 = arith.addf %140, %143 : vector<1x1xf32>
      %145 = math.rsqrt %144 : vector<1x1xf32>
      %146 = vector.broadcast %145 : vector<1x1xf32> to vector<1x32xf32>
      %147 = arith.mulf %142, %146 : vector<1x32xf32>
      %148 = arith.mulf %147, %127 : vector<1x32xf32>
      %149 = arith.addf %148, %129 : vector<1x32xf32>
      %150 = arith.truncf %149 : vector<1x32xf32> to vector<1x32xbf16>
      %c0_86 = arith.constant 0 : index
      %c0_87 = arith.constant 0 : index
      %c0_88 = arith.constant 0 : index
      %151 = vector.load %arg12[%c0_86, %c0_87, %c0_88] : memref<1x32x64xbf16, #tpu.memory_space<vmem>>, vector<1x32x64xbf16>
      %152 = vector.shape_cast %151 : vector<1x32x64xbf16> to vector<32x64xbf16>
      %cst_89 = arith.constant dense<0.000000e+00> : vector<1x64xf32>
      %153 = tpu.matmul %150, %152, %cst_89 {dimension_numbers = #tpu.dot_dimension_numbers<[1], [0], [0], [1], [0, 0, 1, 1], [], []>} : vector<1x32xbf16>, vector<32x64xbf16>, vector<1x64xf32> -> vector<1x64xf32>
      %c0_90 = arith.constant 0 : index
      %c0_91 = arith.constant 0 : index
      %c0_92 = arith.constant 0 : index
      %154 = vector.load %arg13[%c0_90, %c0_91, %c0_92] : memref<1x1x64xf32, #tpu.memory_space<vmem>>, vector<1x1x64xf32>
      %155 = vector.shape_cast %154 : vector<1x1x64xf32> to vector<1x64xf32>
      %156 = arith.addf %153, %155 : vector<1x64xf32>
      %157 = arith.mulf %156, %156 : vector<1x64xf32>
      %158 = arith.mulf %156, %157 : vector<1x64xf32>
      %cst_93 = arith.constant 4.471500e-02 : f32
      %159 = vector.broadcast %cst_93 : f32 to vector<1x64xf32>
      %160 = arith.mulf %159, %158 : vector<1x64xf32>
      %161 = arith.addf %156, %160 : vector<1x64xf32>
      %cst_94 = arith.constant 0.797884583 : f32
      %162 = vector.broadcast %cst_94 : f32 to vector<1x64xf32>
      %163 = arith.mulf %162, %161 : vector<1x64xf32>
      %164 = math.tanh %163 : vector<1x64xf32>
      %cst_95 = arith.constant 1.000000e+00 : f32
      %165 = vector.broadcast %cst_95 : f32 to vector<1x64xf32>
      %166 = arith.addf %165, %164 : vector<1x64xf32>
      %cst_96 = arith.constant 5.000000e-01 : f32
      %167 = vector.broadcast %cst_96 : f32 to vector<1x64xf32>
      %168 = arith.mulf %167, %166 : vector<1x64xf32>
      %169 = arith.mulf %156, %168 : vector<1x64xf32>
      %170 = arith.truncf %169 : vector<1x64xf32> to vector<1x64xbf16>
      %c0_97 = arith.constant 0 : index
      %c0_98 = arith.constant 0 : index
      %c0_99 = arith.constant 0 : index
      %171 = vector.load %arg14[%c0_97, %c0_98, %c0_99] : memref<1x64x32xbf16, #tpu.memory_space<vmem>>, vector<1x64x32xbf16>
      %172 = vector.shape_cast %171 : vector<1x64x32xbf16> to vector<64x32xbf16>
      %cst_100 = arith.constant dense<0.000000e+00> : vector<1x32xf32>
      %173 = tpu.matmul %170, %172, %cst_100 {dimension_numbers = #tpu.dot_dimension_numbers<[1], [0], [0], [1], [0, 0, 1, 1], [], []>} : vector<1x64xbf16>, vector<64x32xbf16>, vector<1x32xf32> -> vector<1x32xf32>
      %c0_101 = arith.constant 0 : index
      %c0_102 = arith.constant 0 : index
      %c0_103 = arith.constant 0 : index
      %174 = vector.load %arg15[%c0_101, %c0_102, %c0_103] : memref<1x1x32xf32, #tpu.memory_space<vmem>>, vector<1x1x32xf32>
      %175 = vector.shape_cast %174 : vector<1x1x32xf32> to vector<1x32xf32>
      %176 = arith.addf %173, %175 : vector<1x32xf32>
      %177 = arith.addf %149, %176 : vector<1x32xf32>
      %c0_104 = arith.constant 0 : index
      %c0_105 = arith.constant 0 : index
      %c0_106 = arith.constant 0 : index
      %178 = vector.load %arg16[%c0_104, %c0_105, %c0_106] : memref<1x1x32xf32, #tpu.memory_space<vmem>>, vector<1x1x32xf32>
      %179 = vector.shape_cast %178 : vector<1x1x32xf32> to vector<1x32xf32>
      %c0_107 = arith.constant 0 : index
      %c0_108 = arith.constant 0 : index
      %c0_109 = arith.constant 0 : index
      %180 = vector.load %arg17[%c0_107, %c0_108, %c0_109] : memref<1x1x32xf32, #tpu.memory_space<vmem>>, vector<1x1x32xf32>
      %181 = vector.shape_cast %180 : vector<1x1x32xf32> to vector<1x32xf32>
      %cst_110 = arith.constant dense<0.000000e+00> : vector<1xf32>
      %182 = vector.multi_reduction <add>, %177, %cst_110 [1] : vector<1x32xf32> to vector<1xf32>
      %183 = vector.shape_cast %182 : vector<1xf32> to vector<1x1xf32>
      %cst_111 = arith.constant 3.200000e+01 : f32
      %184 = vector.broadcast %cst_111 : f32 to vector<1x1xf32>
      %185 = arith.divf %183, %184 : vector<1x1xf32>
      %186 = vector.broadcast %185 : vector<1x1xf32> to vector<1x32xf32>
      %187 = arith.subf %177, %186 : vector<1x32xf32>
      %188 = arith.mulf %187, %187 : vector<1x32xf32>
      %cst_112 = arith.constant dense<0.000000e+00> : vector<1xf32>
      %189 = vector.multi_reduction <add>, %188, %cst_112 [1] : vector<1x32xf32> to vector<1xf32>
      %190 = vector.shape_cast %189 : vector<1xf32> to vector<1x1xf32>
      %cst_113 = arith.constant 3.200000e+01 : f32
      %191 = vector.broadcast %cst_113 : f32 to vector<1x1xf32>
      %192 = arith.divf %190, %191 : vector<1x1xf32>
      %193 = vector.broadcast %185 : vector<1x1xf32> to vector<1x32xf32>
      %194 = arith.subf %177, %193 : vector<1x32xf32>
      %cst_114 = arith.constant 9.99999996E-13 : f32
      %195 = vector.broadcast %cst_114 : f32 to vector<1x1xf32>
      %196 = arith.addf %192, %195 : vector<1x1xf32>
      %197 = math.rsqrt %196 : vector<1x1xf32>
      %198 = vector.broadcast %197 : vector<1x1xf32> to vector<1x32xf32>
      %199 = arith.mulf %194, %198 : vector<1x32xf32>
      %200 = arith.mulf %199, %179 : vector<1x32xf32>
      %201 = arith.addf %200, %181 : vector<1x32xf32>
      %c0_115 = arith.constant 0 : index
      %c0_116 = arith.constant 0 : index
      %c0_117 = arith.constant 0 : index
      %202 = vector.load %arg18[%c0_115, %c0_116, %c0_117] : memref<1x1x32xf32, #tpu.memory_space<vmem>>, vector<1x1x32xf32>
      %203 = vector.shape_cast %202 : vector<1x1x32xf32> to vector<1x32xf32>
      %204 = vector.shape_cast %201 : vector<1x32xf32> to vector<1x1x32xf32>
      tpu.vector_store %arg18[%c0_115, %c0_116, %c0_117], %204 {strides = array<i32>} : memref<1x1x32xf32, #tpu.memory_space<vmem>>, vector<1x1x32xf32>,
    } else {
    }
    return
  }
  func.func @transform_0(%arg0: i32, %arg1: i32) -> (i32, i32, i32) {
    %c0_i32 = arith.constant 0 : i32
    %c0_i32_0 = arith.constant 0 : i32
    %c0_i32_1 = arith.constant 0 : i32
    return %arg0, %c0_i32, %c0_i32_0 : i32, i32, i32
  }
  func.func @transform_1(%arg0: i32, %arg1: i32) -> (i32, i32, i32) {
    %c0_i32 = arith.constant 0 : i32
    %c0_i32_0 = arith.constant 0 : i32
    %c0_i32_1 = arith.constant 0 : i32
    return %arg0, %c0_i32, %c0_i32_0 : i32, i32, i32
  }
  func.func @transform_2(%arg0: i32, %arg1: i32) -> (i32, i32) {
    %c0_i32 = arith.constant 0 : i32
    %c0_i32_0 = arith.constant 0 : i32
    %c0_i32_1 = arith.constant 0 : i32
    return %c0_i32, %c0_i32_0 : i32, i32
  }
  func.func @transform_3(%arg0: i32, %arg1: i32) -> (i32, i32) {
    %c0_i32 = arith.constant 0 : i32
    %c0_i32_0 = arith.constant 0 : i32
    %c0_i32_1 = arith.constant 0 : i32
    return %c0_i32, %c0_i32_0 : i32, i32
  }
  func.func @transform_4(%arg0: i32, %arg1: i32) -> (i32, i32, i32) {
    %c0_i32 = arith.constant 0 : i32
    %c0_i32_0 = arith.constant 0 : i32
    %c0_i32_1 = arith.constant 0 : i32
    return %arg1, %c0_i32, %c0_i32_0 : i32, i32, i32
  }
  func.func @transform_5(%arg0: i32, %arg1: i32) -> (i32, i32, i32) {
    %c0_i32 = arith.constant 0 : i32
    %c0_i32_0 = arith.constant 0 : i32
    %c0_i32_1 = arith.constant 0 : i32
    return %arg1, %c0_i32, %c0_i32_0 : i32, i32, i32
  }
  func.func @transform_6(%arg0: i32, %arg1: i32) -> (i32, i32, i32) {
    %c0_i32 = arith.constant 0 : i32
    %c0_i32_0 = arith.constant 0 : i32
    %c0_i32_1 = arith.constant 0 : i32
    return %arg1, %c0_i32, %c0_i32_0 : i32, i32, i32
  }
  func.func @transform_7(%arg0: i32, %arg1: i32) -> (i32, i32, i32) {
    %c0_i32 = arith.constant 0 : i32
    %c0_i32_0 = arith.constant 0 : i32
    %c0_i32_1 = arith.constant 0 : i32
    return %arg1, %c0_i32, %c0_i32_0 : i32, i32, i32
  }
  func.func @transform_8(%arg0: i32, %arg1: i32) -> (i32, i32, i32) {
    %c0_i32 = arith.constant 0 : i32
    %c0_i32_0 = arith.constant 0 : i32
    %c0_i32_1 = arith.constant 0 : i32
    return %arg1, %c0_i32, %c0_i32_0 : i32, i32, i32
  }
  func.func @transform_9(%arg0: i32, %arg1: i32) -> (i32, i32, i32) {
    %c0_i32 = arith.constant 0 : i32
    %c0_i32_0 = arith.constant 0 : i32
    %c0_i32_1 = arith.constant 0 : i32
    return %arg1, %c0_i32, %c0_i32_0 : i32, i32, i32
  }
  func.func @transform_10(%arg0: i32, %arg1: i32) -> (i32, i32, i32) {
    %c0_i32 = arith.constant 0 : i32
    %c0_i32_0 = arith.constant 0 : i32
    %c0_i32_1 = arith.constant 0 : i32
    return %arg1, %c0_i32, %c0_i32_0 : i32, i32, i32
  }
  func.func @transform_11(%arg0: i32, %arg1: i32) -> (i32, i32, i32) {
    %c0_i32 = arith.constant 0 : i32
    %c0_i32_0 = arith.constant 0 : i32
    %c0_i32_1 = arith.constant 0 : i32
    return %arg1, %c0_i32, %c0_i32_0 : i32, i32, i32
  }
  func.func @transform_12(%arg0: i32, %arg1: i32) -> (i32, i32, i32) {
    %c0_i32 = arith.constant 0 : i32
    %c0_i32_0 = arith.constant 0 : i32
    %c0_i32_1 = arith.constant 0 : i32
    return %arg1, %c0_i32, %c0_i32_0 : i32, i32, i32
  }
  func.func @transform_13(%arg0: i32, %arg1: i32) -> (i32, i32, i32) {
    %c0_i32 = arith.constant 0 : i32
    %c0_i32_0 = arith.constant 0 : i32
    %c0_i32_1 = arith.constant 0 : i32
    return %arg1, %c0_i32, %c0_i32_0 : i32, i32, i32
  }
  func.func @transform_14(%arg0: i32, %arg1: i32) -> (i32, i32, i32) {
    %c0_i32 = arith.constant 0 : i32
    %c0_i32_0 = arith.constant 0 : i32
    %c0_i32_1 = arith.constant 0 : i32
    return %arg1, %c0_i32, %c0_i32_0 : i32, i32, i32
  }
  func.func @transform_15(%arg0: i32, %arg1: i32) -> (i32, i32, i32) {
    %c0_i32 = arith.constant 0 : i32
    %c0_i32_0 = arith.constant 0 : i32
    %c0_i32_1 = arith.constant 0 : i32
    return %arg1, %c0_i32, %c0_i32_0 : i32, i32, i32
  }
  func.func @transform_16(%arg0: i32, %arg1: i32) -> (i32, i32, i32) {
    %c0_i32 = arith.constant 0 : i32
    %c0_i32_0 = arith.constant 0 : i32
    %c0_i32_1 = arith.constant 0 : i32
    return %arg0, %c0_i32, %c0_i32_0 : i32, i32, i32
  }
}

</mosaic_0001>

<llo_original>
// kernel: tpu_custom_call.1
$region0: #{tpu_custom_call.1}
  #allocation0 [shape = 'u32[]', space=smem, size = 0x4, offset = 0x4, fixed_abs, tag = 'smem constant byte address 0x4 - core index']
  #allocation1 [shape = 'u32[144,128]{1,0:T(1,128)}', space=vmem, size = 0x12000, scoped, tag = 'internal scratch']
  #allocation2 [shape = 'f32[8,32]{1,0:T(8,128)}', space=vmem, size = 0x1000, scoped, tag = 'scratch operand']
  #allocation3 [shape = 'bf16[8,32]{1,0:T(8,128)(2,1)}', space=vmem, size = 0x800, scoped, tag = 'scratch operand']
  #allocation4 [shape = 'bf16[4,8,8]{2,1,0:T(8,128)(2,1)}', space=vmem, size = 0x2000, scoped, tag = 'scratch operand']
  #allocation5 [shape = 'bf16[4,8,8]{2,1,0:T(8,128)(2,1)}', space=vmem, size = 0x2000, scoped, tag = 'scratch operand']
  #allocation6 [shape = 'bf16[4,8,8]{2,1,0:T(8,128)(2,1)}', space=vmem, size = 0x2000, scoped, tag = 'scratch operand']
  %s0 = inlined_call_operand.hbm [shape: f32[2,8,32], index: 0, kind: input, shape index: {}]
  %s1 = inlined_call_operand.vmem [shape: f32[2,1,8], index: 1, kind: input, shape index: {}]
  %s2 = inlined_call_operand.vmem [shape: f32[1,32], index: 2, kind: input, shape index: {}]
  %s3 = inlined_call_operand.hbm [shape: f32[1,32], index: 3, kind: input, shape index: {}]
  %s4 = inlined_call_operand.vmem [shape: bf16[2,32,96], index: 4, kind: input, shape index: {}]
  %s5 = inlined_call_operand.vmem [shape: f32[2,1,96], index: 5, kind: input, shape index: {}]
  %s6 = inlined_call_operand.vmem [shape: bf16[2,32,32], index: 6, kind: input, shape index: {}]
  %s7 = inlined_call_operand.vmem [shape: f32[2,1,32], index: 7, kind: input, shape index: {}]
  %s8 = inlined_call_operand.vmem [shape: f32[2,1,32], index: 8, kind: input, shape index: {}]
  %s9 = inlined_call_operand.vmem [shape: f32[2,1,32], index: 9, kind: input, shape index: {}]
  %s10 = inlined_call_operand.vmem [shape: bf16[2,32,64], index: 10, kind: input, shape index: {}]
  %s11 = inlined_call_operand.vmem [shape: f32[2,1,64], index: 11, kind: input, shape index: {}]
  %s12 = inlined_call_operand.vmem [shape: bf16[2,64,32], index: 12, kind: input, shape index: {}]
  %s13 = inlined_call_operand.vmem [shape: f32[2,1,32], index: 13, kind: input, shape index: {}]
  %s14 = inlined_call_operand.vmem [shape: f32[2,1,32], index: 14, kind: input, shape index: {}]
  %s15 = inlined_call_operand.vmem [shape: f32[2,1,32], index: 15, kind: input, shape index: {}]
  %s16 = inlined_call_operand.hbm [shape: f32[2,1,32], index: 16, kind: output, shape index: {}]
  %s17 = sld [smem:[#allocation0]]
  $region117: #{tpu_custom_call.1} parent=0
    _
  %s19 = ssub.s32 1, %s17
  %s20 = scalar_select 0, %s19, %s17
  $region1: #{tpu_custom_call.1} parent=0
    #allocation7 [shape = 'u8[8192]{0}', space=vmem, size = 0x2000, scoped, tag = 'input window, operand 0']
    #allocation8 [shape = 's32[2]{0}', space=sflag, size = 0x8, scoped, tag = 'scoped memory for tpu_custom_call.1']
    #allocation9 [shape = 's32[2]{0}', space=sflag, size = 0x8, scoped, tag = 'scoped memory for tpu_custom_call.1']
    #allocation10 [shape = 'u8[512]{0}', space=vmem, size = 0x400, scoped, tag = 'input window, operand 3, single buffered']
    #allocation11 [shape = 's32[1]{0}', space=sflag, size = 0x4, scoped, tag = 'scoped memory for tpu_custom_call.1']
    #allocation12 [shape = 'u8[1024]{0}', space=vmem, size = 0x400, scoped, tag = 'output window, operand 0']
    %21 = vsyncpa [#allocation8], 0
    %s22 = scalar_lea.sflag [#allocation8], 1
    %23 = vsyncpa %s22, 0
    %24 = vsyncpa [#allocation11], 0
    %25 = vsyncpa [#allocation9], 0
    %s26 = scalar_lea.sflag [#allocation9], 1
    %27 = vsyncpa %s26, 0
    loop: start=0, step=1, limit=6
    $region2: #{tpu_custom_call.1} parent=1 // loop_pre_header
      _
    $region3: #{tpu_custom_call.1} parent=1 // loop_header
      %s29 = sphi 0, %s33
      %p30 = scmp.ge.s32.totalorder %s29, 6
      %s36 = sphi 0, %s48
      %s37 = sphi 0, %s44
      %s38 = sphi 0, %s36
      %s39 = sphi 0, %s37
      %s40 = sphi 0, %s38
      %s41 = sphi 0, %s39
      %s51 = sphi 0, %s53
      %s54 = sphi 0, %s51
      %s55 = sphi 0, %s54
      %s71 = sphi 0, %s55
      %s77 = sphi 0, %s79
      %s80 = sphi 0, %s77
      %s81 = sphi 0, %s80
      %s97 = sphi 0, %s81
      %s101 = sphi 0, %s101
      %s103 = sphi 0, %s101
      %s104 = sphi 0, %s103
      %s118 = sphi 0, %s104
      %s122 = sphi 0, %s122
      %s124 = sphi 0, %s122
      %s125 = sphi 0, %s124
      %s139 = sphi 0, %s125
      %s145 = sphi 0, %s147
      %s148 = sphi 0, %s145
      %s149 = sphi 0, %s148
      %s165 = sphi 0, %s149
      %s171 = sphi 0, %s173
      %s174 = sphi 0, %s171
      %s175 = sphi 0, %s174
      %s191 = sphi 0, %s175
      %s197 = sphi 0, %s199
      %s200 = sphi 0, %s197
      %s201 = sphi 0, %s200
      %s217 = sphi 0, %s201
      %s223 = sphi 0, %s225
      %s226 = sphi 0, %s223
      %s227 = sphi 0, %s226
      %s243 = sphi 0, %s227
      %s249 = sphi 0, %s251
      %s252 = sphi 0, %s249
      %s253 = sphi 0, %s252
      %s269 = sphi 0, %s253
      %s275 = sphi 0, %s277
      %s278 = sphi 0, %s275
      %s279 = sphi 0, %s278
      %s295 = sphi 0, %s279
      %s301 = sphi 0, %s303
      %s304 = sphi 0, %s301
      %s305 = sphi 0, %s304
      %s321 = sphi 0, %s305
      %s327 = sphi 0, %s329
      %s330 = sphi 0, %s327
      %s331 = sphi 0, %s330
      %s347 = sphi 0, %s331
      %s353 = sphi 0, %s355
      %s356 = sphi 0, %s353
      %s357 = sphi 0, %s356
      %s373 = sphi 0, %s357
      %s379 = sphi 0, %s381
      %s382 = sphi 0, %s379
      %s383 = sphi 0, %s382
      %s399 = sphi 0, %s383
      %s405 = sphi 0, %s407
      %s408 = sphi 0, %s405
      %s409 = sphi 0, %s408
      %s425 = sphi 0, %s409
      %s431 = sphi 0, %s433
      %s434 = sphi 0, %s431
      %s435 = sphi 0, %s434
      %s451 = sphi 0, %s435
      %s457 = sphi 0, %s459
      %s460 = sphi 0, %s457
      %s461 = sphi 0, %s460
      %s477 = sphi 0, %s461
    $region4: #{tpu_custom_call.1} parent=1 // loop_header_branch
      %32 = sbr.rel (%p30) target = $region8
    $region5: #{tpu_custom_call.1} parent=1 // loop_body
      %s34 = ssub.s32 %s29, 1
      %s35 = ssub.s32 %s29, 2
      %s42 = sadd.s32 1, %s37
      %p43 = scmp.ge.s32.totalorder %s42, 2
      %s44 = scalar_select %p43, 0, %s42
      %s45 = sadd.s32 1, %s36
      %s46 = scalar_select %p43, %s45, %s36
      %p47 = scmp.ge.s32.totalorder %s46, 2
      %s48 = scalar_select %p47, 0, %s46
      %s49 = ssub.s32 %s36, %s48
      %p50 = scmp.eq.s32.totalorder %s49, 0
      %s52 = sadd.s32 %s51, 1
      %s53 = scalar_select %p50, %s51, %s52
      %p56 = pneg %p50
      %p57 = scmp.eq.s32.totalorder %s29, 3
      %p58 = por %p56, %p57
      %p59 = scmp.ne.s32.totalorder %s51, %s54
      %p60 = scmp.eq.s32.totalorder %s29, 0
      %p61 = por %p59, %p60
      %p62 = scmp.ne.s32.totalorder %s51, %s54
      %p63 = scmp.eq.s32.totalorder %s34, 3
      %p64 = por %p62, %p63
      %p65 = scmp.ne.s32.totalorder %s54, %s55
      %p66 = scmp.eq.s32.totalorder %s34, 0
      %p67 = por %p65, %p66
      %p68 = scmp.ne.s32.totalorder %s54, %s55
      %p69 = scmp.eq.s32.totalorder %s35, 3
      %p70 = por %p68, %p69
      %p72 = scmp.ne.s32.totalorder %s55, %s71
      %p73 = scmp.eq.s32.totalorder %s35, 0
      %p74 = por %p72, %p73
      %s75 = ssub.s32 %s36, %s48
      %p76 = scmp.eq.s32.totalorder %s75, 0
      %s78 = sadd.s32 %s77, 1
      %s79 = scalar_select %p76, %s77, %s78
      %p82 = pneg %p76
      %p83 = scmp.eq.s32.totalorder %s29, 3
      %p84 = por %p82, %p83
      %p85 = scmp.ne.s32.totalorder %s77, %s80
      %p86 = scmp.eq.s32.totalorder %s29, 0
      %p87 = por %p85, %p86
      %p88 = scmp.ne.s32.totalorder %s77, %s80
      %p89 = scmp.eq.s32.totalorder %s34, 3
      %p90 = por %p88, %p89
      %p91 = scmp.ne.s32.totalorder %s80, %s81
      %p92 = scmp.eq.s32.totalorder %s34, 0
      %p93 = por %p91, %p92
      %p94 = scmp.ne.s32.totalorder %s80, %s81
      %p95 = scmp.eq.s32.totalorder %s35, 3
      %p96 = por %p94, %p95
      %p98 = scmp.ne.s32.totalorder %s81, %s97
      %p99 = scmp.eq.s32.totalorder %s35, 0
      %p100 = por %p98, %p99
      %s102 = sadd.s32 %s101, 1
      %p105 = scmp.eq.s32.totalorder %s29, 3
      %p106 = scmp.ne.s32.totalorder %s101, %s103
      %p107 = scmp.eq.s32.totalorder %s29, 0
      %p108 = por %p106, %p107
      %p109 = scmp.ne.s32.totalorder %s101, %s103
      %p110 = scmp.eq.s32.totalorder %s34, 3
      %p111 = por %p109, %p110
      %p112 = scmp.ne.s32.totalorder %s103, %s104
      %p113 = scmp.eq.s32.totalorder %s34, 0
      %p114 = por %p112, %p113
      %p115 = scmp.ne.s32.totalorder %s103, %s104
      %p116 = scmp.eq.s32.totalorder %s35, 3
      %p117 = por %p115, %p116
      %p119 = scmp.ne.s32.totalorder %s104, %s118
      %p120 = scmp.eq.s32.totalorder %s35, 0
      %p121 = por %p119, %p120
      %s123 = sadd.s32 %s122, 1
      %p126 = scmp.eq.s32.totalorder %s29, 3
      %p127 = scmp.ne.s32.totalorder %s122, %s124
      %p128 = scmp.eq.s32.totalorder %s29, 0
      %p129 = por %p127, %p128
      %p130 = scmp.ne.s32.totalorder %s122, %s124
      %p131 = scmp.eq.s32.totalorder %s34, 3
      %p132 = por %p130, %p131
      %p133 = scmp.ne.s32.totalorder %s124, %s125
      %p134 = scmp.eq.s32.totalorder %s34, 0
      %p135 = por %p133, %p134
      %p136 = scmp.ne.s32.totalorder %s124, %s125
      %p137 = scmp.eq.s32.totalorder %s35, 3
      %p138 = por %p136, %p137
      %p140 = scmp.ne.s32.totalorder %s125, %s139
      %p141 = scmp.eq.s32.totalorder %s35, 0
      %p142 = por %p140, %p141
      %s143 = ssub.s32 %s37, %s44
      %p144 = scmp.eq.s32.totalorder %s143, 0
      %s146 = sadd.s32 %s145, 1
      %s147 = scalar_select %p144, %s145, %s146
      %p150 = pneg %p144
      %p151 = scmp.eq.s32.totalorder %s29, 3
      %p152 = por %p150, %p151
      %p153 = scmp.ne.s32.totalorder %s145, %s148
      %p154 = scmp.eq.s32.totalorder %s29, 0
      %p155 = por %p153, %p154
      %p156 = scmp.ne.s32.totalorder %s145, %s148
      %p157 = scmp.eq.s32.totalorder %s34, 3
      %p158 = por %p156, %p157
      %p159 = scmp.ne.s32.totalorder %s148, %s149
      %p160 = scmp.eq.s32.totalorder %s34, 0
      %p161 = por %p159, %p160
      %p162 = scmp.ne.s32.totalorder %s148, %s149
      %p163 = scmp.eq.s32.totalorder %s35, 3
      %p164 = por %p162, %p163
      %p166 = scmp.ne.s32.totalorder %s149, %s165
      %p167 = scmp.eq.s32.totalorder %s35, 0
      %p168 = por %p166, %p167
      %s169 = ssub.s32 %s37, %s44
      %p170 = scmp.eq.s32.totalorder %s169, 0
      %s172 = sadd.s32 %s171, 1
      %s173 = scalar_select %p170, %s171, %s172
      %p176 = pneg %p170
      %p177 = scmp.eq.s32.totalorder %s29, 3
      %p178 = por %p176, %p177
      %p179 = scmp.ne.s32.totalorder %s171, %s174
      %p180 = scmp.eq.s32.totalorder %s29, 0
      %p181 = por %p179, %p180
      %p182 = scmp.ne.s32.totalorder %s171, %s174
      %p183 = scmp.eq.s32.totalorder %s34, 3
      %p184 = por %p182, %p183
      %p185 = scmp.ne.s32.totalorder %s174, %s175
      %p186 = scmp.eq.s32.totalorder %s34, 0
      %p187 = por %p185, %p186
      %p188 = scmp.ne.s32.totalorder %s174, %s175
      %p189 = scmp.eq.s32.totalorder %s35, 3
      %p190 = por %p188, %p189
      %p192 = scmp.ne.s32.totalorder %s175, %s191
      %p193 = scmp.eq.s32.totalorder %s35, 0
      %p194 = por %p192, %p193
      %s195 = ssub.s32 %s37, %s44
      %p196 = scmp.eq.s32.totalorder %s195, 0
      %s198 = sadd.s32 %s197, 1
      %s199 = scalar_select %p196, %s197, %s198
      %p202 = pneg %p196
      %p203 = scmp.eq.s32.totalorder %s29, 3
      %p204 = por %p202, %p203
      %p205 = scmp.ne.s32.totalorder %s197, %s200
      %p206 = scmp.eq.s32.totalorder %s29, 0
      %p207 = por %p205, %p206
      %p208 = scmp.ne.s32.totalorder %s197, %s200
      %p209 = scmp.eq.s32.totalorder %s34, 3
      %p210 = por %p208, %p209
      %p211 = scmp.ne.s32.totalorder %s200, %s201
      %p212 = scmp.eq.s32.totalorder %s34, 0
      %p213 = por %p211, %p212
      %p214 = scmp.ne.s32.totalorder %s200, %s201
      %p215 = scmp.eq.s32.totalorder %s35, 3
      %p216 = por %p214, %p215
      %p218 = scmp.ne.s32.totalorder %s201, %s217
      %p219 = scmp.eq.s32.totalorder %s35, 0
      %p220 = por %p218, %p219
      %s221 = ssub.s32 %s37, %s44
      %p222 = scmp.eq.s32.totalorder %s221, 0
      %s224 = sadd.s32 %s223, 1
      %s225 = scalar_select %p222, %s223, %s224
      %p228 = pneg %p222
      %p229 = scmp.eq.s32.totalorder %s29, 3
      %p230 = por %p228, %p229
      %p231 = scmp.ne.s32.totalorder %s223, %s226
      %p232 = scmp.eq.s32.totalorder %s29, 0
      %p233 = por %p231, %p232
      %p234 = scmp.ne.s32.totalorder %s223, %s226
      %p235 = scmp.eq.s32.totalorder %s34, 3
      %p236 = por %p234, %p235
      %p237 = scmp.ne.s32.totalorder %s226, %s227
      %p238 = scmp.eq.s32.totalorder %s34, 0
      %p239 = por %p237, %p238
      %p240 = scmp.ne.s32.totalorder %s226, %s227
      %p241 = scmp.eq.s32.totalorder %s35, 3
      %p242 = por %p240, %p241
      %p244 = scmp.ne.s32.totalorder %s227, %s243
      %p245 = scmp.eq.s32.totalorder %s35, 0
      %p246 = por %p244, %p245
      %s247 = ssub.s32 %s37, %s44
      %p248 = scmp.eq.s32.totalorder %s247, 0
      %s250 = sadd.s32 %s249, 1
      %s251 = scalar_select %p248, %s249, %s250
      %p254 = pneg %p248
      %p255 = scmp.eq.s32.totalorder %s29, 3
      %p256 = por %p254, %p255
      %p257 = scmp.ne.s32.totalorder %s249, %s252
      %p258 = scmp.eq.s32.totalorder %s29, 0
      %p259 = por %p257, %p258
      %p260 = scmp.ne.s32.totalorder %s249, %s252
      %p261 = scmp.eq.s32.totalorder %s34, 3
      %p262 = por %p260, %p261
      %p263 = scmp.ne.s32.totalorder %s252, %s253
      %p264 = scmp.eq.s32.totalorder %s34, 0
      %p265 = por %p263, %p264
      %p266 = scmp.ne.s32.totalorder %s252, %s253
      %p267 = scmp.eq.s32.totalorder %s35, 3
      %p268 = por %p266, %p267
      %p270 = scmp.ne.s32.totalorder %s253, %s269
      %p271 = scmp.eq.s32.totalorder %s35, 0
      %p272 = por %p270, %p271
      %s273 = ssub.s32 %s37, %s44
      %p274 = scmp.eq.s32.totalorder %s273, 0
      %s276 = sadd.s32 %s275, 1
      %s277 = scalar_select %p274, %s275, %s276
      %p280 = pneg %p274
      %p281 = scmp.eq.s32.totalorder %s29, 3
      %p282 = por %p280, %p281
      %p283 = scmp.ne.s32.totalorder %s275, %s278
      %p284 = scmp.eq.s32.totalorder %s29, 0
      %p285 = por %p283, %p284
      %p286 = scmp.ne.s32.totalorder %s275, %s278
      %p287 = scmp.eq.s32.totalorder %s34, 3
      %p288 = por %p286, %p287
      %p289 = scmp.ne.s32.totalorder %s278, %s279
      %p290 = scmp.eq.s32.totalorder %s34, 0
      %p291 = por %p289, %p290
      %p292 = scmp.ne.s32.totalorder %s278, %s279
      %p293 = scmp.eq.s32.totalorder %s35, 3
      %p294 = por %p292, %p293
      %p296 = scmp.ne.s32.totalorder %s279, %s295
      %p297 = scmp.eq.s32.totalorder %s35, 0
      %p298 = por %p296, %p297
      %s299 = ssub.s32 %s37, %s44
      %p300 = scmp.eq.s32.totalorder %s299, 0
      %s302 = sadd.s32 %s301, 1
      %s303 = scalar_select %p300, %s301, %s302
      %p306 = pneg %p300
      %p307 = scmp.eq.s32.totalorder %s29, 3
      %p308 = por %p306, %p307
      %p309 = scmp.ne.s32.totalorder %s301, %s304
      %p310 = scmp.eq.s32.totalorder %s29, 0
      %p311 = por %p309, %p310
      %p312 = scmp.ne.s32.totalorder %s301, %s304
      %p313 = scmp.eq.s32.totalorder %s34, 3
      %p314 = por %p312, %p313
      %p315 = scmp.ne.s32.totalorder %s304, %s305
      %p316 = scmp.eq.s32.totalorder %s34, 0
      %p317 = por %p315, %p316
      %p318 = scmp.ne.s32.totalorder %s304, %s305
      %p319 = scmp.eq.s32.totalorder %s35, 3
      %p320 = por %p318, %p319
      %p322 = scmp.ne.s32.totalorder %s305, %s321
      %p323 = scmp.eq.s32.totalorder %s35, 0
      %p324 = por %p322, %p323
      %s325 = ssub.s32 %s37, %s44
      %p326 = scmp.eq.s32.totalorder %s325, 0
      %s328 = sadd.s32 %s327, 1
      %s329 = scalar_select %p326, %s327, %s328
      %p332 = pneg %p326
      %p333 = scmp.eq.s32.totalorder %s29, 3
      %p334 = por %p332, %p333
      %p335 = scmp.ne.s32.totalorder %s327, %s330
      %p336 = scmp.eq.s32.totalorder %s29, 0
      %p337 = por %p335, %p336
      %p338 = scmp.ne.s32.totalorder %s327, %s330
      %p339 = scmp.eq.s32.totalorder %s34, 3
      %p340 = por %p338, %p339
      %p341 = scmp.ne.s32.totalorder %s330, %s331
      %p342 = scmp.eq.s32.totalorder %s34, 0
      %p343 = por %p341, %p342
      %p344 = scmp.ne.s32.totalorder %s330, %s331
      %p345 = scmp.eq.s32.totalorder %s35, 3
      %p346 = por %p344, %p345
      %p348 = scmp.ne.s32.totalorder %s331, %s347
      %p349 = scmp.eq.s32.totalorder %s35, 0
      %p350 = por %p348, %p349
      %s351 = ssub.s32 %s37, %s44
      %p352 = scmp.eq.s32.totalorder %s351, 0
      %s354 = sadd.s32 %s353, 1
      %s355 = scalar_select %p352, %s353, %s354
      %p358 = pneg %p352
      %p359 = scmp.eq.s32.totalorder %s29, 3
      %p360 = por %p358, %p359
      %p361 = scmp.ne.s32.totalorder %s353, %s356
      %p362 = scmp.eq.s32.totalorder %s29, 0
      %p363 = por %p361, %p362
      %p364 = scmp.ne.s32.totalorder %s353, %s356
      %p365 = scmp.eq.s32.totalorder %s34, 3
      %p366 = por %p364, %p365
      %p367 = scmp.ne.s32.totalorder %s356, %s357
      %p368 = scmp.eq.s32.totalorder %s34, 0
      %p369 = por %p367, %p368
      %p370 = scmp.ne.s32.totalorder %s356, %s357
      %p371 = scmp.eq.s32.totalorder %s35, 3
      %p372 = por %p370, %p371
      %p374 = scmp.ne.s32.totalorder %s357, %s373
      %p375 = scmp.eq.s32.totalorder %s35, 0
      %p376 = por %p374, %p375
      %s377 = ssub.s32 %s37, %s44
      %p378 = scmp.eq.s32.totalorder %s377, 0
      %s380 = sadd.s32 %s379, 1
      %s381 = scalar_select %p378, %s379, %s380
      %p384 = pneg %p378
      %p385 = scmp.eq.s32.totalorder %s29, 3
      %p386 = por %p384, %p385
      %p387 = scmp.ne.s32.totalorder %s379, %s382
      %p388 = scmp.eq.s32.totalorder %s29, 0
      %p389 = por %p387, %p388
      %p390 = scmp.ne.s32.totalorder %s379, %s382
      %p391 = scmp.eq.s32.totalorder %s34, 3
      %p392 = por %p390, %p391
      %p393 = scmp.ne.s32.totalorder %s382, %s383
      %p394 = scmp.eq.s32.totalorder %s34, 0
      %p395 = por %p393, %p394
      %p396 = scmp.ne.s32.totalorder %s382, %s383
      %p397 = scmp.eq.s32.totalorder %s35, 3
      %p398 = por %p396, %p397
      %p400 = scmp.ne.s32.totalorder %s383, %s399
      %p401 = scmp.eq.s32.totalorder %s35, 0
      %p402 = por %p400, %p401
      %s403 = ssub.s32 %s37, %s44
      %p404 = scmp.eq.s32.totalorder %s403, 0
      %s406 = sadd.s32 %s405, 1
      %s407 = scalar_select %p404, %s405, %s406
      %p410 = pneg %p404
      %p411 = scmp.eq.s32.totalorder %s29, 3
      %p412 = por %p410, %p411
      %p413 = scmp.ne.s32.totalorder %s405, %s408
      %p414 = scmp.eq.s32.totalorder %s29, 0
      %p415 = por %p413, %p414
      %p416 = scmp.ne.s32.totalorder %s405, %s408
      %p417 = scmp.eq.s32.totalorder %s34, 3
      %p418 = por %p416, %p417
      %p419 = scmp.ne.s32.totalorder %s408, %s409
      %p420 = scmp.eq.s32.totalorder %s34, 0
      %p421 = por %p419, %p420
      %p422 = scmp.ne.s32.totalorder %s408, %s409
      %p423 = scmp.eq.s32.totalorder %s35, 3
      %p424 = por %p422, %p423
      %p426 = scmp.ne.s32.totalorder %s409, %s425
      %p427 = scmp.eq.s32.totalorder %s35, 0
      %p428 = por %p426, %p427
      %s429 = ssub.s32 %s37, %s44
      %p430 = scmp.eq.s32.totalorder %s429, 0
      %s432 = sadd.s32 %s431, 1
      %s433 = scalar_select %p430, %s431, %s432
      %p436 = pneg %p430
      %p437 = scmp.eq.s32.totalorder %s29, 3
      %p438 = por %p436, %p437
      %p439 = scmp.ne.s32.totalorder %s431, %s434
      %p440 = scmp.eq.s32.totalorder %s29, 0
      %p441 = por %p439, %p440
      %p442 = scmp.ne.s32.totalorder %s431, %s434
      %p443 = scmp.eq.s32.totalorder %s34, 3
      %p444 = por %p442, %p443
      %p445 = scmp.ne.s32.totalorder %s434, %s435
      %p446 = scmp.eq.s32.totalorder %s34, 0
      %p447 = por %p445, %p446
      %p448 = scmp.ne.s32.totalorder %s434, %s435
      %p449 = scmp.eq.s32.totalorder %s35, 3
      %p450 = por %p448, %p449
      %p452 = scmp.ne.s32.totalorder %s435, %s451
      %p453 = scmp.eq.s32.totalorder %s35, 0
      %p454 = por %p452, %p453
      %s455 = ssub.s32 %s36, %s48
      %p456 = scmp.eq.s32.totalorder %s455, 0
      %s458 = sadd.s32 %s457, 1
      %s459 = scalar_select %p456, %s457, %s458
      %p462 = pneg %p456
      %p463 = scmp.eq.s32.totalorder %s29, 3
      %p464 = por %p462, %p463
      %p465 = scmp.ne.s32.totalorder %s457, %s460
      %p466 = scmp.eq.s32.totalorder %s29, 0
      %p467 = por %p465, %p466
      %p468 = scmp.ne.s32.totalorder %s457, %s460
      %p469 = scmp.eq.s32.totalorder %s34, 3
      %p470 = por %p468, %p469
      %p471 = scmp.ne.s32.totalorder %s460, %s461
      %p472 = scmp.eq.s32.totalorder %s34, 0
      %p473 = por %p471, %p472
      %p474 = scmp.ne.s32.totalorder %s460, %s461
      %p475 = scmp.eq.s32.totalorder %s35, 3
      %p476 = por %p474, %p475
      %p478 = scmp.ne.s32.totalorder %s461, %s477
      %p479 = scmp.eq.s32.totalorder %s35, 0
      %p480 = por %p478, %p479
      %p481 = scmp.le.s32.totalorder 1, %s29
      %p482 = scmp.lt.s32.totalorder %s29, 5
      %p483 = pnand %p481, %p482
      %p484 = pneg %p483
      // Predicated region
      $region9: #{tpu_custom_call.1} parent=5 // pred_check
        _
      $region10: #{tpu_custom_call.1} parent=5 // pred_check_branch
        %486 = sbr.rel (%p483) target = $region12
      $region11: #{tpu_custom_call.1} parent=5 // pred_region
        %s487 = ssub.s32 %s29, 1
        // Predicated region
        $region13: #{tpu_custom_call.1} parent=11 // pred_check
          %p488 = pneg %p114
        $region14: #{tpu_custom_call.1} parent=11 // pred_check_branch
          %490 = sbr.rel (%p488) target = $region16
        $region15: #{tpu_custom_call.1} parent=11 // pred_region
          _
        $region16: #{tpu_custom_call.1} parent=11 // pred_fallthru
          _
        // Predicated region
        $region17: #{tpu_custom_call.1} parent=11 // pred_check
          %p491 = pneg %p135
        $region18: #{tpu_custom_call.1} parent=11 // pred_check_branch
          %493 = sbr.rel (%p491) target = $region20
        $region19: #{tpu_custom_call.1} parent=11 // pred_region
          %s495 = ssub.s32 16, 16
          %496 = vsyncadd [#allocation11], %s495
          %s498 = sshll.u32 [#allocation10], 4
          %s499 = int_to_ptr.vmem [resolvable:$true] %s498
          %501 = dma.hbm_to_vmem [thread:$0]  %s3, 16, %s499, [#allocation11]
        $region20: #{tpu_custom_call.1} parent=11 // pred_fallthru
          _
      $region12: #{tpu_custom_call.1} parent=5 // pred_fallthru
        _
      %p502 = scmp.lt.s32.totalorder %s29, 4
      // Predicated region
      $region21: #{tpu_custom_call.1} parent=5 // pred_check
        %p503 = pneg %p502
      $region22: #{tpu_custom_call.1} parent=5 // pred_check_branch
        %505 = sbr.rel (%p503) target = $region24
      $region23: #{tpu_custom_call.1} parent=5 // pred_region
        // Predicated region
        $region25: #{tpu_custom_call.1} parent=23 // pred_check
          %p506 = pneg %p61
        $region26: #{tpu_custom_call.1} parent=23 // pred_check_branch
          %508 = sbr.rel (%p506) target = $region28
        $region27: #{tpu_custom_call.1} parent=23 // pred_region
          %s509 = sand.u32 %s51, 1
          %s510 = scalar_lea.sflag [#allocation8], %s509
          %s511 = sand.u32 %s51, 1
          %s512 = smul.addr %s511, 8
          %s513 = scalar_lea.vmem [#allocation7], %s512
          %s515 = ssub.s32 128, 128
          %516 = vsyncadd %s510, %s515
          %s517 = smul.addr %s36, 128
          %s518 = scalar_lea.hbm %s0, %s517
          %s520 = sshll.u32 %s513, 4
          %s521 = int_to_ptr.vmem [resolvable:$true] %s520
          %523 = dma.hbm_to_vmem [thread:$0]  %s518, 128, %s521, %s510
        $region28: #{tpu_custom_call.1} parent=23 // pred_fallthru
          _
        // Predicated region
        $region29: #{tpu_custom_call.1} parent=23 // pred_check
          %p524 = pneg %p87
        $region30: #{tpu_custom_call.1} parent=23 // pred_check_branch
          %526 = sbr.rel (%p524) target = $region32
        $region31: #{tpu_custom_call.1} parent=23 // pred_region
          %p527 = scmp.lt.s32.totalorder %s36, 1
          %s528 = scalar_select %p527, %s36, 1
          %s529 = scalar_lea.vmem %s1, %s528
        $region32: #{tpu_custom_call.1} parent=23 // pred_fallthru
          _
        // Predicated region
        $region33: #{tpu_custom_call.1} parent=23 // pred_check
          %p530 = pneg %p155
        $region34: #{tpu_custom_call.1} parent=23 // pred_check_branch
          %532 = sbr.rel (%p530) target = $region36
        $region35: #{tpu_custom_call.1} parent=23 // pred_region
          %p533 = scmp.lt.s32.totalorder %s37, 1
          %s534 = scalar_select %p533, %s37, 1
          %s535 = smul.addr %s534, 4
          %s536 = smul.addr %s535, 4
          %s537 = scalar_lea.vmem %s4, %s536
        $region36: #{tpu_custom_call.1} parent=23 // pred_fallthru
          _
        // Predicated region
        $region37: #{tpu_custom_call.1} parent=23 // pred_check
          %p538 = pneg %p181
        $region38: #{tpu_custom_call.1} parent=23 // pred_check_branch
          %540 = sbr.rel (%p538) target = $region40
        $region39: #{tpu_custom_call.1} parent=23 // pred_region
          %p541 = scmp.lt.s32.totalorder %s37, 1
          %s542 = scalar_select %p541, %s37, 1
          %s543 = scalar_lea.vmem %s5, %s542
        $region40: #{tpu_custom_call.1} parent=23 // pred_fallthru
          _
        // Predicated region
        $region41: #{tpu_custom_call.1} parent=23 // pred_check
          %p544 = pneg %p207
        $region42: #{tpu_custom_call.1} parent=23 // pred_check_branch
          %546 = sbr.rel (%p544) target = $region44
        $region43: #{tpu_custom_call.1} parent=23 // pred_region
          %p547 = scmp.lt.s32.totalorder %s37, 1
          %s548 = scalar_select %p547, %s37, 1
          %s549 = smul.addr %s548, 4
          %s550 = smul.addr %s549, 4
          %s551 = scalar_lea.vmem %s6, %s550
        $region44: #{tpu_custom_call.1} parent=23 // pred_fallthru
          _
        // Predicated region
        $region45: #{tpu_custom_call.1} parent=23 // pred_check
          %p552 = pneg %p233
        $region46: #{tpu_custom_call.1} parent=23 // pred_check_branch
          %554 = sbr.rel (%p552) target = $region48
        $region47: #{tpu_custom_call.1} parent=23 // pred_region
          %p555 = scmp.lt.s32.totalorder %s37, 1
          %s556 = scalar_select %p555, %s37, 1
          %s557 = scalar_lea.vmem %s7, %s556
        $region48: #{tpu_custom_call.1} parent=23 // pred_fallthru
          _
        // Predicated region
        $region49: #{tpu_custom_call.1} parent=23 // pred_check
          %p558 = pneg %p259
        $region50: #{tpu_custom_call.1} parent=23 // pred_check_branch
          %560 = sbr.rel (%p558) target = $region52
        $region51: #{tpu_custom_call.1} parent=23 // pred_region
          %p561 = scmp.lt.s32.totalorder %s37, 1
          %s562 = scalar_select %p561, %s37, 1
          %s563 = scalar_lea.vmem %s8, %s562
        $region52: #{tpu_custom_call.1} parent=23 // pred_fallthru
          _
        // Predicated region
        $region53: #{tpu_custom_call.1} parent=23 // pred_check
          %p564 = pneg %p285
        $region54: #{tpu_custom_call.1} parent=23 // pred_check_branch
          %566 = sbr.rel (%p564) target = $region56
        $region55: #{tpu_custom_call.1} parent=23 // pred_region
          %p567 = scmp.lt.s32.totalorder %s37, 1
          %s568 = scalar_select %p567, %s37, 1
          %s569 = scalar_lea.vmem %s9, %s568
        $region56: #{tpu_custom_call.1} parent=23 // pred_fallthru
          _
        // Predicated region
        $region57: #{tpu_custom_call.1} parent=23 // pred_check
          %p570 = pneg %p311
        $region58: #{tpu_custom_call.1} parent=23 // pred_check_branch
          %572 = sbr.rel (%p570) target = $region60
        $region59: #{tpu_custom_call.1} parent=23 // pred_region
          %p573 = scmp.lt.s32.totalorder %s37, 1
          %s574 = scalar_select %p573, %s37, 1
          %s575 = smul.addr %s574, 4
          %s576 = smul.addr %s575, 4
          %s577 = scalar_lea.vmem %s10, %s576
        $region60: #{tpu_custom_call.1} parent=23 // pred_fallthru
          _
        // Predicated region
        $region61: #{tpu_custom_call.1} parent=23 // pred_check
          %p578 = pneg %p337
        $region62: #{tpu_custom_call.1} parent=23 // pred_check_branch
          %580 = sbr.rel (%p578) target = $region64
        $region63: #{tpu_custom_call.1} parent=23 // pred_region
          %p581 = scmp.lt.s32.totalorder %s37, 1
          %s582 = scalar_select %p581, %s37, 1
          %s583 = scalar_lea.vmem %s11, %s582
        $region64: #{tpu_custom_call.1} parent=23 // pred_fallthru
          _
        // Predicated region
        $region65: #{tpu_custom_call.1} parent=23 // pred_check
          %p584 = pneg %p363
        $region66: #{tpu_custom_call.1} parent=23 // pred_check_branch
          %586 = sbr.rel (%p584) target = $region68
        $region67: #{tpu_custom_call.1} parent=23 // pred_region
          %p587 = scmp.lt.s32.totalorder %s37, 1
          %s588 = scalar_select %p587, %s37, 1
          %s589 = smul.addr %s588, 8
          %s590 = smul.addr %s589, 4
          %s591 = scalar_lea.vmem %s12, %s590
        $region68: #{tpu_custom_call.1} parent=23 // pred_fallthru
          _
        // Predicated region
        $region69: #{tpu_custom_call.1} parent=23 // pred_check
          %p592 = pneg %p389
        $region70: #{tpu_custom_call.1} parent=23 // pred_check_branch
          %594 = sbr.rel (%p592) target = $region72
        $region71: #{tpu_custom_call.1} parent=23 // pred_region
          %p595 = scmp.lt.s32.totalorder %s37, 1
          %s596 = scalar_select %p595, %s37, 1
          %s597 = scalar_lea.vmem %s13, %s596
        $region72: #{tpu_custom_call.1} parent=23 // pred_fallthru
          _
        // Predicated region
        $region73: #{tpu_custom_call.1} parent=23 // pred_check
          %p598 = pneg %p415
        $region74: #{tpu_custom_call.1} parent=23 // pred_check_branch
          %600 = sbr.rel (%p598) target = $region76
        $region75: #{tpu_custom_call.1} parent=23 // pred_region
          %p601 = scmp.lt.s32.totalorder %s37, 1
          %s602 = scalar_select %p601, %s37, 1
          %s603 = scalar_lea.vmem %s14, %s602
        $region76: #{tpu_custom_call.1} parent=23 // pred_fallthru
          _
        // Predicated region
        $region77: #{tpu_custom_call.1} parent=23 // pred_check
          %p604 = pneg %p441
        $region78: #{tpu_custom_call.1} parent=23 // pred_check_branch
          %606 = sbr.rel (%p604) target = $region80
        $region79: #{tpu_custom_call.1} parent=23 // pred_region
          %p607 = scmp.lt.s32.totalorder %s37, 1
          %s608 = scalar_select %p607, %s37, 1
          %s609 = scalar_lea.vmem %s15, %s608
        $region80: #{tpu_custom_call.1} parent=23 // pred_fallthru
          _
      $region24: #{tpu_custom_call.1} parent=5 // pred_fallthru
        _
      %p610 = scmp.le.s32.totalorder 1, %s29
      %p611 = scmp.lt.s32.totalorder %s29, 5
      %p612 = pnand %p610, %p611
      %p613 = pneg %p612
      // Predicated region
      $region81: #{tpu_custom_call.1} parent=5 // pred_check
        _
      $region82: #{tpu_custom_call.1} parent=5 // pred_check_branch
        %615 = sbr.rel (%p612) target = $region84
      $region83: #{tpu_custom_call.1} parent=5 // pred_region
        %s616 = ssub.s32 %s29, 1
        %s617 = sand.u32 %s54, 1
        %s618 = scalar_lea.sflag [#allocation8], %s617
        %s619 = sand.u32 %s54, 1
        %s620 = smul.addr %s619, 8
        %s621 = scalar_lea.vmem [#allocation7], %s620
        // Predicated region
        $region85: #{tpu_custom_call.1} parent=83 // pred_check
          %p622 = pneg %p67
        $region86: #{tpu_custom_call.1} parent=83 // pred_check_branch
          %624 = sbr.rel (%p622) target = $region88
        $region87: #{tpu_custom_call.1} parent=83 // pred_region
          %625 = dma.done %s618, 128
        $region88: #{tpu_custom_call.1} parent=83 // pred_fallthru
          _
        // Predicated region
        $region89: #{tpu_custom_call.1} parent=83 // pred_check
          %p626 = pneg %p135
        $region90: #{tpu_custom_call.1} parent=83 // pred_check_branch
          %628 = sbr.rel (%p626) target = $region92
        $region91: #{tpu_custom_call.1} parent=83 // pred_region
          %629 = dma.done [#allocation11], 16
        $region92: #{tpu_custom_call.1} parent=83 // pred_fallthru
          _
        %s630 = sand.u32 %s54, 1
        %s631 = scalar_lea.sflag [#allocation8], %s630
        %s632 = sand.u32 %s54, 1
        %s633 = smul.addr %s632, 8
        %s634 = scalar_lea.vmem [#allocation7], %s633
        %p635 = pneg %p67
        %p636 = pneg %p64
        %p637 = scmp.lt.s32.totalorder %s38, 1
        %s638 = scalar_select %p637, %s38, 1
        %s639 = scalar_lea.vmem %s1, %s638
        %p640 = pneg %p93
        %p641 = pneg %p90
        %p642 = pneg %p114
        %p643 = pneg %p111
        %p644 = pneg %p135
        %p645 = pneg %p132
        %p646 = scmp.lt.s32.totalorder %s39, 1
        %s647 = scalar_select %p646, %s39, 1
        %s648 = smul.addr %s647, 4
        %s649 = smul.addr %s648, 4
        %s650 = scalar_lea.vmem %s4, %s649
        %p651 = pneg %p161
        %p652 = pneg %p158
        %p653 = scmp.lt.s32.totalorder %s39, 1
        %s654 = scalar_select %p653, %s39, 1
        %s655 = scalar_lea.vmem %s5, %s654
        %p656 = pneg %p187
        %p657 = pneg %p184
        %p658 = scmp.lt.s32.totalorder %s39, 1
        %s659 = scalar_select %p658, %s39, 1
        %s660 = smul.addr %s659, 4
        %s661 = smul.addr %s660, 4
        %s662 = scalar_lea.vmem %s6, %s661
        %p663 = pneg %p213
        %p664 = pneg %p210
        %p665 = scmp.lt.s32.totalorder %s39, 1
        %s666 = scalar_select %p665, %s39, 1
        %s667 = scalar_lea.vmem %s7, %s666
        %p668 = pneg %p239
        %p669 = pneg %p236
        %p670 = scmp.lt.s32.totalorder %s39, 1
        %s671 = scalar_select %p670, %s39, 1
        %s672 = scalar_lea.vmem %s8, %s671
        %p673 = pneg %p265
        %p674 = pneg %p262
        %p675 = scmp.lt.s32.totalorder %s39, 1
        %s676 = scalar_select %p675, %s39, 1
        %s677 = scalar_lea.vmem %s9, %s676
        %p678 = pneg %p291
        %p679 = pneg %p288
        %p680 = scmp.lt.s32.totalorder %s39, 1
        %s681 = scalar_select %p680, %s39, 1
        %s682 = smul.addr %s681, 4
        %s683 = smul.addr %s682, 4
        %s684 = scalar_lea.vmem %s10, %s683
        %p685 = pneg %p317
        %p686 = pneg %p314
        %p687 = scmp.lt.s32.totalorder %s39, 1
        %s688 = scalar_select %p687, %s39, 1
        %s689 = scalar_lea.vmem %s11, %s688
        %p690 = pneg %p343
        %p691 = pneg %p340
        %p692 = scmp.lt.s32.totalorder %s39, 1
        %s693 = scalar_select %p692, %s39, 1
        %s694 = smul.addr %s693, 8
        %s695 = smul.addr %s694, 4
        %s696 = scalar_lea.vmem %s12, %s695
        %p697 = pneg %p369
        %p698 = pneg %p366
        %p699 = scmp.lt.s32.totalorder %s39, 1
        %s700 = scalar_select %p699, %s39, 1
        %s701 = scalar_lea.vmem %s13, %s700
        %p702 = pneg %p395
        %p703 = pneg %p392
        %p704 = scmp.lt.s32.totalorder %s39, 1
        %s705 = scalar_select %p704, %s39, 1
        %s706 = scalar_lea.vmem %s14, %s705
        %p707 = pneg %p421
        %p708 = pneg %p418
        %p709 = scmp.lt.s32.totalorder %s39, 1
        %s710 = scalar_select %p709, %s39, 1
        %s711 = scalar_lea.vmem %s15, %s710
        %p712 = pneg %p447
        %p713 = pneg %p444
        %p714 = pneg %p473
        %p715 = pneg %p470
        %s716 = sand.u32 %s460, 1
        %s717 = scalar_lea.sflag [#allocation9], %s716
        %s718 = sand.u32 %s460, 1
        %s719 = scalar_lea.vmem [#allocation12], %s718
        %p720 = scmp.lt.s32.totalorder %s38, 1
        %s721 = scalar_select %p720, %s38, 1
        %s722 = scalar_lea.vmem %s1, %s721
        %p723 = scmp.lt.s32.totalorder %s39, 1
        %s724 = scalar_select %p723, %s39, 1
        %s725 = smul.addr %s724, 4
        %s726 = smul.addr %s725, 4
        %s727 = scalar_lea.vmem %s4, %s726
        %p728 = scmp.lt.s32.totalorder %s39, 1
        %s729 = scalar_select %p728, %s39, 1
        %s730 = scalar_lea.vmem %s5, %s729
        %p731 = scmp.lt.s32.totalorder %s39, 1
        %s732 = scalar_select %p731, %s39, 1
        %s733 = smul.addr %s732, 4
        %s734 = smul.addr %s733, 4
        %s735 = scalar_lea.vmem %s6, %s734
        %p736 = scmp.lt.s32.totalorder %s39, 1
        %s737 = scalar_select %p736, %s39, 1
        %s738 = scalar_lea.vmem %s7, %s737
        %p739 = scmp.lt.s32.totalorder %s39, 1
        %s740 = scalar_select %p739, %s39, 1
        %s741 = scalar_lea.vmem %s8, %s740
        %p742 = scmp.lt.s32.totalorder %s39, 1
        %s743 = scalar_select %p742, %s39, 1
        %s744 = scalar_lea.vmem %s9, %s743
        %p745 = scmp.lt.s32.totalorder %s39, 1
        %s746 = scalar_select %p745, %s39, 1
        %s747 = smul.addr %s746, 4
        %s748 = smul.addr %s747, 4
        %s749 = scalar_lea.vmem %s10, %s748
        %p750 = scmp.lt.s32.totalorder %s39, 1
        %s751 = scalar_select %p750, %s39, 1
        %s752 = scalar_lea.vmem %s11, %s751
        %p753 = scmp.lt.s32.totalorder %s39, 1
        %s754 = scalar_select %p753, %s39, 1
        %s755 = smul.addr %s754, 8
        %s756 = smul.addr %s755, 4
        %s757 = scalar_lea.vmem %s12, %s756
        %p758 = scmp.lt.s32.totalorder %s39, 1
        %s759 = scalar_select %p758, %s39, 1
        %s760 = scalar_lea.vmem %s13, %s759
        %p761 = scmp.lt.s32.totalorder %s39, 1
        %s762 = scalar_select %p761, %s39, 1
        %s763 = scalar_lea.vmem %s14, %s762
        %p764 = scmp.lt.s32.totalorder %s39, 1
        %s765 = scalar_select %p764, %s39, 1
        %s766 = scalar_lea.vmem %s15, %s765
        %p768 = scmp.eq.s32.totalorder %s39, 0
        // Predicated region
        $region93: #{tpu_custom_call.1} parent=83 // pred_check
          %p769 = pneg %p768
        $region94: #{tpu_custom_call.1} parent=83 // pred_check_branch
          %771 = sbr.rel (%p769) target = $region96
        $region95: #{tpu_custom_call.1} parent=83 // pred_region
          %v772 = vld [vmem:[%s621] sm:$0xff]
          %v773 = vld [vmem:[%s2] sm:$0x1]
          %v774 = vld [vmem:[#allocation10] sm:$0x1]
          %vm775 = vcmask 261120
          %v776 = vsel %vm775, %v772, 0.0
          %777 = vadd.xlane.f32.xlu0 %v776
          %v778 = vpop.xlane.xlu0 %777
          %v779 = vrcp.pop 32.0
          %v780 = vmul.f32 %v778, %v779
          %v781 = vsub.f32 %v772, %v780
          %v782 = vmul.f32 %v781, %v781
          %v783 = vsel %vm775, %v782, 0.0
          %784 = vadd.xlane.f32.xlu0 %v783
          %v785 = vpop.xlane.xlu0 %784
          %v786 = vmul.f32 %v785, %v779
          %v787 = vadd.f32 %v786, 1e-12
          %v788 = vrsqrt.pop %v787
          %v789 = vmul.f32 %v781, %v788
          %v791 = vlaneseq
          %v792 = vshrl.u32 %v791, 7
          %v793 = vsub.s32 0, %v792
          %v794 = vrot.slane %v773, %v793
          %v796 = vmul.f32 %v789, %v794
          %v798 = vlaneseq
          %v799 = vshrl.u32 %v798, 7
          %v800 = vsub.s32 0, %v799
          %v801 = vrot.slane %v774, %v800
          %v803 = vadd.f32 %v796, %v801
          %804 = vst.msk [vmem:[#allocation2] sm:$0xff] %vm775, %v803
        $region96: #{tpu_custom_call.1} parent=83 // pred_fallthru
          _
        %v805 = vld [vmem:[#allocation2] sm:$0xff]
        %v806 = vpack.c.bf16 %v805, %v805
        %v807 = vld [vmem:[%s727] sm:$0xf]
        %v808 = vld [vmem:[%s727 + $0x4] sm:$0xf]
        %v809 = vld [vmem:[%s727 + $0x8] sm:$0xf]
        %v810 = vld [vmem:[%s727 + $0xc] sm:$0xf]
        %v811 = vld [vmem:[%s730] sm:$0x1]
        %v813 = vlaneseq
        %v814 = vshrl.u32 %v813, 7
        %v815 = vsub.s32 0, %v814
        %v816 = vrot.slane %v811, %v815
        %v822 = vunpack.c.l.b16 %v807
        %v823 = vunpack.c.l.b16 %v808
        %v824 = vunpack.c.l.b16 %v809
        %v825 = vunpack.c.l.b16 %v810
        %v826 = vpack.c.b16 %v823, %v822
        %v827 = vpack.c.b16 %v825, %v824
        %vm830 = vcmask 261120
        %v832 = vsel %vm830, %v806, 0
        %834 = vmatprep.subr.bf16.mxu0 0
        %835 = vmatpush1.bf16.msra.mxu0 %v826
        %836 = vmatprep.subr.bf16.mxu0 0
        %837 = vmatpush1.bf16.msra.mxu0 %v827
        %838 = vmatprep.subr.bf16.mxu0 0
        %839 = vmatpush1.bf16.msra.mxu0 0
        %840 = vmatprep.subr.bf16.mxu0 0
        %841 = vmatpush1.bf16.msra.mxu0 0
        %842 = vmatprep.subr.bf16.mxu0 0
        %843 = vmatpush1.bf16.msra.mxu0 0
        %844 = vmatprep.subr.bf16.mxu0 0
        %845 = vmatpush1.bf16.msra.mxu0 0
        %846 = vmatprep.subr.bf16.mxu0 0
        %847 = vmatpush1.bf16.msra.mxu0 0
        %848 = vmatprep.subr.bf16.mxu0 0
        %849 = vmatpush1.bf16.msra.mxu0 0
        %850 = vmatprep.subr.bf16.mxu0 0
        %851 = vmatpush1.bf16.msra.mxu0 0
        %852 = vmatprep.subr.bf16.mxu0 0
        %853 = vmatpush1.bf16.msra.mxu0 0
        %854 = vmatprep.subr.bf16.mxu0 0
        %855 = vmatpush1.bf16.msra.mxu0 0
        %856 = vmatprep.subr.bf16.mxu0 0
        %857 = vmatpush1.bf16.msra.mxu0 0
        %858 = vmatprep.subr.bf16.mxu0 0
        %859 = vmatpush1.bf16.msra.mxu0 0
        %860 = vmatprep.subr.bf16.mxu0 0
        %861 = vmatpush1.bf16.msra.mxu0 0
        %862 = vmatprep.subr.bf16.mxu0 0
        %863 = vmatpush1.bf16.msra.mxu0 0
        %864 = vmatprep.subr.bf16.mxu0 0
        %865 = vmatpush1.bf16.msra.mxu0 0
        %866 = vmatprep.mubr.bf16.mxu0 0
        %867 = vmatmul.mubr.bf16.gmra.mrb[0].mxu0 %v832
        %v868 = vpop.f32.mrb[0].mxu0
        %v869 = vadd.f32 %v816, %v868
        %v870 = vpop.f32.mrb[0].mxu0
        %v871 = vpop.f32.mrb[0].mxu0
        %v872 = vpop.f32.mrb[0].mxu0
        %873 = vdwg.mxu0
        %v874 = vpack.c.bf16 %v869, %v869
        %vm875 = vcmask 60416
        %876 = vst.msk [vmem:[#allocation4] sm:$0xf] %vm875, %v874
        %v878 = vunpack.c.l.b16 %v874
        %v879 = vpack.c.b16 %v878, %v878
        %880 = vrot.lane.b32.xlu0 %v879, 96
        %v881 = vpop.permute.xlu0 %880
        %883 = vst.msk [vmem:[#allocation5] sm:$0xf] %vm875, %v881
        %884 = vrot.lane.b32.xlu0 %v879, 64
        %v885 = vpop.permute.xlu0 %884
        %887 = vst.msk [vmem:[#allocation6] sm:$0xf] %vm875, %v885
        %888 = vrot.lane.b32.xlu0 %v879, 120
        %v889 = vpop.permute.xlu0 %888
        %s891 = scalar_lea.vmem [#allocation4], 4
        %892 = vst.msk [vmem:[%s891] sm:$0xf] %vm875, %v889
        %893 = vrot.lane.b32.xlu0 %v879, 88
        %v894 = vpop.permute.xlu0 %893
        %s896 = scalar_lea.vmem [#allocation5], 4
        %897 = vst.msk [vmem:[%s896] sm:$0xf] %vm875, %v894
        %898 = vrot.lane.b32.xlu0 %v879, 56
        %v899 = vpop.permute.xlu0 %898
        %s901 = scalar_lea.vmem [#allocation6], 4
        %902 = vst.msk [vmem:[%s901] sm:$0xf] %vm875, %v899
        %903 = vrot.lane.b32.xlu0 %v879, 112
        %v904 = vpop.permute.xlu0 %903
        %s906 = scalar_lea.vmem [#allocation4], 8
        %907 = vst.msk [vmem:[%s906] sm:$0xf] %vm875, %v904
        %908 = vrot.lane.b32.xlu0 %v879, 80
        %v909 = vpop.permute.xlu0 %908
        %s911 = scalar_lea.vmem [#allocation5], 8
        %912 = vst.msk [vmem:[%s911] sm:$0xf] %vm875, %v909
        %913 = vrot.lane.b32.xlu0 %v879, 48
        %v914 = vpop.permute.xlu0 %913
        %s916 = scalar_lea.vmem [#allocation6], 8
        %917 = vst.msk [vmem:[%s916] sm:$0xf] %vm875, %v914
        %918 = vrot.lane.b32.xlu0 %v879, 104
        %v919 = vpop.permute.xlu0 %918
        %s921 = scalar_lea.vmem [#allocation4], 12
        %922 = vst.msk [vmem:[%s921] sm:$0xf] %vm875, %v919
        %923 = vrot.lane.b32.xlu0 %v879, 72
        %v924 = vpop.permute.xlu0 %923
        %s926 = scalar_lea.vmem [#allocation5], 12
        %927 = vst.msk [vmem:[%s926] sm:$0xf] %vm875, %v924
        %928 = vrot.lane.b32.xlu0 %v879, 40
        %v929 = vpop.permute.xlu0 %928
        %s931 = scalar_lea.vmem [#allocation6], 12
        %932 = vst.msk [vmem:[%s931] sm:$0xf] %vm875, %v929
        %v933 = vld [vmem:[%s722] sm:$0x1]
        %v934 = vld [vmem:[%s735] sm:$0xf]
        %v935 = vld [vmem:[%s735 + $0x4] sm:$0xf]
        %v936 = vld [vmem:[%s735 + $0x8] sm:$0xf]
        %v937 = vld [vmem:[%s735 + $0xc] sm:$0xf]
        %p938 = scmp.ne.s32.totalorder %s39, 1
        // Predicated region
        $region97: #{tpu_custom_call.1} parent=83 // pred_check
          %p939 = pneg %p938
        $region98: #{tpu_custom_call.1} parent=83 // pred_check_branch
          %941 = sbr.rel (%p939) target = $region100
        $region99: #{tpu_custom_call.1} parent=83 // pred_region
          %v942 = vld [vmem:[#allocation4] sm:$0xf]
          %v943 = vld [vmem:[#allocation4 + $0x4] sm:$0xf]
          %v944 = vld [vmem:[#allocation4 + $0x8] sm:$0xf]
          %v945 = vld [vmem:[#allocation4 + $0xc] sm:$0xf]
          %v946 = vld [vmem:[#allocation5] sm:$0xf]
          %v947 = vld [vmem:[#allocation5 + $0x4] sm:$0xf]
          %v948 = vld [vmem:[#allocation5 + $0x8] sm:$0xf]
          %v949 = vld [vmem:[#allocation5 + $0xc] sm:$0xf]
          %v950 = vld [vmem:[#allocation6] sm:$0xf]
          %v951 = vld [vmem:[#allocation6 + $0x4] sm:$0xf]
          %v952 = vld [vmem:[#allocation6 + $0x8] sm:$0xf]
          %v953 = vld [vmem:[#allocation6 + $0xc] sm:$0xf]
          %vm954 = vcmask 64512
          %v956 = vsel %vm954, %v942, 0
          %v959 = vsel %vm954, %v946, 0
          %961 = vmatprep.subr.bf16.mxu0 0
          %962 = vmatpush1.bf16.xpose.msra.mxu0 %v959
          %963 = vmatprep.subr.bf16.mxu0 0
          %964 = vmatpush1.bf16.xpose.msra.mxu0 0
          %965 = vmatprep.subr.bf16.mxu0 0
          %966 = vmatpush1.bf16.xpose.msra.mxu0 0
          %967 = vmatprep.subr.bf16.mxu0 0
          %968 = vmatpush1.bf16.xpose.msra.mxu0 0
          %969 = vmatprep.subr.bf16.mxu0 0
          %970 = vmatpush1.bf16.xpose.msra.mxu0 0
          %971 = vmatprep.subr.bf16.mxu0 0
          %972 = vmatpush1.bf16.xpose.msra.mxu0 0
          %973 = vmatprep.subr.bf16.mxu0 0
          %974 = vmatpush1.bf16.xpose.msra.mxu0 0
          %975 = vmatprep.subr.bf16.mxu0 0
          %976 = vmatpush1.bf16.xpose.msra.mxu0 0
          %977 = vmatprep.subr.bf16.mxu0 0
          %978 = vmatpush1.bf16.xpose.msra.mxu0 0
          %979 = vmatprep.subr.bf16.mxu0 0
          %980 = vmatpush1.bf16.xpose.msra.mxu0 0
          %981 = vmatprep.subr.bf16.mxu0 0
          %982 = vmatpush1.bf16.xpose.msra.mxu0 0
          %983 = vmatprep.subr.bf16.mxu0 0
          %984 = vmatpush1.bf16.xpose.msra.mxu0 0
          %985 = vmatprep.subr.bf16.mxu0 0
          %986 = vmatpush1.bf16.xpose.msra.mxu0 0
          %987 = vmatprep.subr.bf16.mxu0 0
          %988 = vmatpush1.bf16.xpose.msra.mxu0 0
          %989 = vmatprep.subr.bf16.mxu0 0
          %990 = vmatpush1.bf16.xpose.msra.mxu0 0
          %991 = vmatprep.subr.bf16.mxu0 0
          %992 = vmatpush1.bf16.xpose.msra.mxu0 0
          %993 = vmatprep.mubr.bf16.mxu0 0
          %994 = vmatmul.mubr.bf16.gmra.mrb[0].mxu0 %v956
          %v995 = vpop.f32.mrb[0].mxu0
          %v996 = vadd.f32 0.0, %v995
          %v997 = vpop.f32.mrb[0].mxu0
          %v998 = vpop.f32.mrb[0].mxu0
          %v999 = vpop.f32.mrb[0].mxu0
          %1000 = vdwg.mxu0
          %v1002 = vsel %vm954, %v943, 0
          %v1005 = vsel %vm954, %v947, 0
          %1007 = vmatprep.subr.bf16.mxu0 0
          %1008 = vmatpush1.bf16.xpose.msra.mxu0 %v1005
          %1009 = vmatprep.subr.bf16.mxu0 0
          %1010 = vmatpush1.bf16.xpose.msra.mxu0 0
          %1011 = vmatprep.subr.bf16.mxu0 0
          %1012 = vmatpush1.bf16.xpose.msra.mxu0 0
          %1013 = vmatprep.subr.bf16.mxu0 0
          %1014 = vmatpush1.bf16.xpose.msra.mxu0 0
          %1015 = vmatprep.subr.bf16.mxu0 0
          %1016 = vmatpush1.bf16.xpose.msra.mxu0 0
          %1017 = vmatprep.subr.bf16.mxu0 0
          %1018 = vmatpush1.bf16.xpose.msra.mxu0 0
          %1019 = vmatprep.subr.bf16.mxu0 0
          %1020 = vmatpush1.bf16.xpose.msra.mxu0 0
          %1021 = vmatprep.subr.bf16.mxu0 0
          %1022 = vmatpush1.bf16.xpose.msra.mxu0 0
          %1023 = vmatprep.subr.bf16.mxu0 0
          %1024 = vmatpush1.bf16.xpose.msra.mxu0 0
          %1025 = vmatprep.subr.bf16.mxu0 0
          %1026 = vmatpush1.bf16.xpose.msra.mxu0 0
          %1027 = vmatprep.subr.bf16.mxu0 0
          %1028 = vmatpush1.bf16.xpose.msra.mxu0 0
          %1029 = vmatprep.subr.bf16.mxu0 0
          %1030 = vmatpush1.bf16.xpose.msra.mxu0 0
          %1031 = vmatprep.subr.bf16.mxu0 0
          %1032 = vmatpush1.bf16.xpose.msra.mxu0 0
          %1033 = vmatprep.subr.bf16.mxu0 0
          %1034 = vmatpush1.bf16.xpose.msra.mxu0 0
          %1035 = vmatprep.subr.bf16.mxu0 0
          %1036 = vmatpush1.bf16.xpose.msra.mxu0 0
          %1037 = vmatprep.subr.bf16.mxu0 0
          %1038 = vmatpush1.bf16.xpose.msra.mxu0 0
          %1039 = vmatprep.mubr.bf16.mxu0 0
          %1040 = vmatmul.mubr.bf16.gmra.mrb[0].mxu0 %v1002
          %v1041 = vpop.f32.mrb[0].mxu0
          %v1042 = vadd.f32 0.0, %v1041
          %v1043 = vpop.f32.mrb[0].mxu0
          %v1044 = vpop.f32.mrb[0].mxu0
          %v1045 = vpop.f32.mrb[0].mxu0
          %1046 = vdwg.mxu0
          %v1048 = vsel %vm954, %v944, 0
          %v1051 = vsel %vm954, %v948, 0
          %1053 = vmatprep.subr.bf16.mxu0 0
          %1054 = vmatpush1.bf16.xpose.msra.mxu0 %v1051
          %1055 = vmatprep.subr.bf16.mxu0 0
          %1056 = vmatpush1.bf16.xpose.msra.mxu0 0
          %1057 = vmatprep.subr.bf16.mxu0 0
          %1058 = vmatpush1.bf16.xpose.msra.mxu0 0
          %1059 = vmatprep.subr.bf16.mxu0 0
          %1060 = vmatpush1.bf16.xpose.msra.mxu0 0
          %1061 = vmatprep.subr.bf16.mxu0 0
          %1062 = vmatpush1.bf16.xpose.msra.mxu0 0
          %1063 = vmatprep.subr.bf16.mxu0 0
          %1064 = vmatpush1.bf16.xpose.msra.mxu0 0
          %1065 = vmatprep.subr.bf16.mxu0 0
          %1066 = vmatpush1.bf16.xpose.msra.mxu0 0
          %1067 = vmatprep.subr.bf16.mxu0 0
          %1068 = vmatpush1.bf16.xpose.msra.mxu0 0
          %1069 = vmatprep.subr.bf16.mxu0 0
          %1070 = vmatpush1.bf16.xpose.msra.mxu0 0
          %1071 = vmatprep.subr.bf16.mxu0 0
          %1072 = vmatpush1.bf16.xpose.msra.mxu0 0
          %1073 = vmatprep.subr.bf16.mxu0 0
          %1074 = vmatpush1.bf16.xpose.msra.mxu0 0
          %1075 = vmatprep.subr.bf16.mxu0 0
          %1076 = vmatpush1.bf16.xpose.msra.mxu0 0
          %1077 = vmatprep.subr.bf16.mxu0 0
          %1078 = vmatpush1.bf16.xpose.msra.mxu0 0
          %1079 = vmatprep.subr.bf16.mxu0 0
          %1080 = vmatpush1.bf16.xpose.msra.mxu0 0
          %1081 = vmatprep.subr.bf16.mxu0 0
          %1082 = vmatpush1.bf16.xpose.msra.mxu0 0
          %1083 = vmatprep.subr.bf16.mxu0 0
          %1084 = vmatpush1.bf16.xpose.msra.mxu0 0
          %1085 = vmatprep.mubr.bf16.mxu0 0
          %1086 = vmatmul.mubr.bf16.gmra.mrb[0].mxu0 %v1048
          %v1087 = vpop.f32.mrb[0].mxu0
          %v1088 = vadd.f32 0.0, %v1087
          %v1089 = vpop.f32.mrb[0].mxu0
          %v1090 = vpop.f32.mrb[0].mxu0
          %v1091 = vpop.f32.mrb[0].mxu0
          %1092 = vdwg.mxu0
          %v1094 = vsel %vm954, %v945, 0
          %v1097 = vsel %vm954, %v949, 0
          %1099 = vmatprep.subr.bf16.mxu0 0
          %1100 = vmatpush1.bf16.xpose.msra.mxu0 %v1097
          %1101 = vmatprep.subr.bf16.mxu0 0
          %1102 = vmatpush1.bf16.xpose.msra.mxu0 0
          %1103 = vmatprep.subr.bf16.mxu0 0
          %1104 = vmatpush1.bf16.xpose.msra.mxu0 0
          %1105 = vmatprep.subr.bf16.mxu0 0
          %1106 = vmatpush1.bf16.xpose.msra.mxu0 0
          %1107 = vmatprep.subr.bf16.mxu0 0
          %1108 = vmatpush1.bf16.xpose.msra.mxu0 0
          %1109 = vmatprep.subr.bf16.mxu0 0
          %1110 = vmatpush1.bf16.xpose.msra.mxu0 0
          %1111 = vmatprep.subr.bf16.mxu0 0
          %1112 = vmatpush1.bf16.xpose.msra.mxu0 0
          %1113 = vmatprep.subr.bf16.mxu0 0
          %1114 = vmatpush1.bf16.xpose.msra.mxu0 0
          %1115 = vmatprep.subr.bf16.mxu0 0
          %1116 = vmatpush1.bf16.xpose.msra.mxu0 0
          %1117 = vmatprep.subr.bf16.mxu0 0
          %1118 = vmatpush1.bf16.xpose.msra.mxu0 0
          %1119 = vmatprep.subr.bf16.mxu0 0
          %1120 = vmatpush1.bf16.xpose.msra.mxu0 0
          %1121 = vmatprep.subr.bf16.mxu0 0
          %1122 = vmatpush1.bf16.xpose.msra.mxu0 0
          %1123 = vmatprep.subr.bf16.mxu0 0
          %1124 = vmatpush1.bf16.xpose.msra.mxu0 0
          %1125 = vmatprep.subr.bf16.mxu0 0
          %1126 = vmatpush1.bf16.xpose.msra.mxu0 0
          %1127 = vmatprep.subr.bf16.mxu0 0
          %1128 = vmatpush1.bf16.xpose.msra.mxu0 0
          %1129 = vmatprep.subr.bf16.mxu0 0
          %1130 = vmatpush1.bf16.xpose.msra.mxu0 0
          %1131 = vmatprep.mubr.bf16.mxu0 0
          %1132 = vmatmul.mubr.bf16.gmra.mrb[0].mxu0 %v1094
          %v1133 = vpop.f32.mrb[0].mxu0
          %v1134 = vadd.f32 0.0, %v1133
          %v1135 = vpop.f32.mrb[0].mxu0
          %v1136 = vpop.f32.mrb[0].mxu0
          %v1137 = vpop.f32.mrb[0].mxu0
          %1138 = vdwg.mxu0
          %v1139 = vmul.f32 %v996, 0.35355338
          %v1140 = vmul.f32 %v1042, 0.35355338
          %v1141 = vmul.f32 %v1088, 0.35355338
          %v1142 = vmul.f32 %v1134, 0.35355338
          %v1144 = vlaneseq
          %v1145 = vshrl.u32 %v1144, 7
          %v1146 = vsub.s32 0, %v1145
          %v1147 = vrot.slane %v933, %v1146
          %v1149 = vadd.f32 %v1139, %v1147
          %v1150 = vadd.f32 %v1140, %v1147
          %v1151 = vadd.f32 %v1141, %v1147
          %v1152 = vadd.f32 %v1142, %v1147
          %v1153 = vsel %vm954, %v1149, -inf
          %1154 = vmax.xlane.f32.xlu0 %v1153
          %v1155 = vpop.xlane.xlu0 %1154
          %v1156 = vsel %vm954, %v1150, -inf
          %1157 = vmax.xlane.f32.xlu0 %v1156
          %v1158 = vpop.xlane.xlu0 %1157
          %v1159 = vsel %vm954, %v1151, -inf
          %1160 = vmax.xlane.f32.xlu0 %v1159
          %v1161 = vpop.xlane.xlu0 %1160
          %v1162 = vsel %vm954, %v1152, -inf
          %1163 = vmax.xlane.f32.xlu0 %v1162
          %v1164 = vpop.xlane.xlu0 %1163
          %v1165 = vsub.f32 %v1149, %v1155
          %v1166 = vsub.f32 %v1150, %v1158
          %v1167 = vsub.f32 %v1151, %v1161
          %v1168 = vsub.f32 %v1152, %v1164
          %v1169 = vmul.f32 %v1165, 1.442695
          %v1170 = vpow.pop %v1169
          %v1171 = vmul.f32 %v1166, 1.442695
          %v1172 = vpow.pop %v1171
          %v1173 = vmul.f32 %v1167, 1.442695
          %v1174 = vpow.pop %v1173
          %v1175 = vmul.f32 %v1168, 1.442695
          %v1176 = vpow.pop %v1175
          %v1177 = vsel %vm954, %v1170, 0.0
          %1178 = vadd.xlane.f32.xlu0 %v1177
          %v1179 = vpop.xlane.xlu0 %1178
          %v1180 = vsel %vm954, %v1172, 0.0
          %1181 = vadd.xlane.f32.xlu0 %v1180
          %v1182 = vpop.xlane.xlu0 %1181
          %v1183 = vsel %vm954, %v1174, 0.0
          %1184 = vadd.xlane.f32.xlu0 %v1183
          %v1185 = vpop.xlane.xlu0 %1184
          %v1186 = vsel %vm954, %v1176, 0.0
          %1187 = vadd.xlane.f32.xlu0 %v1186
          %v1188 = vpop.xlane.xlu0 %1187
          %v1189 = vrcp.pop %v1179
          %v1190 = vrcp.pop %v1182
          %v1191 = vrcp.pop %v1185
          %v1192 = vrcp.pop %v1188
          %v1193 = vmul.f32 %v1170, %v1189
          %v1194 = vmul.f32 %v1172, %v1190
          %v1195 = vmul.f32 %v1174, %v1191
          %v1196 = vmul.f32 %v1176, %v1192
          %v1197 = vpack.c.bf16 %v1193, %v1193
          %v1198 = vpack.c.bf16 %v1194, %v1194
          %v1199 = vpack.c.bf16 %v1195, %v1195
          %v1200 = vpack.c.bf16 %v1196, %v1196
          %v1202 = vsel %vm954, %v1197, 0
          %vm1204 = vcmask 1043456
          %v1206 = vsel %vm1204, %v950, 0
          %1208 = vmatprep.subr.bf16.mxu0 0
          %1209 = vmatpush1.bf16.msra.mxu0 %v1206
          %1210 = vmatprep.subr.bf16.mxu0 0
          %1211 = vmatpush1.bf16.msra.mxu0 0
          %1212 = vmatprep.subr.bf16.mxu0 0
          %1213 = vmatpush1.bf16.msra.mxu0 0
          %1214 = vmatprep.subr.bf16.mxu0 0
          %1215 = vmatpush1.bf16.msra.mxu0 0
          %1216 = vmatprep.subr.bf16.mxu0 0
          %1217 = vmatpush1.bf16.msra.mxu0 0
          %1218 = vmatprep.subr.bf16.mxu0 0
          %1219 = vmatpush1.bf16.msra.mxu0 0
          %1220 = vmatprep.subr.bf16.mxu0 0
          %1221 = vmatpush1.bf16.msra.mxu0 0
          %1222 = vmatprep.subr.bf16.mxu0 0
          %1223 = vmatpush1.bf16.msra.mxu0 0
          %1224 = vmatprep.subr.bf16.mxu0 0
          %1225 = vmatpush1.bf16.msra.mxu0 0
          %1226 = vmatprep.subr.bf16.mxu0 0
          %1227 = vmatpush1.bf16.msra.mxu0 0
          %1228 = vmatprep.subr.bf16.mxu0 0
          %1229 = vmatpush1.bf16.msra.mxu0 0
          %1230 = vmatprep.subr.bf16.mxu0 0
          %1231 = vmatpush1.bf16.msra.mxu0 0
          %1232 = vmatprep.subr.bf16.mxu0 0
          %1233 = vmatpush1.bf16.msra.mxu0 0
          %1234 = vmatprep.subr.bf16.mxu0 0
          %1235 = vmatpush1.bf16.msra.mxu0 0
          %1236 = vmatprep.subr.bf16.mxu0 0
          %1237 = vmatpush1.bf16.msra.mxu0 0
          %1238 = vmatprep.subr.bf16.mxu0 0
          %1239 = vmatpush1.bf16.msra.mxu0 0
          %1240 = vmatprep.mubr.bf16.mxu0 0
          %1241 = vmatmul.mubr.bf16.gmra.mrb[0].mxu0 %v1202
          %v1242 = vpop.f32.mrb[0].mxu0
          %v1243 = vadd.f32 0.0, %v1242
          %v1244 = vpop.f32.mrb[0].mxu0
          %v1245 = vpop.f32.mrb[0].mxu0
          %v1246 = vpop.f32.mrb[0].mxu0
          %1247 = vdwg.mxu0
          %v1249 = vsel %vm954, %v1198, 0
          %v1252 = vsel %vm1204, %v951, 0
          %1254 = vmatprep.subr.bf16.mxu0 0
          %1255 = vmatpush1.bf16.msra.mxu0 %v1252
          %1256 = vmatprep.subr.bf16.mxu0 0
          %1257 = vmatpush1.bf16.msra.mxu0 0
          %1258 = vmatprep.subr.bf16.mxu0 0
          %1259 = vmatpush1.bf16.msra.mxu0 0
          %1260 = vmatprep.subr.bf16.mxu0 0
          %1261 = vmatpush1.bf16.msra.mxu0 0
          %1262 = vmatprep.subr.bf16.mxu0 0
          %1263 = vmatpush1.bf16.msra.mxu0 0
          %1264 = vmatprep.subr.bf16.mxu0 0
          %1265 = vmatpush1.bf16.msra.mxu0 0
          %1266 = vmatprep.subr.bf16.mxu0 0
          %1267 = vmatpush1.bf16.msra.mxu0 0
          %1268 = vmatprep.subr.bf16.mxu0 0
          %1269 = vmatpush1.bf16.msra.mxu0 0
          %1270 = vmatprep.subr.bf16.mxu0 0
          %1271 = vmatpush1.bf16.msra.mxu0 0
          %1272 = vmatprep.subr.bf16.mxu0 0
          %1273 = vmatpush1.bf16.msra.mxu0 0
          %1274 = vmatprep.subr.bf16.mxu0 0
          %1275 = vmatpush1.bf16.msra.mxu0 0
          %1276 = vmatprep.subr.bf16.mxu0 0
          %1277 = vmatpush1.bf16.msra.mxu0 0
          %1278 = vmatprep.subr.bf16.mxu0 0
          %1279 = vmatpush1.bf16.msra.mxu0 0
          %1280 = vmatprep.subr.bf16.mxu0 0
          %1281 = vmatpush1.bf16.msra.mxu0 0
          %1282 = vmatprep.subr.bf16.mxu0 0
          %1283 = vmatpush1.bf16.msra.mxu0 0
          %1284 = vmatprep.subr.bf16.mxu0 0
          %1285 = vmatpush1.bf16.msra.mxu0 0
          %1286 = vmatprep.mubr.bf16.mxu0 0
          %1287 = vmatmul.mubr.bf16.gmra.mrb[0].mxu0 %v1249
          %v1288 = vpop.f32.mrb[0].mxu0
          %v1289 = vadd.f32 0.0, %v1288
          %v1290 = vpop.f32.mrb[0].mxu0
          %v1291 = vpop.f32.mrb[0].mxu0
          %v1292 = vpop.f32.mrb[0].mxu0
          %1293 = vdwg.mxu0
          %v1295 = vsel %vm954, %v1199, 0
          %v1298 = vsel %vm1204, %v952, 0
          %1300 = vmatprep.subr.bf16.mxu0 0
          %1301 = vmatpush1.bf16.msra.mxu0 %v1298
          %1302 = vmatprep.subr.bf16.mxu0 0
          %1303 = vmatpush1.bf16.msra.mxu0 0
          %1304 = vmatprep.subr.bf16.mxu0 0
          %1305 = vmatpush1.bf16.msra.mxu0 0
          %1306 = vmatprep.subr.bf16.mxu0 0
          %1307 = vmatpush1.bf16.msra.mxu0 0
          %1308 = vmatprep.subr.bf16.mxu0 0
          %1309 = vmatpush1.bf16.msra.mxu0 0
          %1310 = vmatprep.subr.bf16.mxu0 0
          %1311 = vmatpush1.bf16.msra.mxu0 0
          %1312 = vmatprep.subr.bf16.mxu0 0
          %1313 = vmatpush1.bf16.msra.mxu0 0
          %1314 = vmatprep.subr.bf16.mxu0 0
          %1315 = vmatpush1.bf16.msra.mxu0 0
          %1316 = vmatprep.subr.bf16.mxu0 0
          %1317 = vmatpush1.bf16.msra.mxu0 0
          %1318 = vmatprep.subr.bf16.mxu0 0
          %1319 = vmatpush1.bf16.msra.mxu0 0
          %1320 = vmatprep.subr.bf16.mxu0 0
          %1321 = vmatpush1.bf16.msra.mxu0 0
          %1322 = vmatprep.subr.bf16.mxu0 0
          %1323 = vmatpush1.bf16.msra.mxu0 0
          %1324 = vmatprep.subr.bf16.mxu0 0
          %1325 = vmatpush1.bf16.msra.mxu0 0
          %1326 = vmatprep.subr.bf16.mxu0 0
          %1327 = vmatpush1.bf16.msra.mxu0 0
          %1328 = vmatprep.subr.bf16.mxu0 0
          %1329 = vmatpush1.bf16.msra.mxu0 0
          %1330 = vmatprep.subr.bf16.mxu0 0
          %1331 = vmatpush1.bf16.msra.mxu0 0
          %1332 = vmatprep.mubr.bf16.mxu0 0
          %1333 = vmatmul.mubr.bf16.gmra.mrb[0].mxu0 %v1295
          %v1334 = vpop.f32.mrb[0].mxu0
          %v1335 = vadd.f32 0.0, %v1334
          %v1336 = vpop.f32.mrb[0].mxu0
          %v1337 = vpop.f32.mrb[0].mxu0
          %v1338 = vpop.f32.mrb[0].mxu0
          %1339 = vdwg.mxu0
          %v1341 = vsel %vm954, %v1200, 0
          %v1344 = vsel %vm1204, %v953, 0
          %1346 = vmatprep.subr.bf16.mxu0 0
          %1347 = vmatpush1.bf16.msra.mxu0 %v1344
          %1348 = vmatprep.subr.bf16.mxu0 0
          %1349 = vmatpush1.bf16.msra.mxu0 0
          %1350 = vmatprep.subr.bf16.mxu0 0
          %1351 = vmatpush1.bf16.msra.mxu0 0
          %1352 = vmatprep.subr.bf16.mxu0 0
          %1353 = vmatpush1.bf16.msra.mxu0 0
          %1354 = vmatprep.subr.bf16.mxu0 0
          %1355 = vmatpush1.bf16.msra.mxu0 0
          %1356 = vmatprep.subr.bf16.mxu0 0
          %1357 = vmatpush1.bf16.msra.mxu0 0
          %1358 = vmatprep.subr.bf16.mxu0 0
          %1359 = vmatpush1.bf16.msra.mxu0 0
          %1360 = vmatprep.subr.bf16.mxu0 0
          %1361 = vmatpush1.bf16.msra.mxu0 0
          %1362 = vmatprep.subr.bf16.mxu0 0
          %1363 = vmatpush1.bf16.msra.mxu0 0
          %1364 = vmatprep.subr.bf16.mxu0 0
          %1365 = vmatpush1.bf16.msra.mxu0 0
          %1366 = vmatprep.subr.bf16.mxu0 0
          %1367 = vmatpush1.bf16.msra.mxu0 0
          %1368 = vmatprep.subr.bf16.mxu0 0
          %1369 = vmatpush1.bf16.msra.mxu0 0
          %1370 = vmatprep.subr.bf16.mxu0 0
          %1371 = vmatpush1.bf16.msra.mxu0 0
          %1372 = vmatprep.subr.bf16.mxu0 0
          %1373 = vmatpush1.bf16.msra.mxu0 0
          %1374 = vmatprep.subr.bf16.mxu0 0
          %1375 = vmatpush1.bf16.msra.mxu0 0
          %1376 = vmatprep.subr.bf16.mxu0 0
          %1377 = vmatpush1.bf16.msra.mxu0 0
          %1378 = vmatprep.mubr.bf16.mxu0 0
          %1379 = vmatmul.mubr.bf16.gmra.mrb[0].mxu0 %v1341
          %v1380 = vpop.f32.mrb[0].mxu0
          %v1381 = vadd.f32 0.0, %v1380
          %v1382 = vpop.f32.mrb[0].mxu0
          %v1383 = vpop.f32.mrb[0].mxu0
          %v1384 = vpop.f32.mrb[0].mxu0
          %1385 = vdwg.mxu0
          %v1386 = vpack.c.bf16 %v1243, %v1243
          %1387 = vst.msk [vmem:[#allocation3] sm:$0xf] %vm875, %v1386
          %v1388 = vpack.c.bf16 %v1289, %v1289
          %v1390 = vunpack.c.l.b16 %v1388
          %v1391 = vpack.c.b16 %v1390, %v1390
          %1392 = vrot.lane.b32.xlu0 %v1391, 8
          %v1393 = vpop.permute.xlu0 %1392
          %vm1395 = vcmask 126016
          %1396 = vst.msk [vmem:[#allocation3] sm:$0xf] %vm1395, %v1393
          %v1397 = vpack.c.bf16 %v1335, %v1335
          %v1399 = vunpack.c.l.b16 %v1397
          %v1400 = vpack.c.b16 %v1399, %v1399
          %1401 = vrot.lane.b32.xlu0 %v1400, 16
          %v1402 = vpop.permute.xlu0 %1401
          %vm1404 = vcmask 191616
          %1405 = vst.msk [vmem:[#allocation3] sm:$0xf] %vm1404, %v1402
          %v1406 = vpack.c.bf16 %v1381, %v1381
          %v1408 = vunpack.c.l.b16 %v1406
          %v1409 = vpack.c.b16 %v1408, %v1408
          %1410 = vrot.lane.b32.xlu0 %v1409, 24
          %v1411 = vpop.permute.xlu0 %1410
          %vm1413 = vcmask 257216
          %1414 = vst.msk [vmem:[#allocation3] sm:$0xf] %vm1413, %v1411
          %v1415 = vld [vmem:[#allocation3] sm:$0xf]
          %v1416 = vld [vmem:[%s738] sm:$0x1]
          %v1418 = vlaneseq
          %v1419 = vshrl.u32 %v1418, 7
          %v1420 = vsub.s32 0, %v1419
          %v1421 = vrot.slane %v1416, %v1420
          %v1427 = vunpack.c.l.b16 %v934
          %v1428 = vunpack.c.l.b16 %v935
          %v1429 = vunpack.c.l.b16 %v936
          %v1430 = vunpack.c.l.b16 %v937
          %v1431 = vpack.c.b16 %v1428, %v1427
          %v1432 = vpack.c.b16 %v1430, %v1429
          %v1436 = vsel %vm830, %v1415, 0
          %1438 = vmatprep.subr.bf16.mxu0 0
          %1439 = vmatpush1.bf16.msra.mxu0 %v1431
          %1440 = vmatprep.subr.bf16.mxu0 0
          %1441 = vmatpush1.bf16.msra.mxu0 %v1432
          %1442 = vmatprep.subr.bf16.mxu0 0
          %1443 = vmatpush1.bf16.msra.mxu0 0
          %1444 = vmatprep.subr.bf16.mxu0 0
          %1445 = vmatpush1.bf16.msra.mxu0 0
          %1446 = vmatprep.subr.bf16.mxu0 0
          %1447 = vmatpush1.bf16.msra.mxu0 0
          %1448 = vmatprep.subr.bf16.mxu0 0
          %1449 = vmatpush1.bf16.msra.mxu0 0
          %1450 = vmatprep.subr.bf16.mxu0 0
          %1451 = vmatpush1.bf16.msra.mxu0 0
          %1452 = vmatprep.subr.bf16.mxu0 0
          %1453 = vmatpush1.bf16.msra.mxu0 0
          %1454 = vmatprep.subr.bf16.mxu0 0
          %1455 = vmatpush1.bf16.msra.mxu0 0
          %1456 = vmatprep.subr.bf16.mxu0 0
          %1457 = vmatpush1.bf16.msra.mxu0 0
          %1458 = vmatprep.subr.bf16.mxu0 0
          %1459 = vmatpush1.bf16.msra.mxu0 0
          %1460 = vmatprep.subr.bf16.mxu0 0
          %1461 = vmatpush1.bf16.msra.mxu0 0
          %1462 = vmatprep.subr.bf16.mxu0 0
          %1463 = vmatpush1.bf16.msra.mxu0 0
          %1464 = vmatprep.subr.bf16.mxu0 0
          %1465 = vmatpush1.bf16.msra.mxu0 0
          %1466 = vmatprep.subr.bf16.mxu0 0
          %1467 = vmatpush1.bf16.msra.mxu0 0
          %1468 = vmatprep.subr.bf16.mxu0 0
          %1469 = vmatpush1.bf16.msra.mxu0 0
          %1470 = vmatprep.mubr.bf16.mxu0 0
          %1471 = vmatmul.mubr.bf16.gmra.mrb[0].mxu0 %v1436
          %v1472 = vpop.f32.mrb[0].mxu0
          %v1473 = vadd.f32 %v1421, %v1472
          %v1474 = vpop.f32.mrb[0].mxu0
          %v1475 = vpop.f32.mrb[0].mxu0
          %v1476 = vpop.f32.mrb[0].mxu0
          %1477 = vdwg.mxu0
          %v1478 = vadd.f32 %v805, %v1473
          %v1479 = vld [vmem:[%s741] sm:$0x1]
          %v1480 = vld [vmem:[%s744] sm:$0x1]
          %v1481 = vsel %vm830, %v1478, 0.0
          %1482 = vadd.xlane.f32.xlu0 %v1481
          %v1483 = vpop.xlane.xlu0 %1482
          %v1484 = vrcp.pop 32.0
          %v1485 = vmul.f32 %v1483, %v1484
          %v1486 = vsub.f32 %v1478, %v1485
          %v1487 = vmul.f32 %v1486, %v1486
          %v1488 = vsel %vm830, %v1487, 0.0
          %1489 = vadd.xlane.f32.xlu0 %v1488
          %v1490 = vpop.xlane.xlu0 %1489
          %v1491 = vmul.f32 %v1490, %v1484
          %v1492 = vadd.f32 %v1491, 1e-12
          %v1493 = vrsqrt.pop %v1492
          %v1494 = vmul.f32 %v1486, %v1493
          %v1496 = vlaneseq
          %v1497 = vshrl.u32 %v1496, 7
          %v1498 = vsub.s32 0, %v1497
          %v1499 = vrot.slane %v1479, %v1498
          %v1501 = vmul.f32 %v1494, %v1499
          %v1503 = vlaneseq
          %v1504 = vshrl.u32 %v1503, 7
          %v1505 = vsub.s32 0, %v1504
          %v1506 = vrot.slane %v1480, %v1505
          %v1508 = vadd.f32 %v1501, %v1506
          %v1509 = vpack.c.bf16 %v1508, %v1508
          %v1510 = vld [vmem:[%s749] sm:$0xf]
          %v1511 = vld [vmem:[%s749 + $0x4] sm:$0xf]
          %v1512 = vld [vmem:[%s749 + $0x8] sm:$0xf]
          %v1513 = vld [vmem:[%s749 + $0xc] sm:$0xf]
          %v1514 = vld [vmem:[%s752] sm:$0x1]
          %v1516 = vlaneseq
          %v1517 = vshrl.u32 %v1516, 7
          %v1518 = vsub.s32 0, %v1517
          %v1519 = vrot.slane %v1514, %v1518
          %v1525 = vunpack.c.l.b16 %v1510
          %v1526 = vunpack.c.l.b16 %v1511
          %v1527 = vunpack.c.l.b16 %v1512
          %v1528 = vunpack.c.l.b16 %v1513
          %v1529 = vpack.c.b16 %v1526, %v1525
          %v1530 = vpack.c.b16 %v1528, %v1527
          %v1534 = vsel %vm830, %v1509, 0
          %1536 = vmatprep.subr.bf16.mxu0 0
          %1537 = vmatpush1.bf16.msra.mxu0 %v1529
          %1538 = vmatprep.subr.bf16.mxu0 0
          %1539 = vmatpush1.bf16.msra.mxu0 %v1530
          %1540 = vmatprep.subr.bf16.mxu0 0
          %1541 = vmatpush1.bf16.msra.mxu0 0
          %1542 = vmatprep.subr.bf16.mxu0 0
          %1543 = vmatpush1.bf16.msra.mxu0 0
          %1544 = vmatprep.subr.bf16.mxu0 0
          %1545 = vmatpush1.bf16.msra.mxu0 0
          %1546 = vmatprep.subr.bf16.mxu0 0
          %1547 = vmatpush1.bf16.msra.mxu0 0
          %1548 = vmatprep.subr.bf16.mxu0 0
          %1549 = vmatpush1.bf16.msra.mxu0 0
          %1550 = vmatprep.subr.bf16.mxu0 0
          %1551 = vmatpush1.bf16.msra.mxu0 0
          %1552 = vmatprep.subr.bf16.mxu0 0
          %1553 = vmatpush1.bf16.msra.mxu0 0
          %1554 = vmatprep.subr.bf16.mxu0 0
          %1555 = vmatpush1.bf16.msra.mxu0 0
          %1556 = vmatprep.subr.bf16.mxu0 0
          %1557 = vmatpush1.bf16.msra.mxu0 0
          %1558 = vmatprep.subr.bf16.mxu0 0
          %1559 = vmatpush1.bf16.msra.mxu0 0
          %1560 = vmatprep.subr.bf16.mxu0 0
          %1561 = vmatpush1.bf16.msra.mxu0 0
          %1562 = vmatprep.subr.bf16.mxu0 0
          %1563 = vmatpush1.bf16.msra.mxu0 0
          %1564 = vmatprep.subr.bf16.mxu0 0
          %1565 = vmatpush1.bf16.msra.mxu0 0
          %1566 = vmatprep.subr.bf16.mxu0 0
          %1567 = vmatpush1.bf16.msra.mxu0 0
          %1568 = vmatprep.mubr.bf16.mxu0 0
          %1569 = vmatmul.mubr.bf16.gmra.mrb[0].mxu0 %v1534
          %v1570 = vpop.f32.mrb[0].mxu0
          %v1571 = vadd.f32 %v1519, %v1570
          %v1572 = vpop.f32.mrb[0].mxu0
          %v1573 = vpop.f32.mrb[0].mxu0
          %v1574 = vpop.f32.mrb[0].mxu0
          %1575 = vdwg.mxu0
          %v1576 = vmul.f32 %v1571, %v1571
          %v1577 = vmul.f32 %v1571, %v1576
          %v1578 = vmul.f32 %v1577, 0.044715
          %v1579 = vadd.f32 %v1571, %v1578
          %v1580 = vmul.f32 %v1579, 0.7978846
          %v1581 = vtanh.pop %v1580
          %v1582 = vadd.f32 %v1581, 1.0
          %v1583 = vmul.f32 %v1582, 0.5
          %v1584 = vmul.f32 %v1571, %v1583
          %v1585 = vpack.c.bf16 %v1584, %v1584
          %v1586 = vld [vmem:[%s757] sm:$0xf]
          %v1587 = vld [vmem:[%s757 + $0x4] sm:$0xf]
          %v1588 = vld [vmem:[%s757 + $0x8] sm:$0xf]
          %v1589 = vld [vmem:[%s757 + $0xc] sm:$0xf]
          %v1590 = vld [vmem:[%s757 + $0x10] sm:$0xf]
          %v1591 = vld [vmem:[%s757 + $0x14] sm:$0xf]
          %v1592 = vld [vmem:[%s757 + $0x18] sm:$0xf]
          %v1593 = vld [vmem:[%s757 + $0x1c] sm:$0xf]
          %v1594 = vld [vmem:[%s760] sm:$0x1]
          %v1596 = vlaneseq
          %v1597 = vshrl.u32 %v1596, 7
          %v1598 = vsub.s32 0, %v1597
          %v1599 = vrot.slane %v1594, %v1598
          %v1609 = vunpack.c.l.b16 %v1586
          %v1610 = vunpack.c.l.b16 %v1587
          %v1611 = vunpack.c.l.b16 %v1588
          %v1612 = vunpack.c.l.b16 %v1589
          %v1613 = vunpack.c.l.b16 %v1590
          %v1614 = vunpack.c.l.b16 %v1591
          %v1615 = vunpack.c.l.b16 %v1592
          %v1616 = vunpack.c.l.b16 %v1593
          %v1617 = vpack.c.b16 %v1610, %v1609
          %v1618 = vpack.c.b16 %v1612, %v1611
          %v1619 = vpack.c.b16 %v1614, %v1613
          %v1620 = vpack.c.b16 %v1616, %v1615
          %vm1625 = vcmask 523264
          %v1627 = vsel %vm1625, %v1585, 0
          %1629 = vmatprep.subr.bf16.mxu0 0
          %1630 = vmatpush1.bf16.msra.mxu0 %v1617
          %1631 = vmatprep.subr.bf16.mxu0 0
          %1632 = vmatpush1.bf16.msra.mxu0 %v1618
          %1633 = vmatprep.subr.bf16.mxu0 0
          %1634 = vmatpush1.bf16.msra.mxu0 %v1619
          %1635 = vmatprep.subr.bf16.mxu0 0
          %1636 = vmatpush1.bf16.msra.mxu0 %v1620
          %1637 = vmatprep.subr.bf16.mxu0 0
          %1638 = vmatpush1.bf16.msra.mxu0 0
          %1639 = vmatprep.subr.bf16.mxu0 0
          %1640 = vmatpush1.bf16.msra.mxu0 0
          %1641 = vmatprep.subr.bf16.mxu0 0
          %1642 = vmatpush1.bf16.msra.mxu0 0
          %1643 = vmatprep.subr.bf16.mxu0 0
          %1644 = vmatpush1.bf16.msra.mxu0 0
          %1645 = vmatprep.subr.bf16.mxu0 0
          %1646 = vmatpush1.bf16.msra.mxu0 0
          %1647 = vmatprep.subr.bf16.mxu0 0
          %1648 = vmatpush1.bf16.msra.mxu0 0
          %1649 = vmatprep.subr.bf16.mxu0 0
          %1650 = vmatpush1.bf16.msra.mxu0 0
          %1651 = vmatprep.subr.bf16.mxu0 0
          %1652 = vmatpush1.bf16.msra.mxu0 0
          %1653 = vmatprep.subr.bf16.mxu0 0
          %1654 = vmatpush1.bf16.msra.mxu0 0
          %1655 = vmatprep.subr.bf16.mxu0 0
          %1656 = vmatpush1.bf16.msra.mxu0 0
          %1657 = vmatprep.subr.bf16.mxu0 0
          %1658 = vmatpush1.bf16.msra.mxu0 0
          %1659 = vmatprep.subr.bf16.mxu0 0
          %1660 = vmatpush1.bf16.msra.mxu0 0
          %1661 = vmatprep.mubr.bf16.mxu0 0
          %1662 = vmatmul.mubr.bf16.gmra.mrb[0].mxu0 %v1627
          %v1663 = vpop.f32.mrb[0].mxu0
          %v1664 = vadd.f32 %v1599, %v1663
          %v1665 = vpop.f32.mrb[0].mxu0
          %v1666 = vpop.f32.mrb[0].mxu0
          %v1667 = vpop.f32.mrb[0].mxu0
          %1668 = vdwg.mxu0
          %v1669 = vadd.f32 %v1508, %v1664
          %v1670 = vld [vmem:[%s763] sm:$0x1]
          %v1671 = vld [vmem:[%s766] sm:$0x1]
          %v1672 = vsel %vm830, %v1669, 0.0
          %1673 = vadd.xlane.f32.xlu0 %v1672
          %v1674 = vpop.xlane.xlu0 %1673
          %v1675 = vmul.f32 %v1674, %v1484
          %v1676 = vsub.f32 %v1669, %v1675
          %v1677 = vmul.f32 %v1676, %v1676
          %v1678 = vsel %vm830, %v1677, 0.0
          %1679 = vadd.xlane.f32.xlu0 %v1678
          %v1680 = vpop.xlane.xlu0 %1679
          %v1681 = vmul.f32 %v1680, %v1484
          %v1682 = vadd.f32 %v1681, 1e-12
          %v1683 = vrsqrt.pop %v1682
          %v1684 = vmul.f32 %v1676, %v1683
          %v1686 = vlaneseq
          %v1687 = vshrl.u32 %v1686, 7
          %v1688 = vsub.s32 0, %v1687
          %v1689 = vrot.slane %v1670, %v1688
          %v1691 = vmul.f32 %v1684, %v1689
          %v1693 = vlaneseq
          %v1694 = vshrl.u32 %v1693, 7
          %v1695 = vsub.s32 0, %v1694
          %v1696 = vrot.slane %v1671, %v1695
          %v1698 = vadd.f32 %v1691, %v1696
          %1699 = vst.msk [vmem:[#allocation2] sm:$0xff] %vm830, %v1698
        $region100: #{tpu_custom_call.1} parent=83 // pred_fallthru
          _
        %p1700 = scmp.eq.s32.totalorder %s39, 1
        // Predicated region
        $region101: #{tpu_custom_call.1} parent=83 // pred_check
          %p1701 = pneg %p1700
        $region102: #{tpu_custom_call.1} parent=83 // pred_check_branch
          %1703 = sbr.rel (%p1701) target = $region104
        $region103: #{tpu_custom_call.1} parent=83 // pred_region
          %v1704 = vld [vmem:[#allocation4] sm:$0x1]
          %v1705 = vld [vmem:[#allocation4 + $0x4] sm:$0x1]
          %v1706 = vld [vmem:[#allocation4 + $0x8] sm:$0x1]
          %v1707 = vld [vmem:[#allocation4 + $0xc] sm:$0x1]
          %v1708 = vld [vmem:[#allocation5] sm:$0xf]
          %v1709 = vld [vmem:[#allocation5 + $0x4] sm:$0xf]
          %v1710 = vld [vmem:[#allocation5 + $0x8] sm:$0xf]
          %v1711 = vld [vmem:[#allocation5 + $0xc] sm:$0xf]
          %v1712 = vld [vmem:[#allocation6] sm:$0xf]
          %v1713 = vld [vmem:[#allocation6 + $0x4] sm:$0xf]
          %v1714 = vld [vmem:[#allocation6 + $0x8] sm:$0xf]
          %v1715 = vld [vmem:[#allocation6 + $0xc] sm:$0xf]
          %vm1716 = vcmask 64512
          %v1718 = vsel %vm1716, %v1704, 0
          %v1721 = vsel %vm1716, %v1708, 0
          %1723 = vmatprep.subr.bf16.mxu0 0
          %1724 = vmatpush1.bf16.xpose.msra.mxu0 %v1721
          %1725 = vmatprep.subr.bf16.mxu0 0
          %1726 = vmatpush1.bf16.xpose.msra.mxu0 0
          %1727 = vmatprep.subr.bf16.mxu0 0
          %1728 = vmatpush1.bf16.xpose.msra.mxu0 0
          %1729 = vmatprep.subr.bf16.mxu0 0
          %1730 = vmatpush1.bf16.xpose.msra.mxu0 0
          %1731 = vmatprep.subr.bf16.mxu0 0
          %1732 = vmatpush1.bf16.xpose.msra.mxu0 0
          %1733 = vmatprep.subr.bf16.mxu0 0
          %1734 = vmatpush1.bf16.xpose.msra.mxu0 0
          %1735 = vmatprep.subr.bf16.mxu0 0
          %1736 = vmatpush1.bf16.xpose.msra.mxu0 0
          %1737 = vmatprep.subr.bf16.mxu0 0
          %1738 = vmatpush1.bf16.xpose.msra.mxu0 0
          %1739 = vmatprep.subr.bf16.mxu0 0
          %1740 = vmatpush1.bf16.xpose.msra.mxu0 0
          %1741 = vmatprep.subr.bf16.mxu0 0
          %1742 = vmatpush1.bf16.xpose.msra.mxu0 0
          %1743 = vmatprep.subr.bf16.mxu0 0
          %1744 = vmatpush1.bf16.xpose.msra.mxu0 0
          %1745 = vmatprep.subr.bf16.mxu0 0
          %1746 = vmatpush1.bf16.xpose.msra.mxu0 0
          %1747 = vmatprep.subr.bf16.mxu0 0
          %1748 = vmatpush1.bf16.xpose.msra.mxu0 0
          %1749 = vmatprep.subr.bf16.mxu0 0
          %1750 = vmatpush1.bf16.xpose.msra.mxu0 0
          %1751 = vmatprep.subr.bf16.mxu0 0
          %1752 = vmatpush1.bf16.xpose.msra.mxu0 0
          %1753 = vmatprep.subr.bf16.mxu0 0
          %1754 = vmatpush1.bf16.xpose.msra.mxu0 0
          %1755 = vmatprep.mubr.bf16.mxu0 0
          %1756 = vmatmul.mubr.bf16.gmra.mrb[0].mxu0 %v1718
          %v1757 = vpop.f32.mrb[0].mxu0
          %v1758 = vadd.f32 0.0, %v1757
          %v1759 = vpop.f32.mrb[0].mxu0
          %v1760 = vpop.f32.mrb[0].mxu0
          %v1761 = vpop.f32.mrb[0].mxu0
          %1762 = vdwg.mxu0
          %v1764 = vsel %vm1716, %v1705, 0
          %v1767 = vsel %vm1716, %v1709, 0
          %1769 = vmatprep.subr.bf16.mxu0 0
          %1770 = vmatpush1.bf16.xpose.msra.mxu0 %v1767
          %1771 = vmatprep.subr.bf16.mxu0 0
          %1772 = vmatpush1.bf16.xpose.msra.mxu0 0
          %1773 = vmatprep.subr.bf16.mxu0 0
          %1774 = vmatpush1.bf16.xpose.msra.mxu0 0
          %1775 = vmatprep.subr.bf16.mxu0 0
          %1776 = vmatpush1.bf16.xpose.msra.mxu0 0
          %1777 = vmatprep.subr.bf16.mxu0 0
          %1778 = vmatpush1.bf16.xpose.msra.mxu0 0
          %1779 = vmatprep.subr.bf16.mxu0 0
          %1780 = vmatpush1.bf16.xpose.msra.mxu0 0
          %1781 = vmatprep.subr.bf16.mxu0 0
          %1782 = vmatpush1.bf16.xpose.msra.mxu0 0
          %1783 = vmatprep.subr.bf16.mxu0 0
          %1784 = vmatpush1.bf16.xpose.msra.mxu0 0
          %1785 = vmatprep.subr.bf16.mxu0 0
          %1786 = vmatpush1.bf16.xpose.msra.mxu0 0
          %1787 = vmatprep.subr.bf16.mxu0 0
          %1788 = vmatpush1.bf16.xpose.msra.mxu0 0
          %1789 = vmatprep.subr.bf16.mxu0 0
          %1790 = vmatpush1.bf16.xpose.msra.mxu0 0
          %1791 = vmatprep.subr.bf16.mxu0 0
          %1792 = vmatpush1.bf16.xpose.msra.mxu0 0
          %1793 = vmatprep.subr.bf16.mxu0 0
          %1794 = vmatpush1.bf16.xpose.msra.mxu0 0
          %1795 = vmatprep.subr.bf16.mxu0 0
          %1796 = vmatpush1.bf16.xpose.msra.mxu0 0
          %1797 = vmatprep.subr.bf16.mxu0 0
          %1798 = vmatpush1.bf16.xpose.msra.mxu0 0
          %1799 = vmatprep.subr.bf16.mxu0 0
          %1800 = vmatpush1.bf16.xpose.msra.mxu0 0
          %1801 = vmatprep.mubr.bf16.mxu0 0
          %1802 = vmatmul.mubr.bf16.gmra.mrb[0].mxu0 %v1764
          %v1803 = vpop.f32.mrb[0].mxu0
          %v1804 = vadd.f32 0.0, %v1803
          %v1805 = vpop.f32.mrb[0].mxu0
          %v1806 = vpop.f32.mrb[0].mxu0
          %v1807 = vpop.f32.mrb[0].mxu0
          %1808 = vdwg.mxu0
          %v1810 = vsel %vm1716, %v1706, 0
          %v1813 = vsel %vm1716, %v1710, 0
          %1815 = vmatprep.subr.bf16.mxu0 0
          %1816 = vmatpush1.bf16.xpose.msra.mxu0 %v1813
          %1817 = vmatprep.subr.bf16.mxu0 0
          %1818 = vmatpush1.bf16.xpose.msra.mxu0 0
          %1819 = vmatprep.subr.bf16.mxu0 0
          %1820 = vmatpush1.bf16.xpose.msra.mxu0 0
          %1821 = vmatprep.subr.bf16.mxu0 0
          %1822 = vmatpush1.bf16.xpose.msra.mxu0 0
          %1823 = vmatprep.subr.bf16.mxu0 0
          %1824 = vmatpush1.bf16.xpose.msra.mxu0 0
          %1825 = vmatprep.subr.bf16.mxu0 0
          %1826 = vmatpush1.bf16.xpose.msra.mxu0 0
          %1827 = vmatprep.subr.bf16.mxu0 0
          %1828 = vmatpush1.bf16.xpose.msra.mxu0 0
          %1829 = vmatprep.subr.bf16.mxu0 0
          %1830 = vmatpush1.bf16.xpose.msra.mxu0 0
          %1831 = vmatprep.subr.bf16.mxu0 0
          %1832 = vmatpush1.bf16.xpose.msra.mxu0 0
          %1833 = vmatprep.subr.bf16.mxu0 0
          %1834 = vmatpush1.bf16.xpose.msra.mxu0 0
          %1835 = vmatprep.subr.bf16.mxu0 0
          %1836 = vmatpush1.bf16.xpose.msra.mxu0 0
          %1837 = vmatprep.subr.bf16.mxu0 0
          %1838 = vmatpush1.bf16.xpose.msra.mxu0 0
          %1839 = vmatprep.subr.bf16.mxu0 0
          %1840 = vmatpush1.bf16.xpose.msra.mxu0 0
          %1841 = vmatprep.subr.bf16.mxu0 0
          %1842 = vmatpush1.bf16.xpose.msra.mxu0 0
          %1843 = vmatprep.subr.bf16.mxu0 0
          %1844 = vmatpush1.bf16.xpose.msra.mxu0 0
          %1845 = vmatprep.subr.bf16.mxu0 0
          %1846 = vmatpush1.bf16.xpose.msra.mxu0 0
          %1847 = vmatprep.mubr.bf16.mxu0 0
          %1848 = vmatmul.mubr.bf16.gmra.mrb[0].mxu0 %v1810
          %v1849 = vpop.f32.mrb[0].mxu0
          %v1850 = vadd.f32 0.0, %v1849
          %v1851 = vpop.f32.mrb[0].mxu0
          %v1852 = vpop.f32.mrb[0].mxu0
          %v1853 = vpop.f32.mrb[0].mxu0
          %1854 = vdwg.mxu0
          %v1856 = vsel %vm1716, %v1707, 0
          %v1859 = vsel %vm1716, %v1711, 0
          %1861 = vmatprep.subr.bf16.mxu0 0
          %1862 = vmatpush1.bf16.xpose.msra.mxu0 %v1859
          %1863 = vmatprep.subr.bf16.mxu0 0
          %1864 = vmatpush1.bf16.xpose.msra.mxu0 0
          %1865 = vmatprep.subr.bf16.mxu0 0
          %1866 = vmatpush1.bf16.xpose.msra.mxu0 0
          %1867 = vmatprep.subr.bf16.mxu0 0
          %1868 = vmatpush1.bf16.xpose.msra.mxu0 0
          %1869 = vmatprep.subr.bf16.mxu0 0
          %1870 = vmatpush1.bf16.xpose.msra.mxu0 0
          %1871 = vmatprep.subr.bf16.mxu0 0
          %1872 = vmatpush1.bf16.xpose.msra.mxu0 0
          %1873 = vmatprep.subr.bf16.mxu0 0
          %1874 = vmatpush1.bf16.xpose.msra.mxu0 0
          %1875 = vmatprep.subr.bf16.mxu0 0
          %1876 = vmatpush1.bf16.xpose.msra.mxu0 0
          %1877 = vmatprep.subr.bf16.mxu0 0
          %1878 = vmatpush1.bf16.xpose.msra.mxu0 0
          %1879 = vmatprep.subr.bf16.mxu0 0
          %1880 = vmatpush1.bf16.xpose.msra.mxu0 0
          %1881 = vmatprep.subr.bf16.mxu0 0
          %1882 = vmatpush1.bf16.xpose.msra.mxu0 0
          %1883 = vmatprep.subr.bf16.mxu0 0
          %1884 = vmatpush1.bf16.xpose.msra.mxu0 0
          %1885 = vmatprep.subr.bf16.mxu0 0
          %1886 = vmatpush1.bf16.xpose.msra.mxu0 0
          %1887 = vmatprep.subr.bf16.mxu0 0
          %1888 = vmatpush1.bf16.xpose.msra.mxu0 0
          %1889 = vmatprep.subr.bf16.mxu0 0
          %1890 = vmatpush1.bf16.xpose.msra.mxu0 0
          %1891 = vmatprep.subr.bf16.mxu0 0
          %1892 = vmatpush1.bf16.xpose.msra.mxu0 0
          %1893 = vmatprep.mubr.bf16.mxu0 0
          %1894 = vmatmul.mubr.bf16.gmra.mrb[0].mxu0 %v1856
          %v1895 = vpop.f32.mrb[0].mxu0
          %v1896 = vadd.f32 0.0, %v1895
          %v1897 = vpop.f32.mrb[0].mxu0
          %v1898 = vpop.f32.mrb[0].mxu0
          %v1899 = vpop.f32.mrb[0].mxu0
          %1900 = vdwg.mxu0
          %v1901 = vmul.f32 %v1758, 0.35355338
          %v1902 = vmul.f32 %v1804, 0.35355338
          %v1903 = vmul.f32 %v1850, 0.35355338
          %v1904 = vmul.f32 %v1896, 0.35355338
          %v1905 = vadd.f32 %v1901, %v933
          %v1906 = vadd.f32 %v1902, %v933
          %v1907 = vadd.f32 %v1903, %v933
          %v1908 = vadd.f32 %v1904, %v933
          %vm1909 = vcmask 57344
          %v1910 = vsel %vm1909, %v1905, -inf
          %1911 = vmax.xlane.f32.xlu0 %v1910
          %v1912 = vpop.xlane.xlu0 %1911
          %v1913 = vsel %vm1909, %v1906, -inf
          %1914 = vmax.xlane.f32.xlu0 %v1913
          %v1915 = vpop.xlane.xlu0 %1914
          %v1916 = vsel %vm1909, %v1907, -inf
          %1917 = vmax.xlane.f32.xlu0 %v1916
          %v1918 = vpop.xlane.xlu0 %1917
          %v1919 = vsel %vm1909, %v1908, -inf
          %1920 = vmax.xlane.f32.xlu0 %v1919
          %v1921 = vpop.xlane.xlu0 %1920
          %v1922 = vsub.f32 %v1905, %v1912
          %v1923 = vsub.f32 %v1906, %v1915
          %v1924 = vsub.f32 %v1907, %v1918
          %v1925 = vsub.f32 %v1908, %v1921
          %v1926 = vmul.f32 %v1922, 1.442695
          %v1927 = vpow.pop %v1926
          %v1928 = vmul.f32 %v1923, 1.442695
          %v1929 = vpow.pop %v1928
          %v1930 = vmul.f32 %v1924, 1.442695
          %v1931 = vpow.pop %v1930
          %v1932 = vmul.f32 %v1925, 1.442695
          %v1933 = vpow.pop %v1932
          %v1934 = vsel %vm1909, %v1927, 0.0
          %1935 = vadd.xlane.f32.xlu0 %v1934
          %v1936 = vpop.xlane.xlu0 %1935
          %v1937 = vsel %vm1909, %v1929, 0.0
          %1938 = vadd.xlane.f32.xlu0 %v1937
          %v1939 = vpop.xlane.xlu0 %1938
          %v1940 = vsel %vm1909, %v1931, 0.0
          %1941 = vadd.xlane.f32.xlu0 %v1940
          %v1942 = vpop.xlane.xlu0 %1941
          %v1943 = vsel %vm1909, %v1933, 0.0
          %1944 = vadd.xlane.f32.xlu0 %v1943
          %v1945 = vpop.xlane.xlu0 %1944
          %v1946 = vrcp.pop %v1936
          %v1947 = vrcp.pop %v1939
          %v1948 = vrcp.pop %v1942
          %v1949 = vrcp.pop %v1945
          %v1950 = vmul.f32 %v1927, %v1946
          %v1951 = vmul.f32 %v1929, %v1947
          %v1952 = vmul.f32 %v1931, %v1948
          %v1953 = vmul.f32 %v1933, %v1949
          %v1954 = vpack.c.bf16 %v1950, %v1950
          %v1955 = vpack.c.bf16 %v1951, %v1951
          %v1956 = vpack.c.bf16 %v1952, %v1952
          %v1957 = vpack.c.bf16 %v1953, %v1953
          %v1959 = vsel %vm1716, %v1954, 0
          %vm1961 = vcmask 1043456
          %v1963 = vsel %vm1961, %v1712, 0
          %1965 = vmatprep.subr.bf16.mxu0 0
          %1966 = vmatpush1.bf16.msra.mxu0 %v1963
          %1967 = vmatprep.subr.bf16.mxu0 0
          %1968 = vmatpush1.bf16.msra.mxu0 0
          %1969 = vmatprep.subr.bf16.mxu0 0
          %1970 = vmatpush1.bf16.msra.mxu0 0
          %1971 = vmatprep.subr.bf16.mxu0 0
          %1972 = vmatpush1.bf16.msra.mxu0 0
          %1973 = vmatprep.subr.bf16.mxu0 0
          %1974 = vmatpush1.bf16.msra.mxu0 0
          %1975 = vmatprep.subr.bf16.mxu0 0
          %1976 = vmatpush1.bf16.msra.mxu0 0
          %1977 = vmatprep.subr.bf16.mxu0 0
          %1978 = vmatpush1.bf16.msra.mxu0 0
          %1979 = vmatprep.subr.bf16.mxu0 0
          %1980 = vmatpush1.bf16.msra.mxu0 0
          %1981 = vmatprep.subr.bf16.mxu0 0
          %1982 = vmatpush1.bf16.msra.mxu0 0
          %1983 = vmatprep.subr.bf16.mxu0 0
          %1984 = vmatpush1.bf16.msra.mxu0 0
          %1985 = vmatprep.subr.bf16.mxu0 0
          %1986 = vmatpush1.bf16.msra.mxu0 0
          %1987 = vmatprep.subr.bf16.mxu0 0
          %1988 = vmatpush1.bf16.msra.mxu0 0
          %1989 = vmatprep.subr.bf16.mxu0 0
          %1990 = vmatpush1.bf16.msra.mxu0 0
          %1991 = vmatprep.subr.bf16.mxu0 0
          %1992 = vmatpush1.bf16.msra.mxu0 0
          %1993 = vmatprep.subr.bf16.mxu0 0
          %1994 = vmatpush1.bf16.msra.mxu0 0
          %1995 = vmatprep.subr.bf16.mxu0 0
          %1996 = vmatpush1.bf16.msra.mxu0 0
          %1997 = vmatprep.mubr.bf16.mxu0 0
          %1998 = vmatmul.mubr.bf16.gmra.mrb[0].mxu0 %v1959
          %v1999 = vpop.f32.mrb[0].mxu0
          %v2000 = vadd.f32 0.0, %v1999
          %v2001 = vpop.f32.mrb[0].mxu0
          %v2002 = vpop.f32.mrb[0].mxu0
          %v2003 = vpop.f32.mrb[0].mxu0
          %2004 = vdwg.mxu0
          %v2006 = vsel %vm1716, %v1955, 0
          %v2009 = vsel %vm1961, %v1713, 0
          %2011 = vmatprep.subr.bf16.mxu0 0
          %2012 = vmatpush1.bf16.msra.mxu0 %v2009
          %2013 = vmatprep.subr.bf16.mxu0 0
          %2014 = vmatpush1.bf16.msra.mxu0 0
          %2015 = vmatprep.subr.bf16.mxu0 0
          %2016 = vmatpush1.bf16.msra.mxu0 0
          %2017 = vmatprep.subr.bf16.mxu0 0
          %2018 = vmatpush1.bf16.msra.mxu0 0
          %2019 = vmatprep.subr.bf16.mxu0 0
          %2020 = vmatpush1.bf16.msra.mxu0 0
          %2021 = vmatprep.subr.bf16.mxu0 0
          %2022 = vmatpush1.bf16.msra.mxu0 0
          %2023 = vmatprep.subr.bf16.mxu0 0
          %2024 = vmatpush1.bf16.msra.mxu0 0
          %2025 = vmatprep.subr.bf16.mxu0 0
          %2026 = vmatpush1.bf16.msra.mxu0 0
          %2027 = vmatprep.subr.bf16.mxu0 0
          %2028 = vmatpush1.bf16.msra.mxu0 0
          %2029 = vmatprep.subr.bf16.mxu0 0
          %2030 = vmatpush1.bf16.msra.mxu0 0
          %2031 = vmatprep.subr.bf16.mxu0 0
          %2032 = vmatpush1.bf16.msra.mxu0 0
          %2033 = vmatprep.subr.bf16.mxu0 0
          %2034 = vmatpush1.bf16.msra.mxu0 0
          %2035 = vmatprep.subr.bf16.mxu0 0
          %2036 = vmatpush1.bf16.msra.mxu0 0
          %2037 = vmatprep.subr.bf16.mxu0 0
          %2038 = vmatpush1.bf16.msra.mxu0 0
          %2039 = vmatprep.subr.bf16.mxu0 0
          %2040 = vmatpush1.bf16.msra.mxu0 0
          %2041 = vmatprep.subr.bf16.mxu0 0
          %2042 = vmatpush1.bf16.msra.mxu0 0
          %2043 = vmatprep.mubr.bf16.mxu0 0
          %2044 = vmatmul.mubr.bf16.gmra.mrb[0].mxu0 %v2006
          %v2045 = vpop.f32.mrb[0].mxu0
          %v2046 = vadd.f32 0.0, %v2045
          %v2047 = vpop.f32.mrb[0].mxu0
          %v2048 = vpop.f32.mrb[0].mxu0
          %v2049 = vpop.f32.mrb[0].mxu0
          %2050 = vdwg.mxu0
          %v2052 = vsel %vm1716, %v1956, 0
          %v2055 = vsel %vm1961, %v1714, 0
          %2057 = vmatprep.subr.bf16.mxu0 0
          %2058 = vmatpush1.bf16.msra.mxu0 %v2055
          %2059 = vmatprep.subr.bf16.mxu0 0
          %2060 = vmatpush1.bf16.msra.mxu0 0
          %2061 = vmatprep.subr.bf16.mxu0 0
          %2062 = vmatpush1.bf16.msra.mxu0 0
          %2063 = vmatprep.subr.bf16.mxu0 0
          %2064 = vmatpush1.bf16.msra.mxu0 0
          %2065 = vmatprep.subr.bf16.mxu0 0
          %2066 = vmatpush1.bf16.msra.mxu0 0
          %2067 = vmatprep.subr.bf16.mxu0 0
          %2068 = vmatpush1.bf16.msra.mxu0 0
          %2069 = vmatprep.subr.bf16.mxu0 0
          %2070 = vmatpush1.bf16.msra.mxu0 0
          %2071 = vmatprep.subr.bf16.mxu0 0
          %2072 = vmatpush1.bf16.msra.mxu0 0
          %2073 = vmatprep.subr.bf16.mxu0 0
          %2074 = vmatpush1.bf16.msra.mxu0 0
          %2075 = vmatprep.subr.bf16.mxu0 0
          %2076 = vmatpush1.bf16.msra.mxu0 0
          %2077 = vmatprep.subr.bf16.mxu0 0
          %2078 = vmatpush1.bf16.msra.mxu0 0
          %2079 = vmatprep.subr.bf16.mxu0 0
          %2080 = vmatpush1.bf16.msra.mxu0 0
          %2081 = vmatprep.subr.bf16.mxu0 0
          %2082 = vmatpush1.bf16.msra.mxu0 0
          %2083 = vmatprep.subr.bf16.mxu0 0
          %2084 = vmatpush1.bf16.msra.mxu0 0
          %2085 = vmatprep.subr.bf16.mxu0 0
          %2086 = vmatpush1.bf16.msra.mxu0 0
          %2087 = vmatprep.subr.bf16.mxu0 0
          %2088 = vmatpush1.bf16.msra.mxu0 0
          %2089 = vmatprep.mubr.bf16.mxu0 0
          %2090 = vmatmul.mubr.bf16.gmra.mrb[0].mxu0 %v2052
          %v2091 = vpop.f32.mrb[0].mxu0
          %v2092 = vadd.f32 0.0, %v2091
          %v2093 = vpop.f32.mrb[0].mxu0
          %v2094 = vpop.f32.mrb[0].mxu0
          %v2095 = vpop.f32.mrb[0].mxu0
          %2096 = vdwg.mxu0
          %v2098 = vsel %vm1716, %v1957, 0
          %v2101 = vsel %vm1961, %v1715, 0
          %2103 = vmatprep.subr.bf16.mxu0 0
          %2104 = vmatpush1.bf16.msra.mxu0 %v2101
          %2105 = vmatprep.subr.bf16.mxu0 0
          %2106 = vmatpush1.bf16.msra.mxu0 0
          %2107 = vmatprep.subr.bf16.mxu0 0
          %2108 = vmatpush1.bf16.msra.mxu0 0
          %2109 = vmatprep.subr.bf16.mxu0 0
          %2110 = vmatpush1.bf16.msra.mxu0 0
          %2111 = vmatprep.subr.bf16.mxu0 0
          %2112 = vmatpush1.bf16.msra.mxu0 0
          %2113 = vmatprep.subr.bf16.mxu0 0
          %2114 = vmatpush1.bf16.msra.mxu0 0
          %2115 = vmatprep.subr.bf16.mxu0 0
          %2116 = vmatpush1.bf16.msra.mxu0 0
          %2117 = vmatprep.subr.bf16.mxu0 0
          %2118 = vmatpush1.bf16.msra.mxu0 0
          %2119 = vmatprep.subr.bf16.mxu0 0
          %2120 = vmatpush1.bf16.msra.mxu0 0
          %2121 = vmatprep.subr.bf16.mxu0 0
          %2122 = vmatpush1.bf16.msra.mxu0 0
          %2123 = vmatprep.subr.bf16.mxu0 0
          %2124 = vmatpush1.bf16.msra.mxu0 0
          %2125 = vmatprep.subr.bf16.mxu0 0
          %2126 = vmatpush1.bf16.msra.mxu0 0
          %2127 = vmatprep.subr.bf16.mxu0 0
          %2128 = vmatpush1.bf16.msra.mxu0 0
          %2129 = vmatprep.subr.bf16.mxu0 0
          %2130 = vmatpush1.bf16.msra.mxu0 0
          %2131 = vmatprep.subr.bf16.mxu0 0
          %2132 = vmatpush1.bf16.msra.mxu0 0
          %2133 = vmatprep.subr.bf16.mxu0 0
          %2134 = vmatpush1.bf16.msra.mxu0 0
          %2135 = vmatprep.mubr.bf16.mxu0 0
          %2136 = vmatmul.mubr.bf16.gmra.mrb[0].mxu0 %v2098
          %v2137 = vpop.f32.mrb[0].mxu0
          %v2138 = vadd.f32 0.0, %v2137
          %v2139 = vpop.f32.mrb[0].mxu0
          %v2140 = vpop.f32.mrb[0].mxu0
          %v2141 = vpop.f32.mrb[0].mxu0
          %2142 = vdwg.mxu0
          %v2143 = vpack.c.bf16 %v2000, %v2000
          %vm2144 = vcmask 57344
          %vm2145 = vsmask.f32 256
          %vm2146 = vmand %vm2144, %vm2145
          %v2147 = vld [vmem:[#allocation3] sm:$0x1]
          %v2148 = vsel %vm2146, %v2143, %v2147
          %2149 = vst [vmem:[#allocation3] sm:$0x1] %v2148
          %v2150 = vpack.c.bf16 %v2046, %v2046
          %v2152 = vunpack.c.l.b16 %v2150
          %v2153 = vpack.c.b16 %v2152, %v2152
          %2154 = vrot.lane.b32.xlu0 %v2153, 8
          %v2155 = vpop.permute.xlu0 %2154
          %vm2157 = vcmask 122944
          %vm2158 = vmand %vm2157, %vm2145
          %v2159 = vld [vmem:[#allocation3] sm:$0x1]
          %v2160 = vsel %vm2158, %v2155, %v2159
          %2161 = vst [vmem:[#allocation3] sm:$0x1] %v2160
          %v2162 = vpack.c.bf16 %v2092, %v2092
          %v2164 = vunpack.c.l.b16 %v2162
          %v2165 = vpack.c.b16 %v2164, %v2164
          %2166 = vrot.lane.b32.xlu0 %v2165, 16
          %v2167 = vpop.permute.xlu0 %2166
          %vm2169 = vcmask 188544
          %vm2170 = vmand %vm2169, %vm2145
          %v2171 = vld [vmem:[#allocation3] sm:$0x1]
          %v2172 = vsel %vm2170, %v2167, %v2171
          %2173 = vst [vmem:[#allocation3] sm:$0x1] %v2172
          %v2174 = vpack.c.bf16 %v2138, %v2138
          %v2176 = vunpack.c.l.b16 %v2174
          %v2177 = vpack.c.b16 %v2176, %v2176
          %2178 = vrot.lane.b32.xlu0 %v2177, 24
          %v2179 = vpop.permute.xlu0 %2178
          %vm2181 = vcmask 254144
          %vm2182 = vmand %vm2181, %vm2145
          %v2183 = vld [vmem:[#allocation3] sm:$0x1]
          %v2184 = vsel %vm2182, %v2179, %v2183
          %2185 = vst [vmem:[#allocation3] sm:$0x1] %v2184
          %v2186 = vld [vmem:[#allocation3] sm:$0x1]
          %v2187 = vld [vmem:[%s738] sm:$0x1]
          %v2192 = vunpack.c.l.b16 %v934
          %v2193 = vunpack.c.l.b16 %v935
          %v2194 = vunpack.c.l.b16 %v936
          %v2195 = vunpack.c.l.b16 %v937
          %v2196 = vpack.c.b16 %v2193, %v2192
          %v2197 = vpack.c.b16 %v2195, %v2194
          %v2201 = vsel %vm830, %v2186, 0
          %2203 = vmatprep.subr.bf16.mxu0 0
          %2204 = vmatpush1.bf16.msra.mxu0 %v2196
          %2205 = vmatprep.subr.bf16.mxu0 0
          %2206 = vmatpush1.bf16.msra.mxu0 %v2197
          %2207 = vmatprep.subr.bf16.mxu0 0
          %2208 = vmatpush1.bf16.msra.mxu0 0
          %2209 = vmatprep.subr.bf16.mxu0 0
          %2210 = vmatpush1.bf16.msra.mxu0 0
          %2211 = vmatprep.subr.bf16.mxu0 0
          %2212 = vmatpush1.bf16.msra.mxu0 0
          %2213 = vmatprep.subr.bf16.mxu0 0
          %2214 = vmatpush1.bf16.msra.mxu0 0
          %2215 = vmatprep.subr.bf16.mxu0 0
          %2216 = vmatpush1.bf16.msra.mxu0 0
          %2217 = vmatprep.subr.bf16.mxu0 0
          %2218 = vmatpush1.bf16.msra.mxu0 0
          %2219 = vmatprep.subr.bf16.mxu0 0
          %2220 = vmatpush1.bf16.msra.mxu0 0
          %2221 = vmatprep.subr.bf16.mxu0 0
          %2222 = vmatpush1.bf16.msra.mxu0 0
          %2223 = vmatprep.subr.bf16.mxu0 0
          %2224 = vmatpush1.bf16.msra.mxu0 0
          %2225 = vmatprep.subr.bf16.mxu0 0
          %2226 = vmatpush1.bf16.msra.mxu0 0
          %2227 = vmatprep.subr.bf16.mxu0 0
          %2228 = vmatpush1.bf16.msra.mxu0 0
          %2229 = vmatprep.subr.bf16.mxu0 0
          %2230 = vmatpush1.bf16.msra.mxu0 0
          %2231 = vmatprep.subr.bf16.mxu0 0
          %2232 = vmatpush1.bf16.msra.mxu0 0
          %2233 = vmatprep.subr.bf16.mxu0 0
          %2234 = vmatpush1.bf16.msra.mxu0 0
          %2235 = vmatprep.mubr.bf16.mxu0 0
          %2236 = vmatmul.mubr.bf16.gmra.mrb[0].mxu0 %v2201
          %v2237 = vpop.f32.mrb[0].mxu0
          %v2238 = vadd.f32 %v2187, %v2237
          %v2239 = vpop.f32.mrb[0].mxu0
          %v2240 = vpop.f32.mrb[0].mxu0
          %v2241 = vpop.f32.mrb[0].mxu0
          %2242 = vdwg.mxu0
          %v2243 = vadd.f32 %v805, %v2238
          %v2244 = vld [vmem:[%s741] sm:$0x1]
          %v2245 = vld [vmem:[%s744] sm:$0x1]
          %vm2246 = vcmask 253952
          %v2247 = vsel %vm2246, %v2243, 0.0
          %2248 = vadd.xlane.f32.xlu0 %v2247
          %v2249 = vpop.xlane.xlu0 %2248
          %v2250 = vrcp.pop 32.0
          %v2251 = vmul.f32 %v2249, %v2250
          %v2252 = vsub.f32 %v2243, %v2251
          %v2253 = vmul.f32 %v2252, %v2252
          %v2254 = vsel %vm2246, %v2253, 0.0
          %2255 = vadd.xlane.f32.xlu0 %v2254
          %v2256 = vpop.xlane.xlu0 %2255
          %v2257 = vmul.f32 %v2256, %v2250
          %v2258 = vadd.f32 %v2257, 1e-12
          %v2259 = vrsqrt.pop %v2258
          %v2260 = vmul.f32 %v2252, %v2259
          %v2261 = vmul.f32 %v2260, %v2244
          %v2262 = vadd.f32 %v2261, %v2245
          %v2263 = vpack.c.bf16 %v2262, %v2262
          %v2264 = vld [vmem:[%s749] sm:$0xf]
          %v2265 = vld [vmem:[%s749 + $0x4] sm:$0xf]
          %v2266 = vld [vmem:[%s749 + $0x8] sm:$0xf]
          %v2267 = vld [vmem:[%s749 + $0xc] sm:$0xf]
          %v2268 = vld [vmem:[%s752] sm:$0x1]
          %v2273 = vunpack.c.l.b16 %v2264
          %v2274 = vunpack.c.l.b16 %v2265
          %v2275 = vunpack.c.l.b16 %v2266
          %v2276 = vunpack.c.l.b16 %v2267
          %v2277 = vpack.c.b16 %v2274, %v2273
          %v2278 = vpack.c.b16 %v2276, %v2275
          %v2282 = vsel %vm830, %v2263, 0
          %2284 = vmatprep.subr.bf16.mxu0 0
          %2285 = vmatpush1.bf16.msra.mxu0 %v2277
          %2286 = vmatprep.subr.bf16.mxu0 0
          %2287 = vmatpush1.bf16.msra.mxu0 %v2278
          %2288 = vmatprep.subr.bf16.mxu0 0
          %2289 = vmatpush1.bf16.msra.mxu0 0
          %2290 = vmatprep.subr.bf16.mxu0 0
          %2291 = vmatpush1.bf16.msra.mxu0 0
          %2292 = vmatprep.subr.bf16.mxu0 0
          %2293 = vmatpush1.bf16.msra.mxu0 0
          %2294 = vmatprep.subr.bf16.mxu0 0
          %2295 = vmatpush1.bf16.msra.mxu0 0
          %2296 = vmatprep.subr.bf16.mxu0 0
          %2297 = vmatpush1.bf16.msra.mxu0 0
          %2298 = vmatprep.subr.bf16.mxu0 0
          %2299 = vmatpush1.bf16.msra.mxu0 0
          %2300 = vmatprep.subr.bf16.mxu0 0
          %2301 = vmatpush1.bf16.msra.mxu0 0
          %2302 = vmatprep.subr.bf16.mxu0 0
          %2303 = vmatpush1.bf16.msra.mxu0 0
          %2304 = vmatprep.subr.bf16.mxu0 0
          %2305 = vmatpush1.bf16.msra.mxu0 0
          %2306 = vmatprep.subr.bf16.mxu0 0
          %2307 = vmatpush1.bf16.msra.mxu0 0
          %2308 = vmatprep.subr.bf16.mxu0 0
          %2309 = vmatpush1.bf16.msra.mxu0 0
          %2310 = vmatprep.subr.bf16.mxu0 0
          %2311 = vmatpush1.bf16.msra.mxu0 0
          %2312 = vmatprep.subr.bf16.mxu0 0
          %2313 = vmatpush1.bf16.msra.mxu0 0
          %2314 = vmatprep.subr.bf16.mxu0 0
          %2315 = vmatpush1.bf16.msra.mxu0 0
          %2316 = vmatprep.mubr.bf16.mxu0 0
          %2317 = vmatmul.mubr.bf16.gmra.mrb[0].mxu0 %v2282
          %v2318 = vpop.f32.mrb[0].mxu0
          %v2319 = vadd.f32 %v2268, %v2318
          %v2320 = vpop.f32.mrb[0].mxu0
          %v2321 = vpop.f32.mrb[0].mxu0
          %v2322 = vpop.f32.mrb[0].mxu0
          %2323 = vdwg.mxu0
          %v2324 = vmul.f32 %v2319, %v2319
          %v2325 = vmul.f32 %v2319, %v2324
          %v2326 = vmul.f32 %v2325, 0.044715
          %v2327 = vadd.f32 %v2319, %v2326
          %v2328 = vmul.f32 %v2327, 0.7978846
          %v2329 = vtanh.pop %v2328
          %v2330 = vadd.f32 %v2329, 1.0
          %v2331 = vmul.f32 %v2330, 0.5
          %v2332 = vmul.f32 %v2319, %v2331
          %v2333 = vpack.c.bf16 %v2332, %v2332
          %v2334 = vld [vmem:[%s757] sm:$0xf]
          %v2335 = vld [vmem:[%s757 + $0x4] sm:$0xf]
          %v2336 = vld [vmem:[%s757 + $0x8] sm:$0xf]
          %v2337 = vld [vmem:[%s757 + $0xc] sm:$0xf]
          %v2338 = vld [vmem:[%s757 + $0x10] sm:$0xf]
          %v2339 = vld [vmem:[%s757 + $0x14] sm:$0xf]
          %v2340 = vld [vmem:[%s757 + $0x18] sm:$0xf]
          %v2341 = vld [vmem:[%s757 + $0x1c] sm:$0xf]
          %v2342 = vld [vmem:[%s760] sm:$0x1]
          %v2351 = vunpack.c.l.b16 %v2334
          %v2352 = vunpack.c.l.b16 %v2335
          %v2353 = vunpack.c.l.b16 %v2336
          %v2354 = vunpack.c.l.b16 %v2337
          %v2355 = vunpack.c.l.b16 %v2338
          %v2356 = vunpack.c.l.b16 %v2339
          %v2357 = vunpack.c.l.b16 %v2340
          %v2358 = vunpack.c.l.b16 %v2341
          %v2359 = vpack.c.b16 %v2352, %v2351
          %v2360 = vpack.c.b16 %v2354, %v2353
          %v2361 = vpack.c.b16 %v2356, %v2355
          %v2362 = vpack.c.b16 %v2358, %v2357
          %vm2367 = vcmask 523264
          %v2369 = vsel %vm2367, %v2333, 0
          %2371 = vmatprep.subr.bf16.mxu0 0
          %2372 = vmatpush1.bf16.msra.mxu0 %v2359
          %2373 = vmatprep.subr.bf16.mxu0 0
          %2374 = vmatpush1.bf16.msra.mxu0 %v2360
          %2375 = vmatprep.subr.bf16.mxu0 0
          %2376 = vmatpush1.bf16.msra.mxu0 %v2361
          %2377 = vmatprep.subr.bf16.mxu0 0
          %2378 = vmatpush1.bf16.msra.mxu0 %v2362
          %2379 = vmatprep.subr.bf16.mxu0 0
          %2380 = vmatpush1.bf16.msra.mxu0 0
          %2381 = vmatprep.subr.bf16.mxu0 0
          %2382 = vmatpush1.bf16.msra.mxu0 0
          %2383 = vmatprep.subr.bf16.mxu0 0
          %2384 = vmatpush1.bf16.msra.mxu0 0
          %2385 = vmatprep.subr.bf16.mxu0 0
          %2386 = vmatpush1.bf16.msra.mxu0 0
          %2387 = vmatprep.subr.bf16.mxu0 0
          %2388 = vmatpush1.bf16.msra.mxu0 0
          %2389 = vmatprep.subr.bf16.mxu0 0
          %2390 = vmatpush1.bf16.msra.mxu0 0
          %2391 = vmatprep.subr.bf16.mxu0 0
          %2392 = vmatpush1.bf16.msra.mxu0 0
          %2393 = vmatprep.subr.bf16.mxu0 0
          %2394 = vmatpush1.bf16.msra.mxu0 0
          %2395 = vmatprep.subr.bf16.mxu0 0
          %2396 = vmatpush1.bf16.msra.mxu0 0
          %2397 = vmatprep.subr.bf16.mxu0 0
          %2398 = vmatpush1.bf16.msra.mxu0 0
          %2399 = vmatprep.subr.bf16.mxu0 0
          %2400 = vmatpush1.bf16.msra.mxu0 0
          %2401 = vmatprep.subr.bf16.mxu0 0
          %2402 = vmatpush1.bf16.msra.mxu0 0
          %2403 = vmatprep.mubr.bf16.mxu0 0
          %2404 = vmatmul.mubr.bf16.gmra.mrb[0].mxu0 %v2369
          %v2405 = vpop.f32.mrb[0].mxu0
          %v2406 = vadd.f32 %v2342, %v2405
          %v2407 = vpop.f32.mrb[0].mxu0
          %v2408 = vpop.f32.mrb[0].mxu0
          %v2409 = vpop.f32.mrb[0].mxu0
          %2410 = vdwg.mxu0
          %v2411 = vadd.f32 %v2262, %v2406
          %v2412 = vld [vmem:[%s763] sm:$0x1]
          %v2413 = vld [vmem:[%s766] sm:$0x1]
          %v2414 = vsel %vm2246, %v2411, 0.0
          %2415 = vadd.xlane.f32.xlu0 %v2414
          %v2416 = vpop.xlane.xlu0 %2415
          %v2417 = vmul.f32 %v2416, %v2250
          %v2418 = vsub.f32 %v2411, %v2417
          %v2419 = vmul.f32 %v2418, %v2418
          %v2420 = vsel %vm2246, %v2419, 0.0
          %2421 = vadd.xlane.f32.xlu0 %v2420
          %v2422 = vpop.xlane.xlu0 %2421
          %v2423 = vmul.f32 %v2422, %v2250
          %v2424 = vadd.f32 %v2423, 1e-12
          %v2425 = vrsqrt.pop %v2424
          %v2426 = vmul.f32 %v2418, %v2425
          %v2427 = vmul.f32 %v2426, %v2412
          %v2428 = vadd.f32 %v2427, %v2413
          %2429 = vst.msk [vmem:[%s719] sm:$0x1] %vm2246, %v2428
        $region104: #{tpu_custom_call.1} parent=83 // pred_fallthru
          _
        %s2430 = sand.u32 %s460, 1
        %s2431 = scalar_lea.sflag [#allocation9], %s2430
        %s2432 = sand.u32 %s460, 1
        %s2433 = scalar_lea.vmem [#allocation12], %s2432
        // Predicated region
        $region105: #{tpu_custom_call.1} parent=83 // pred_check
          %p2434 = pneg %p470
        $region106: #{tpu_custom_call.1} parent=83 // pred_check_branch
          %2436 = sbr.rel (%p2434) target = $region108
        $region107: #{tpu_custom_call.1} parent=83 // pred_region
          %s2438 = ssub.s32 16, 16
          %2439 = vsyncadd %s2431, %s2438
          %s2440 = smul.addr %s38, 16
          %s2441 = scalar_lea.hbm %s16, %s2440
          %s2443 = sshll.u32 %s2433, 4
          %s2444 = int_to_ptr.vmem [resolvable:$true] %s2443
          %2446 = dma.vmem_to_hbm [thread:$0]  %s2444, 16, %s2441, %s2431
        $region108: #{tpu_custom_call.1} parent=83 // pred_fallthru
          _
      $region84: #{tpu_custom_call.1} parent=5 // pred_fallthru
        _
      %p2447 = scmp.le.s32.totalorder 2, %s29
      // Predicated region
      $region109: #{tpu_custom_call.1} parent=5 // pred_check
        %p2448 = pneg %p2447
      $region110: #{tpu_custom_call.1} parent=5 // pred_check_branch
        %2450 = sbr.rel (%p2448) target = $region112
      $region111: #{tpu_custom_call.1} parent=5 // pred_region
        %s2451 = ssub.s32 %s29, 2
        // Predicated region
        $region113: #{tpu_custom_call.1} parent=111 // pred_check
          %p2452 = pneg %p476
        $region114: #{tpu_custom_call.1} parent=111 // pred_check_branch
          %2454 = sbr.rel (%p2452) target = $region116
        $region115: #{tpu_custom_call.1} parent=111 // pred_region
          %s2455 = sand.u32 %s461, 1
          %s2456 = scalar_lea.sflag [#allocation9], %s2455
          %s2457 = sand.u32 %s461, 1
          %s2458 = scalar_lea.vmem [#allocation12], %s2457
          %2459 = dma.done %s2456, 16
        $region116: #{tpu_custom_call.1} parent=111 // pred_fallthru
          _
      $region112: #{tpu_custom_call.1} parent=5 // pred_fallthru
        _
    $region6: #{tpu_custom_call.1} parent=1 // loop_footer
      %s33 = sadd.s32 1, %s29
    $region7: #{tpu_custom_call.1} parent=1 // loop_footer_branch
      %28 = sbr.rel target = $region3
    $region8: #{tpu_custom_call.1} parent=1 // loop_exit
      _
    %2460 = vsyncpa [#allocation8], 1
    %s2461 = scalar_lea.sflag [#allocation8], 1
    %2462 = vsyncpa %s2461, 1
    %2463 = vsyncpa [#allocation11], 1
    %2464 = vsyncpa [#allocation9], 1
    %s2465 = scalar_lea.sflag [#allocation9], 1
    %2466 = vsyncpa %s2465, 1

</llo_original>
